<compile_context>
chip_gen: v7x
topology: tpu7x:2x2x1
jax: 0.10.0
libtpu: 0.0.40
codegen_flags: <defaults>
</compile_context>

<pallas_src>
import functools

import jax
import jax.numpy as jnp
from jax.experimental import pallas as pl
from jax.experimental.pallas import tpu as pltpu

K_NN = 8                                 # k used by the reference for all knn queries


def _round_up(x, m):
    return ((x + m - 1) // m) * m


def _tpu_vmem_capacity():
    try:
        return int(pltpu.get_tpu_info().vmem_capacity_bytes)
    except Exception:
        return 64 << 20                  # conservative (v7x-sized) fallback


_VMEM_CAP = _tpu_vmem_capacity()
if _VMEM_CAP >= (100 << 20):             # v5e / v6e: 128 MiB physical VMEM
    _VMEM_LIMIT = 96 << 20
    _GEOM_TEMP_BUDGET = 48 << 20
else:                                    # v7x: 64 MiB physical VMEM
    _VMEM_LIMIT = 48 << 20
    _GEOM_TEMP_BUDGET = 24 << 20


def _row_tile(n, cap=1024):
    """Largest power-of-two row tile (>=8) keeping ~8 live (TR, n) f32 temps in budget."""
    n8 = _round_up(max(n, 8), 8)
    per_row = 8 * 4 * n8
    tr = 8
    while (tr * 2 <= cap and tr * 2 * per_row <= _GEOM_TEMP_BUDGET
           and tr * 2 <= n8):
        tr *= 2
    return tr


# ----------------------------------------------------------------------------
# Kernel 1: row-tiled kNN geometry (squared-distance selection, normals, mask prob)
# ----------------------------------------------------------------------------
def _geom_knn_kernel(xt_ref, xf_ref, sq_ref, geo_ref, idx_ref, *, mask_ratio):
    xt = xt_ref[0]                                   # (TR, 3) f32 row tile
    xf = xf_ref[0]                                   # (Np, 3) f32 all points (padded)
    sq_f = sq_ref[0]                                 # (1, Np) hoisted |x_j|^2
    tr = xt.shape[0]
    n_pad = xf.shape[0]

    # squared pairwise distances for this row tile (kept f32: ordering-sensitive)
    sq_t = jnp.sum(xt * xt, axis=-1, keepdims=True)                       # (TR, 1)
    gram = jax.lax.dot_general(                                           # (TR, Np)
        xt, xf, (((1,), (1,)), ((), ())), preferred_element_type=jnp.float32)
    dsq = jnp.maximum(sq_t + sq_f - 2.0 * gram, 0.0)

    # iterative extraction of the 8 smallest (squared) distances per row.
    # One column selected per iteration (matches topk multiplicity semantics on
    # duplicates, so `hit` is NOT reused for the masking). w[i, j] = 1 iff j is
    # among the 8 nearest neighbours of i (incl. self, like torch.cdist+topk),
    # so neighbour gathers become one bf16 MXU matmul instead of gathers.
    col = jax.lax.broadcasted_iota(jnp.int32, (1, n_pad), 1)              # lane iota
    big = jnp.float32(3e38)
    dwork = dsq
    w = jnp.zeros((tr, n_pad), jnp.float32)          # f32 accumulation (v5e: no bf16 VALU)
    s1 = jnp.zeros((tr, 1), jnp.float32)
    s2 = jnp.zeros((tr, 1), jnp.float32)
    sels = []
    for _ in range(K_NN):                            # short, statically unrolled
        m = jnp.min(dwork, axis=-1, keepdims=True)           # (TR, 1) squared min
        hit = dwork == m
        sel = jnp.min(jnp.where(hit, col, n_pad), axis=-1, keepdims=True)
        onehot = col == sel                                  # single selected column
        w = jnp.where(onehot, 1.0, w)                        # select, no cast+add
        dwork = jnp.where(onehot, big, dwork)
        s1 = s1 + jnp.sqrt(m)                                # sqrt only on (TR, 1)
        s2 = s2 + m                                          # m == dist^2
        sels.append(sel)

    # masking curvature proxy: unbiased std (torch default) of the 8 nn distances
    var = jnp.maximum((s2 - s1 * s1 * (1.0 / K_NN)) * (1.0 / (K_NN - 1)), 0.0)
    prob = jax.nn.sigmoid(5.0 * (jnp.sqrt(var) - 0.2)) * mask_ratio       # (TR, 1)

    # normals: point minus centroid of its 8 nearest neighbours, L2-normalized.
    # bf16 MXU matmul with f32 accumulation (keep f32 for validation if needed).
    centroids = jax.lax.dot_general(
        w.astype(jnp.bfloat16), xf.astype(jnp.bfloat16), (((1,), (0,)), ((), ())),
        preferred_element_type=jnp.float32) * (1.0 / K_NN)
    diff = xt - centroids
    dlen = jnp.sqrt(jnp.sum(diff * diff, axis=-1, keepdims=True))
    normals = diff / jnp.maximum(dlen, 1e-12)                 # F.normalize semantics

    geo_ref[0] = jnp.concatenate([normals, prob], axis=-1)    # (TR, 4) = [nx,ny,nz,prob]
    idx_ref[0] = jnp.concatenate(sels, axis=-1)               # (TR, 8) int32 knn indices


# ----------------------------------------------------------------------------
# Kernel 2: row-tiled curvature from stored kNN indices + full normals
# ----------------------------------------------------------------------------
def _geom_curv_kernel(idx_ref, gt_ref, gf_ref, crv_ref):
    idx = idx_ref[0]                                  # (TR, 8) int32
    n_t = gt_ref[0][:, 0:3]                           # (TR, 3) f32 normals of tile rows
    n_f = gf_ref[0][:, 0:3].astype(jnp.bfloat16)      # (Np, 3) all normals
    n_pad = n_f.shape[0]

    col = jax.lax.broadcasted_iota(jnp.int32, (1, n_pad), 1)
    # f32 indicator, one where-select per neighbour (no bf16 VPU arithmetic),
    # single downcast before the MXU contraction.
    w = (col == idx[:, 0:1]).astype(jnp.float32)                          # (TR, Np)
    for k in range(1, K_NN):
        w = jnp.where(col == idx[:, k:k + 1], 1.0, w)
    nsum = jax.lax.dot_general(w.astype(jnp.bfloat16), n_f, (((1,), (0,)), ((), ())),
                               preferred_element_type=jnp.float32)        # (TR, 3)
    # curvature: 1 - mean_j <normal_i, normal_{knn_j(i)}>
    crv_ref[0] = 1.0 - jnp.sum(nsum * n_t, axis=-1, keepdims=True) * (1.0 / K_NN)


def geometry_pallas(points, mask_ratio):
    """Returns (mask_prob (B,N), normals (B,N,3), curvature (B,N,1))."""
    B, N, _ = points.shape
    tr = _row_tile(N)
    n_pad = _round_up(N, tr)
    if n_pad != N:
        # pad with a far-away sentinel point so padded rows/cols never enter any kNN set
        points_p = jnp.pad(points, ((0, 0), (0, n_pad - N), (0, 0)),
                           constant_values=1e6)
    else:
        points_p = points
    R = n_pad // tr

    # hoisted per-batch squared norms (computed once, not per row tile)
    sq_all = jnp.sum(points_p * points_p, axis=-1)[:, None, :]            # (B, 1, Np)

    cparams = pltpu.CompilerParams(
        dimension_semantics=("parallel", "parallel"),   # batch and row tiles both parallel
        vmem_limit_bytes=_VMEM_LIMIT)

    geo, idx = pl.pallas_call(
        functools.partial(_geom_knn_kernel, mask_ratio=mask_ratio),
        out_shape=(jax.ShapeDtypeStruct((B, n_pad, 4), jnp.float32),
                   jax.ShapeDtypeStruct((B, n_pad, K_NN), jnp.int32)),
        grid=(B, R),
        in_specs=[pl.BlockSpec((1, tr, 3), lambda b, r: (b, r, 0)),       # row tile
                  pl.BlockSpec((1, n_pad, 3), lambda b, r: (b, 0, 0)),    # full point set
                  pl.BlockSpec((1, 1, n_pad), lambda b, r: (b, 0, 0))],   # hoisted |x|^2
        out_specs=(pl.BlockSpec((1, tr, 4), lambda b, r: (b, r, 0)),
                   pl.BlockSpec((1, tr, K_NN), lambda b, r: (b, r, 0))),
        compiler_params=cparams,
    )(points_p, points_p, sq_all)

    crv = pl.pallas_call(
        _geom_curv_kernel,
        out_shape=jax.ShapeDtypeStruct((B, n_pad, 1), jnp.float32),
        grid=(B, R),
        in_specs=[pl.BlockSpec((1, tr, K_NN), lambda b, r: (b, r, 0)),
                  pl.BlockSpec((1, tr, 4), lambda b, r: (b, r, 0)),       # tile normals
                  pl.BlockSpec((1, n_pad, 4), lambda b, r: (b, 0, 0))],   # all normals
        out_specs=pl.BlockSpec((1, tr, 1), lambda b, r: (b, r, 0)),
        compiler_params=cparams,
    )(idx, geo, geo)

    normals = geo[:, :N, 0:3]
    mask_prob = geo[:, :N, 3]
    curvature = crv[:, :N, :]
    return mask_prob, normals, curvature


# ----------------------------------------------------------------------------
# Kernel 3: fused encoder + decoder MLP and per-batch loss partial sums
# TODO(synk): the encoder is an external module in the reference; a per-point
#             Linear(3, embed_dim) + ReLU stands in as a synthetic encoder.
# ----------------------------------------------------------------------------
def _mlp_loss_kernel(vis_ref, gt_ref,
                     we_ref, be_ref, w1_ref, b1_ref, w2_ref, b2_ref, w3_ref, b3_ref,
                     out_ref, sp_ref, sc_ref, num_ref, n1_ref, n2_ref, *, m_valid):
    t = pl.program_id(1)
    nt = pl.num_programs(1)
    f32 = jnp.float32

    @pl.when(t == 0)
    def _():                                      # per-batch accumulators
        sp_ref[...] = jnp.zeros_like(sp_ref)      # sum((rec_pos - gt_pos)^2)
        sc_ref[...] = jnp.zeros_like(sc_ref)      # sum((rec_crv - gt_crv)^2)
        num_ref[...] = jnp.zeros_like(num_ref)    # cosine numerator per channel
        n1_ref[...] = jnp.zeros_like(n1_ref)      # |rec_pos|^2 per channel
        n2_ref[...] = jnp.zeros_like(n2_ref)      # |gt_nrm|^2 per channel
        out_ref[...] = jnp.zeros_like(out_ref)

    tm = vis_ref.shape[1]
    x = vis_ref[0].astype(jnp.bfloat16)                                   # (tm, 3)
    h = jnp.dot(x, we_ref[...], preferred_element_type=f32) + be_ref[...]
    h = jnp.maximum(h, 0.0)                                               # encoder ReLU
    h = jnp.dot(h.astype(jnp.bfloat16), w1_ref[...],
                preferred_element_type=f32) + b1_ref[...]
    h = jnp.maximum(h, 0.0)
    h = jnp.dot(h.astype(jnp.bfloat16), w2_ref[...],
                preferred_element_type=f32) + b2_ref[...]
    h = jnp.maximum(h, 0.0)
    rec = jnp.dot(h.astype(jnp.bfloat16), w3_ref[...],
                  preferred_element_type=f32) + b3_ref[...]               # (tm, 4)

    # mask out rows that are padding (rows beyond the true per-batch count)
    rows = t * tm + jax.lax.broadcasted_iota(jnp.int32, (tm, 1), 0)
    valid = (rows < m_valid).astype(f32)                                  # (tm, 1)

    gt = gt_ref[0]                                                        # (tm, 8) packed
    gt_pos = gt[:, 0:3]
    gt_nrm = gt[:, 3:6]
    gt_crv = gt[:, 6:7]
    rec_pos = rec[:, 0:3]
    rec_crv = rec[:, 3:4]

    err_p = rec_pos - gt_pos
    err_c = rec_crv - gt_crv
    sp_ref[...] += jnp.sum(valid * err_p * err_p, keepdims=True)          # (1, 1)
    sc_ref[...] += jnp.sum(valid * err_c * err_c, keepdims=True)          # (1, 1)

    # F.cosine_similarity default dim=1 (the point axis), eps=1e-8
    num_ref[...] += jnp.sum(valid * rec_pos * gt_nrm, axis=0, keepdims=True)   # (1, 3)
    n1_ref[...] += jnp.sum(valid * rec_pos * rec_pos, axis=0, keepdims=True)
    n2_ref[...] += jnp.sum(valid * gt_nrm * gt_nrm, axis=0, keepdims=True)

    @pl.when(t == nt - 1)
    def _():                                      # emit this batch's partial sums
        cos = num_ref[...] / jnp.maximum(
            jnp.sqrt(n1_ref[...]) * jnp.sqrt(n2_ref[...]), 1e-8)          # (1, 3)
        out_ref[0] = jnp.concatenate(
            [sp_ref[...], sc_ref[...], jnp.sum(cos, keepdims=True),
             jnp.zeros((1, 5), f32)], axis=-1)                            # (1, 8)


def mlp_loss_pallas(visible, gt_pos, gt_nrm, gt_crv, params, tm_cap=2048):
    """Returns per-batch partial sums (B, 1, 8): [sse_pos, sse_crv, cos_sum, pad...]."""
    B, M, _ = visible.shape
    tm = min(tm_cap, _round_up(M, 8))
    m_pad = _round_up(M, tm)

    # pack ground-truth channels into one lane-denser input: [pos(3), nrm(3), crv(1), pad(1)]
    gt_pack = jnp.concatenate([gt_pos, gt_nrm, gt_crv, jnp.zeros_like(gt_crv)], axis=-1)
    if m_pad != M:
        visible = jnp.pad(visible, ((0, 0), (0, m_pad - M), (0, 0)))
        gt_pack = jnp.pad(gt_pack, ((0, 0), (0, m_pad - M), (0, 0)))

    we, be, w1, b1, w2, b2, w3, b3 = params
    wargs = (we.astype(jnp.bfloat16), be, w1.astype(jnp.bfloat16), b1,
             w2.astype(jnp.bfloat16), b2, w3.astype(jnp.bfloat16), b3)

    tile = lambda c: pl.BlockSpec((1, tm, c), lambda b, t: (b, t, 0))

    def full_spec(a):
        nd = a.ndim
        return pl.BlockSpec(a.shape, lambda b, t, _nd=nd: (0,) * _nd)

    out = pl.pallas_call(
        functools.partial(_mlp_loss_kernel, m_valid=M),
        out_shape=jax.ShapeDtypeStruct((B, 1, 8), jnp.float32),
        grid=(B, m_pad // tm),
        in_specs=[tile(3), tile(8)] + [full_spec(a) for a in wargs],
        out_specs=pl.BlockSpec((1, 1, 8), lambda b, t: (b, 0, 0)),
        scratch_shapes=[pltpu.VMEM((1, 1), jnp.float32),   # sse_pos
                        pltpu.VMEM((1, 1), jnp.float32),   # sse_crv
                        pltpu.VMEM((1, 3), jnp.float32),   # per-batch num
                        pltpu.VMEM((1, 3), jnp.float32),   # per-batch |rec|^2
                        pltpu.VMEM((1, 3), jnp.float32)],  # per-batch |gt|^2
        compiler_params=pltpu.CompilerParams(
            dimension_semantics=("parallel", "arbitrary"),  # batch parallel (v7x megacore)
            vmem_limit_bytes=_VMEM_LIMIT),
    )(visible, gt_pack, *wargs)
    return out


# ----------------------------------------------------------------------------
# Full forward (glue in plain JAX: mask sampling, index gathers, final reduction)
# ----------------------------------------------------------------------------
def geometric_consistency_pretrain(points, params, key, mask_ratio=0.6):
    B, N, _ = points.shape
    mask_prob, normals, curvature = geometry_pallas(points, mask_ratio)

    # TODO(synk): the reference draws a Bernoulli mask whose per-row count is
    # data-dependent; here we keep the curvature-biased randomness but fix the
    # masked count to N//2 per row so all shapes are static and the reconstructed
    # vs masked tensors align per batch.
    num_mask = N // 2
    u = jax.random.uniform(key, (B, N), jnp.float32)
    score = mask_prob - u                          # higher => more likely masked
    order = jnp.argsort(-score, axis=-1)           # single O(N log N) sort (XLA glue)
    mask_idx = order[:, :num_mask]                 # masked (reconstruction targets)
    vis_idx = order[:, num_mask:]                  # visible (encoder input)

    take = lambda arr, idx: jnp.take_along_axis(arr, idx[..., None], axis=1)
    visible = take(points, vis_idx)                # (B, M, 3)
    gt_pos = take(points, mask_idx)                # (B, M, 3)
    gt_nrm = take(normals, mask_idx)               # (B, M, 3)
    gt_crv = take(curvature, mask_idx)             # (B, M, 1)

    parts = mlp_loss_pallas(visible, gt_pos, gt_nrm, gt_crv, params)   # (B, 1, 8)
    M = num_mask
    sse_pos = jnp.sum(parts[:, 0, 0])
    sse_crv = jnp.sum(parts[:, 0, 1])
    cos_sum = jnp.sum(parts[:, 0, 2])
    pos_loss = sse_pos / (B * M * 3.0)
    crv_loss = sse_crv / (B * M * 1.0)
    normal_loss = 1.0 - cos_sum / (B * 3.0)
    return pos_loss + 0.5 * normal_loss + 0.2 * crv_loss


def init_params(key, embed_dim=32):
    def lin(k, fan_in, fan_out):
        bound = 1.0 / (fan_in ** 0.5)
        kw, kb = jax.random.split(k)
        w = jax.random.uniform(kw, (fan_in, fan_out), jnp.float32, -bound, bound)
        b = jax.random.uniform(kb, (1, fan_out), jnp.float32, -bound, bound)
        return w, b

    ks = jax.random.split(key, 4)
    we, be = lin(ks[0], 3, embed_dim)        # synthetic encoder
    w1, b1 = lin(ks[1], embed_dim, 256)      # decoder Linear(embed_dim, 256)
    w2, b2 = lin(ks[2], 256, 128)            # decoder Linear(256, 128)
    w3, b3 = lin(ks[3], 128, 4)              # decoder Linear(128, 4)
    return (we, be, w1, b1, w2, b2, w3, b3)


if __name__ == "__main__":
    key = jax.random.PRNGKey(0)
    k_pts, k_mask, k_par = jax.random.split(key, 3)

    B, N, EMBED = 2, 64, 32
    points = jax.random.normal(k_pts, (B, N, 3), jnp.float32)
    params = init_params(k_par, embed_dim=EMBED)

    loss = geometric_consistency_pretrain(points, params, k_mask, mask_ratio=0.6)
    jax.block_until_ready(loss)
    assert loss.shape == () and jnp.isfinite(loss)
    print("KERNEL_OK")
</pallas_src>

<mosaic_0001>
module attributes {stable_mosaic.version = 11 : i64} {
  func.func @_geom_knn_kernel(%arg0: i32, %arg1: i32, %arg2: memref<1x64x3xf32, #tpu.memory_space<vmem>>, %arg3: memref<1x64x3xf32, #tpu.memory_space<vmem>>, %arg4: memref<1x1x64xf32, #tpu.memory_space<vmem>>, %arg5: memref<1x64x4xf32, #tpu.memory_space<vmem>>, %arg6: memref<1x64x8xi32, #tpu.memory_space<vmem>>) attributes {dimension_semantics = [#tpu.dimension_semantics<parallel>, #tpu.dimension_semantics<parallel>], iteration_bounds = array<i64: 2, 1>, scalar_prefetch = 0 : i64, scratch_operands = 0 : i64, tpu.core_type = #tpu.core_type<tc>, window_params = [{transform_indices = @transform_0, window_bounds = array<i64: 1, 64, 3>}, {transform_indices = @transform_1, window_bounds = array<i64: 1, 64, 3>}, {transform_indices = @transform_2, window_bounds = array<i64: 1, 1, 64>}, {transform_indices = @transform_3, window_bounds = array<i64: 1, 64, 4>}, {transform_indices = @transform_4, window_bounds = array<i64: 1, 64, 8>}]} {
    %c0 = arith.constant 0 : index
    %c0_0 = arith.constant 0 : index
    %c0_1 = arith.constant 0 : index
    %0 = vector.load %arg2[%c0, %c0_0, %c0_1] : memref<1x64x3xf32, #tpu.memory_space<vmem>>, vector<1x64x3xf32>
    %1 = vector.shape_cast %0 : vector<1x64x3xf32> to vector<64x3xf32>
    %c0_2 = arith.constant 0 : index
    %c0_3 = arith.constant 0 : index
    %c0_4 = arith.constant 0 : index
    %2 = vector.load %arg3[%c0_2, %c0_3, %c0_4] : memref<1x64x3xf32, #tpu.memory_space<vmem>>, vector<1x64x3xf32>
    %3 = vector.shape_cast %2 : vector<1x64x3xf32> to vector<64x3xf32>
    %c0_5 = arith.constant 0 : index
    %c0_6 = arith.constant 0 : index
    %c0_7 = arith.constant 0 : index
    %4 = vector.load %arg4[%c0_5, %c0_6, %c0_7] : memref<1x1x64xf32, #tpu.memory_space<vmem>>, vector<1x1x64xf32>
    %5 = vector.shape_cast %4 : vector<1x1x64xf32> to vector<1x64xf32>
    %6 = arith.mulf %1, %1 : vector<64x3xf32>
    %cst = arith.constant dense<0.000000e+00> : vector<64xf32>
    %7 = vector.multi_reduction <add>, %6, %cst [1] : vector<64x3xf32> to vector<64xf32>
    %8 = vector.shape_cast %7 : vector<64xf32> to vector<64x1xf32>
    %cst_8 = arith.constant dense<0.000000e+00> : vector<64x64xf32>
    %9 = tpu.matmul %1, %3, %cst_8 {dimension_numbers = #tpu.dot_dimension_numbers<[1], [1], [0], [0], [0, 0, 1, 0], [], []>} : vector<64x3xf32>, vector<64x3xf32>, vector<64x64xf32> -> vector<64x64xf32>
    %10 = vector.broadcast %8 : vector<64x1xf32> to vector<64x64xf32>
    %11 = vector.broadcast %5 : vector<1x64xf32> to vector<64x64xf32>
    %12 = arith.addf %10, %11 : vector<64x64xf32>
    %cst_9 = arith.constant 2.000000e+00 : f32
    %13 = vector.broadcast %cst_9 : f32 to vector<64x64xf32>
    %14 = arith.mulf %13, %9 : vector<64x64xf32>
    %15 = arith.subf %12, %14 : vector<64x64xf32>
    %cst_10 = arith.constant 0.000000e+00 : f32
    %16 = vector.broadcast %cst_10 : f32 to vector<64x64xf32>
    %17 = arith.maximumf %15, %16 : vector<64x64xf32>
    %18 = tpu.iota {dimensions = array<i32: 1>} : vector<1x64xi32>
    %cst_11 = arith.constant 0.000000e+00 : f32
    %19 = vector.broadcast %cst_11 : f32 to vector<64x64xf32>
    %cst_12 = arith.constant 0.000000e+00 : f32
    %20 = vector.broadcast %cst_12 : f32 to vector<64x1xf32>
    %cst_13 = arith.constant 0.000000e+00 : f32
    %21 = vector.broadcast %cst_13 : f32 to vector<64x1xf32>
    %cst_14 = arith.constant dense<0x7F800000> : vector<64xf32>
    %22 = vector.multi_reduction <minimumf>, %17, %cst_14 [1] : vector<64x64xf32> to vector<64xf32>
    %23 = vector.shape_cast %22 : vector<64xf32> to vector<64x1xf32>
    %24 = vector.broadcast %23 : vector<64x1xf32> to vector<64x64xf32>
    %25 = arith.cmpf oeq, %17, %24 : vector<64x64xf32>
    %c64_i32 = arith.constant 64 : i32
    %26 = vector.shape_cast %18 : vector<1x64xi32> to vector<1x64xi32>
    %27 = vector.broadcast %26 : vector<1x64xi32> to vector<64x64xi32>
    %28 = vector.broadcast %c64_i32 : i32 to vector<64x64xi32>
    %29 = arith.select %25, %27, %28 : vector<64x64xi1>, vector<64x64xi32>
    %cst_15 = arith.constant dense<2147483647> : vector<64xi32>
    %30 = vector.multi_reduction <minsi>, %29, %cst_15 [1] : vector<64x64xi32> to vector<64xi32>
    %31 = vector.shape_cast %30 : vector<64xi32> to vector<64x1xi32>
    %32 = vector.broadcast %18 : vector<1x64xi32> to vector<64x64xi32>
    %33 = vector.broadcast %31 : vector<64x1xi32> to vector<64x64xi32>
    %34 = arith.cmpi eq, %32, %33 : vector<64x64xi32>
    %cst_16 = arith.constant 1.000000e+00 : f32
    %35 = vector.broadcast %cst_16 : f32 to vector<64x64xf32>
    %36 = arith.select %34, %35, %19 : vector<64x64xi1>, vector<64x64xf32>
    %cst_17 = arith.constant 3.000000e+38 : f32
    %37 = vector.broadcast %cst_17 : f32 to vector<64x64xf32>
    %38 = arith.select %34, %37, %17 : vector<64x64xi1>, vector<64x64xf32>
    %39 = math.sqrt %23 : vector<64x1xf32>
    %40 = arith.addf %20, %39 : vector<64x1xf32>
    %41 = arith.addf %21, %23 : vector<64x1xf32>
    %cst_18 = arith.constant dense<0x7F800000> : vector<64xf32>
    %42 = vector.multi_reduction <minimumf>, %38, %cst_18 [1] : vector<64x64xf32> to vector<64xf32>
    %43 = vector.shape_cast %42 : vector<64xf32> to vector<64x1xf32>
    %44 = vector.broadcast %43 : vector<64x1xf32> to vector<64x64xf32>
    %45 = arith.cmpf oeq, %38, %44 : vector<64x64xf32>
    %c64_i32_19 = arith.constant 64 : i32
    %46 = vector.shape_cast %18 : vector<1x64xi32> to vector<1x64xi32>
    %47 = vector.broadcast %46 : vector<1x64xi32> to vector<64x64xi32>
    %48 = vector.broadcast %c64_i32_19 : i32 to vector<64x64xi32>
    %49 = arith.select %45, %47, %48 : vector<64x64xi1>, vector<64x64xi32>
    %cst_20 = arith.constant dense<2147483647> : vector<64xi32>
    %50 = vector.multi_reduction <minsi>, %49, %cst_20 [1] : vector<64x64xi32> to vector<64xi32>
    %51 = vector.shape_cast %50 : vector<64xi32> to vector<64x1xi32>
    %52 = vector.broadcast %18 : vector<1x64xi32> to vector<64x64xi32>
    %53 = vector.broadcast %51 : vector<64x1xi32> to vector<64x64xi32>
    %54 = arith.cmpi eq, %52, %53 : vector<64x64xi32>
    %cst_21 = arith.constant 1.000000e+00 : f32
    %55 = vector.broadcast %cst_21 : f32 to vector<64x64xf32>
    %56 = arith.select %54, %55, %36 : vector<64x64xi1>, vector<64x64xf32>
    %cst_22 = arith.constant 3.000000e+38 : f32
    %57 = vector.broadcast %cst_22 : f32 to vector<64x64xf32>
    %58 = arith.select %54, %57, %38 : vector<64x64xi1>, vector<64x64xf32>
    %59 = math.sqrt %43 : vector<64x1xf32>
    %60 = arith.addf %40, %59 : vector<64x1xf32>
    %61 = arith.addf %41, %43 : vector<64x1xf32>
    %cst_23 = arith.constant dense<0x7F800000> : vector<64xf32>
    %62 = vector.multi_reduction <minimumf>, %58, %cst_23 [1] : vector<64x64xf32> to vector<64xf32>
    %63 = vector.shape_cast %62 : vector<64xf32> to vector<64x1xf32>
    %64 = vector.broadcast %63 : vector<64x1xf32> to vector<64x64xf32>
    %65 = arith.cmpf oeq, %58, %64 : vector<64x64xf32>
    %c64_i32_24 = arith.constant 64 : i32
    %66 = vector.shape_cast %18 : vector<1x64xi32> to vector<1x64xi32>
    %67 = vector.broadcast %66 : vector<1x64xi32> to vector<64x64xi32>
    %68 = vector.broadcast %c64_i32_24 : i32 to vector<64x64xi32>
    %69 = arith.select %65, %67, %68 : vector<64x64xi1>, vector<64x64xi32>
    %cst_25 = arith.constant dense<2147483647> : vector<64xi32>
    %70 = vector.multi_reduction <minsi>, %69, %cst_25 [1] : vector<64x64xi32> to vector<64xi32>
    %71 = vector.shape_cast %70 : vector<64xi32> to vector<64x1xi32>
    %72 = vector.broadcast %18 : vector<1x64xi32> to vector<64x64xi32>
    %73 = vector.broadcast %71 : vector<64x1xi32> to vector<64x64xi32>
    %74 = arith.cmpi eq, %72, %73 : vector<64x64xi32>
    %cst_26 = arith.constant 1.000000e+00 : f32
    %75 = vector.broadcast %cst_26 : f32 to vector<64x64xf32>
    %76 = arith.select %74, %75, %56 : vector<64x64xi1>, vector<64x64xf32>
    %cst_27 = arith.constant 3.000000e+38 : f32
    %77 = vector.broadcast %cst_27 : f32 to vector<64x64xf32>
    %78 = arith.select %74, %77, %58 : vector<64x64xi1>, vector<64x64xf32>
    %79 = math.sqrt %63 : vector<64x1xf32>
    %80 = arith.addf %60, %79 : vector<64x1xf32>
    %81 = arith.addf %61, %63 : vector<64x1xf32>
    %cst_28 = arith.constant dense<0x7F800000> : vector<64xf32>
    %82 = vector.multi_reduction <minimumf>, %78, %cst_28 [1] : vector<64x64xf32> to vector<64xf32>
    %83 = vector.shape_cast %82 : vector<64xf32> to vector<64x1xf32>
    %84 = vector.broadcast %83 : vector<64x1xf32> to vector<64x64xf32>
    %85 = arith.cmpf oeq, %78, %84 : vector<64x64xf32>
    %c64_i32_29 = arith.constant 64 : i32
    %86 = vector.shape_cast %18 : vector<1x64xi32> to vector<1x64xi32>
    %87 = vector.broadcast %86 : vector<1x64xi32> to vector<64x64xi32>
    %88 = vector.broadcast %c64_i32_29 : i32 to vector<64x64xi32>
    %89 = arith.select %85, %87, %88 : vector<64x64xi1>, vector<64x64xi32>
    %cst_30 = arith.constant dense<2147483647> : vector<64xi32>
    %90 = vector.multi_reduction <minsi>, %89, %cst_30 [1] : vector<64x64xi32> to vector<64xi32>
    %91 = vector.shape_cast %90 : vector<64xi32> to vector<64x1xi32>
    %92 = vector.broadcast %18 : vector<1x64xi32> to vector<64x64xi32>
    %93 = vector.broadcast %91 : vector<64x1xi32> to vector<64x64xi32>
    %94 = arith.cmpi eq, %92, %93 : vector<64x64xi32>
    %cst_31 = arith.constant 1.000000e+00 : f32
    %95 = vector.broadcast %cst_31 : f32 to vector<64x64xf32>
    %96 = arith.select %94, %95, %76 : vector<64x64xi1>, vector<64x64xf32>
    %cst_32 = arith.constant 3.000000e+38 : f32
    %97 = vector.broadcast %cst_32 : f32 to vector<64x64xf32>
    %98 = arith.select %94, %97, %78 : vector<64x64xi1>, vector<64x64xf32>
    %99 = math.sqrt %83 : vector<64x1xf32>
    %100 = arith.addf %80, %99 : vector<64x1xf32>
    %101 = arith.addf %81, %83 : vector<64x1xf32>
    %cst_33 = arith.constant dense<0x7F800000> : vector<64xf32>
    %102 = vector.multi_reduction <minimumf>, %98, %cst_33 [1] : vector<64x64xf32> to vector<64xf32>
    %103 = vector.shape_cast %102 : vector<64xf32> to vector<64x1xf32>
    %104 = vector.broadcast %103 : vector<64x1xf32> to vector<64x64xf32>
    %105 = arith.cmpf oeq, %98, %104 : vector<64x64xf32>
    %c64_i32_34 = arith.constant 64 : i32
    %106 = vector.shape_cast %18 : vector<1x64xi32> to vector<1x64xi32>
    %107 = vector.broadcast %106 : vector<1x64xi32> to vector<64x64xi32>
    %108 = vector.broadcast %c64_i32_34 : i32 to vector<64x64xi32>
    %109 = arith.select %105, %107, %108 : vector<64x64xi1>, vector<64x64xi32>
    %cst_35 = arith.constant dense<2147483647> : vector<64xi32>
    %110 = vector.multi_reduction <minsi>, %109, %cst_35 [1] : vector<64x64xi32> to vector<64xi32>
    %111 = vector.shape_cast %110 : vector<64xi32> to vector<64x1xi32>
    %112 = vector.broadcast %18 : vector<1x64xi32> to vector<64x64xi32>
    %113 = vector.broadcast %111 : vector<64x1xi32> to vector<64x64xi32>
    %114 = arith.cmpi eq, %112, %113 : vector<64x64xi32>
    %cst_36 = arith.constant 1.000000e+00 : f32
    %115 = vector.broadcast %cst_36 : f32 to vector<64x64xf32>
    %116 = arith.select %114, %115, %96 : vector<64x64xi1>, vector<64x64xf32>
    %cst_37 = arith.constant 3.000000e+38 : f32
    %117 = vector.broadcast %cst_37 : f32 to vector<64x64xf32>
    %118 = arith.select %114, %117, %98 : vector<64x64xi1>, vector<64x64xf32>
    %119 = math.sqrt %103 : vector<64x1xf32>
    %120 = arith.addf %100, %119 : vector<64x1xf32>
    %121 = arith.addf %101, %103 : vector<64x1xf32>
    %cst_38 = arith.constant dense<0x7F800000> : vector<64xf32>
    %122 = vector.multi_reduction <minimumf>, %118, %cst_38 [1] : vector<64x64xf32> to vector<64xf32>
    %123 = vector.shape_cast %122 : vector<64xf32> to vector<64x1xf32>
    %124 = vector.broadcast %123 : vector<64x1xf32> to vector<64x64xf32>
    %125 = arith.cmpf oeq, %118, %124 : vector<64x64xf32>
    %c64_i32_39 = arith.constant 64 : i32
    %126 = vector.shape_cast %18 : vector<1x64xi32> to vector<1x64xi32>
    %127 = vector.broadcast %126 : vector<1x64xi32> to vector<64x64xi32>
    %128 = vector.broadcast %c64_i32_39 : i32 to vector<64x64xi32>
    %129 = arith.select %125, %127, %128 : vector<64x64xi1>, vector<64x64xi32>
    %cst_40 = arith.constant dense<2147483647> : vector<64xi32>
    %130 = vector.multi_reduction <minsi>, %129, %cst_40 [1] : vector<64x64xi32> to vector<64xi32>
    %131 = vector.shape_cast %130 : vector<64xi32> to vector<64x1xi32>
    %132 = vector.broadcast %18 : vector<1x64xi32> to vector<64x64xi32>
    %133 = vector.broadcast %131 : vector<64x1xi32> to vector<64x64xi32>
    %134 = arith.cmpi eq, %132, %133 : vector<64x64xi32>
    %cst_41 = arith.constant 1.000000e+00 : f32
    %135 = vector.broadcast %cst_41 : f32 to vector<64x64xf32>
    %136 = arith.select %134, %135, %116 : vector<64x64xi1>, vector<64x64xf32>
    %cst_42 = arith.constant 3.000000e+38 : f32
    %137 = vector.broadcast %cst_42 : f32 to vector<64x64xf32>
    %138 = arith.select %134, %137, %118 : vector<64x64xi1>, vector<64x64xf32>
    %139 = math.sqrt %123 : vector<64x1xf32>
    %140 = arith.addf %120, %139 : vector<64x1xf32>
    %141 = arith.addf %121, %123 : vector<64x1xf32>
    %cst_43 = arith.constant dense<0x7F800000> : vector<64xf32>
    %142 = vector.multi_reduction <minimumf>, %138, %cst_43 [1] : vector<64x64xf32> to vector<64xf32>
    %143 = vector.shape_cast %142 : vector<64xf32> to vector<64x1xf32>
    %144 = vector.broadcast %143 : vector<64x1xf32> to vector<64x64xf32>
    %145 = arith.cmpf oeq, %138, %144 : vector<64x64xf32>
    %c64_i32_44 = arith.constant 64 : i32
    %146 = vector.shape_cast %18 : vector<1x64xi32> to vector<1x64xi32>
    %147 = vector.broadcast %146 : vector<1x64xi32> to vector<64x64xi32>
    %148 = vector.broadcast %c64_i32_44 : i32 to vector<64x64xi32>
    %149 = arith.select %145, %147, %148 : vector<64x64xi1>, vector<64x64xi32>
    %cst_45 = arith.constant dense<2147483647> : vector<64xi32>
    %150 = vector.multi_reduction <minsi>, %149, %cst_45 [1] : vector<64x64xi32> to vector<64xi32>
    %151 = vector.shape_cast %150 : vector<64xi32> to vector<64x1xi32>
    %152 = vector.broadcast %18 : vector<1x64xi32> to vector<64x64xi32>
    %153 = vector.broadcast %151 : vector<64x1xi32> to vector<64x64xi32>
    %154 = arith.cmpi eq, %152, %153 : vector<64x64xi32>
    %cst_46 = arith.constant 1.000000e+00 : f32
    %155 = vector.broadcast %cst_46 : f32 to vector<64x64xf32>
    %156 = arith.select %154, %155, %136 : vector<64x64xi1>, vector<64x64xf32>
    %cst_47 = arith.constant 3.000000e+38 : f32
    %157 = vector.broadcast %cst_47 : f32 to vector<64x64xf32>
    %158 = arith.select %154, %157, %138 : vector<64x64xi1>, vector<64x64xf32>
    %159 = math.sqrt %143 : vector<64x1xf32>
    %160 = arith.addf %140, %159 : vector<64x1xf32>
    %161 = arith.addf %141, %143 : vector<64x1xf32>
    %cst_48 = arith.constant dense<0x7F800000> : vector<64xf32>
    %162 = vector.multi_reduction <minimumf>, %158, %cst_48 [1] : vector<64x64xf32> to vector<64xf32>
    %163 = vector.shape_cast %162 : vector<64xf32> to vector<64x1xf32>
    %164 = vector.broadcast %163 : vector<64x1xf32> to vector<64x64xf32>
    %165 = arith.cmpf oeq, %158, %164 : vector<64x64xf32>
    %c64_i32_49 = arith.constant 64 : i32
    %166 = vector.shape_cast %18 : vector<1x64xi32> to vector<1x64xi32>
    %167 = vector.broadcast %166 : vector<1x64xi32> to vector<64x64xi32>
    %168 = vector.broadcast %c64_i32_49 : i32 to vector<64x64xi32>
    %169 = arith.select %165, %167, %168 : vector<64x64xi1>, vector<64x64xi32>
    %cst_50 = arith.constant dense<2147483647> : vector<64xi32>
    %170 = vector.multi_reduction <minsi>, %169, %cst_50 [1] : vector<64x64xi32> to vector<64xi32>
    %171 = vector.shape_cast %170 : vector<64xi32> to vector<64x1xi32>
    %172 = vector.broadcast %18 : vector<1x64xi32> to vector<64x64xi32>
    %173 = vector.broadcast %171 : vector<64x1xi32> to vector<64x64xi32>
    %174 = arith.cmpi eq, %172, %173 : vector<64x64xi32>
    %cst_51 = arith.constant 1.000000e+00 : f32
    %175 = vector.broadcast %cst_51 : f32 to vector<64x64xf32>
    %176 = arith.select %174, %175, %156 : vector<64x64xi1>, vector<64x64xf32>
    %177 = math.sqrt %163 : vector<64x1xf32>
    %178 = arith.addf %160, %177 : vector<64x1xf32>
    %179 = arith.addf %161, %163 : vector<64x1xf32>
    %180 = arith.mulf %178, %178 : vector<64x1xf32>
    %cst_52 = arith.constant 1.250000e-01 : f32
    %181 = vector.broadcast %cst_52 : f32 to vector<64x1xf32>
    %182 = arith.mulf %180, %181 : vector<64x1xf32>
    %183 = arith.subf %179, %182 : vector<64x1xf32>
    %cst_53 = arith.constant 0.142857149 : f32
    %184 = vector.broadcast %cst_53 : f32 to vector<64x1xf32>
    %185 = arith.mulf %183, %184 : vector<64x1xf32>
    %cst_54 = arith.constant 0.000000e+00 : f32
    %186 = vector.broadcast %cst_54 : f32 to vector<64x1xf32>
    %187 = arith.maximumf %185, %186 : vector<64x1xf32>
    %188 = math.sqrt %187 : vector<64x1xf32>
    %cst_55 = arith.constant 2.000000e-01 : f32
    %189 = vector.broadcast %cst_55 : f32 to vector<64x1xf32>
    %190 = arith.subf %188, %189 : vector<64x1xf32>
    %cst_56 = arith.constant 5.000000e+00 : f32
    %191 = vector.broadcast %cst_56 : f32 to vector<64x1xf32>
    %192 = arith.mulf %191, %190 : vector<64x1xf32>
    %193 = arith.negf %192 : vector<64x1xf32>
    %194 = math.exp %193 : vector<64x1xf32>
    %cst_57 = arith.constant 1.000000e+00 : f32
    %195 = vector.broadcast %cst_57 : f32 to vector<64x1xf32>
    %196 = arith.addf %195, %194 : vector<64x1xf32>
    %197 = arith.divf %195, %196 : vector<64x1xf32>
    %cst_58 = arith.constant 6.000000e-01 : f32
    %198 = vector.broadcast %cst_58 : f32 to vector<64x1xf32>
    %199 = arith.mulf %197, %198 : vector<64x1xf32>
    %200 = arith.truncf %176 : vector<64x64xf32> to vector<64x64xbf16>
    %201 = arith.truncf %3 : vector<64x3xf32> to vector<64x3xbf16>
    %cst_59 = arith.constant dense<0.000000e+00> : vector<64x3xf32>
    %202 = tpu.matmul %200, %201, %cst_59 {dimension_numbers = #tpu.dot_dimension_numbers<[1], [0], [0], [1], [0, 0, 1, 1], [], []>} : vector<64x64xbf16>, vector<64x3xbf16>, vector<64x3xf32> -> vector<64x3xf32>
    %cst_60 = arith.constant 1.250000e-01 : f32
    %203 = vector.broadcast %cst_60 : f32 to vector<64x3xf32>
    %204 = arith.mulf %202, %203 : vector<64x3xf32>
    %205 = arith.subf %1, %204 : vector<64x3xf32>
    %206 = arith.mulf %205, %205 : vector<64x3xf32>
    %cst_61 = arith.constant dense<0.000000e+00> : vector<64xf32>
    %207 = vector.multi_reduction <add>, %206, %cst_61 [1] : vector<64x3xf32> to vector<64xf32>
    %208 = vector.shape_cast %207 : vector<64xf32> to vector<64x1xf32>
    %209 = math.sqrt %208 : vector<64x1xf32>
    %cst_62 = arith.constant 9.99999996E-13 : f32
    %210 = vector.broadcast %cst_62 : f32 to vector<64x1xf32>
    %211 = arith.maximumf %209, %210 : vector<64x1xf32>
    %212 = vector.broadcast %211 : vector<64x1xf32> to vector<64x3xf32>
    %213 = arith.divf %205, %212 : vector<64x3xf32>
    %214 = tpu.concatenate %213, %199 in 1 : vector<64x3xf32>, vector<64x1xf32> -> vector<64x4xf32>
    %c0_63 = arith.constant 0 : index
    %c0_64 = arith.constant 0 : index
    %c0_65 = arith.constant 0 : index
    %215 = vector.load %arg5[%c0_63, %c0_64, %c0_65] : memref<1x64x4xf32, #tpu.memory_space<vmem>>, vector<1x64x4xf32>
    %216 = vector.shape_cast %215 : vector<1x64x4xf32> to vector<64x4xf32>
    %217 = vector.shape_cast %214 : vector<64x4xf32> to vector<1x64x4xf32>
    tpu.vector_store %arg5[%c0_63, %c0_64, %c0_65], %217 {strides = array<i32>} : memref<1x64x4xf32, #tpu.memory_space<vmem>>, vector<1x64x4xf32>,
    %218 = tpu.concatenate %31, %51, %71, %91, %111, %131, %151, %171 in 1 : vector<64x1xi32>, vector<64x1xi32>, vector<64x1xi32>, vector<64x1xi32>, vector<64x1xi32>, vector<64x1xi32>, vector<64x1xi32>, vector<64x1xi32> -> vector<64x8xi32>
    %c0_66 = arith.constant 0 : index
    %c0_67 = arith.constant 0 : index
    %c0_68 = arith.constant 0 : index
    %219 = vector.load %arg6[%c0_66, %c0_67, %c0_68] : memref<1x64x8xi32, #tpu.memory_space<vmem>>, vector<1x64x8xi32>
    %220 = vector.shape_cast %219 : vector<1x64x8xi32> to vector<64x8xi32>
    %221 = vector.shape_cast %218 : vector<64x8xi32> to vector<1x64x8xi32>
    tpu.vector_store %arg6[%c0_66, %c0_67, %c0_68], %221 {strides = array<i32>} : memref<1x64x8xi32, #tpu.memory_space<vmem>>, vector<1x64x8xi32>,
    return
  }
  func.func @transform_0(%arg0: i32, %arg1: i32) -> (i32, i32, i32) {
    %c0_i32 = arith.constant 0 : i32
    %c0_i32_0 = arith.constant 0 : i32
    return %arg0, %arg1, %c0_i32 : i32, i32, i32
  }
  func.func @transform_1(%arg0: i32, %arg1: i32) -> (i32, i32, i32) {
    %c0_i32 = arith.constant 0 : i32
    %c0_i32_0 = arith.constant 0 : i32
    %c0_i32_1 = arith.constant 0 : i32
    return %arg0, %c0_i32, %c0_i32_0 : i32, i32, i32
  }
  func.func @transform_2(%arg0: i32, %arg1: i32) -> (i32, i32, i32) {
    %c0_i32 = arith.constant 0 : i32
    %c0_i32_0 = arith.constant 0 : i32
    %c0_i32_1 = arith.constant 0 : i32
    return %arg0, %c0_i32, %c0_i32_0 : i32, i32, i32
  }
  func.func @transform_3(%arg0: i32, %arg1: i32) -> (i32, i32, i32) {
    %c0_i32 = arith.constant 0 : i32
    %c0_i32_0 = arith.constant 0 : i32
    return %arg0, %arg1, %c0_i32 : i32, i32, i32
  }
  func.func @transform_4(%arg0: i32, %arg1: i32) -> (i32, i32, i32) {
    %c0_i32 = arith.constant 0 : i32
    %c0_i32_0 = arith.constant 0 : i32
    return %arg0, %arg1, %c0_i32 : i32, i32, i32
  }
}

</mosaic_0001>

<llo_original>
// kernel: tpu_custom_call.1
$region0: #{tpu_custom_call.1}
  #allocation0 [shape = 'u32[]', space=smem, size = 0x4, offset = 0x4, fixed_abs, tag = 'smem constant byte address 0x4 - core index']
  #allocation1 [shape = 'u32[144,128]{1,0:T(1,128)}', space=vmem, size = 0x12000, scoped, tag = 'internal scratch']
  %s0 = inlined_call_operand.vmem [shape: f32[2,64,3], index: 0, kind: input, shape index: {}]
  %s1 = inlined_call_operand.vmem [shape: f32[2,64,3], index: 1, kind: input, shape index: {}]
  %s2 = inlined_call_operand.vmem [shape: f32[2,1,64], index: 2, kind: input, shape index: {}]
  %s3 = inlined_call_operand.vmem [shape: f32[2,64,4], index: 3, kind: output, shape index: {0}]
  %s4 = inlined_call_operand.vmem [shape: s32[2,64,8], index: 4, kind: output, shape index: {1}]
  %5 = xla_tuple %s3, %s4
  %s6 = sld [smem:[#allocation0]]
  $region53: #{tpu_custom_call.1} parent=0
    _
  %s8 = ssub.s32 1, %s6
  %s9 = scalar_select 0, %s8, %s6
  loop: start=0, step=1, limit=4
  $region2: #{tpu_custom_call.1} parent=0 // loop_pre_header
    _
  $region3: #{tpu_custom_call.1} parent=0 // loop_header
    %s11 = sphi 0, %s15
    %p12 = scmp.ge.s32.totalorder %s11, 4
    %s18 = sphi 0, %s30
    %s19 = sphi 0, %s26
    %s20 = sphi 0, %s18
    %s21 = sphi 0, %s19
    %s22 = sphi 0, %s20
    %s23 = sphi 0, %s21
    %s35 = sphi 0, %s37
    %s38 = sphi 0, %s35
    %s39 = sphi 0, %s38
    %s55 = sphi 0, %s39
    %s61 = sphi 0, %s63
    %s64 = sphi 0, %s61
    %s65 = sphi 0, %s64
    %s81 = sphi 0, %s65
    %s87 = sphi 0, %s89
    %s90 = sphi 0, %s87
    %s91 = sphi 0, %s90
    %s107 = sphi 0, %s91
    %s115 = sphi 0, %s117
    %s118 = sphi 0, %s115
    %s119 = sphi 0, %s118
    %s135 = sphi 0, %s119
    %s143 = sphi 0, %s145
    %s146 = sphi 0, %s143
    %s147 = sphi 0, %s146
    %s163 = sphi 0, %s147
  $region4: #{tpu_custom_call.1} parent=0 // loop_header_branch
    %14 = sbr.rel (%p12) target = $region8
  $region5: #{tpu_custom_call.1} parent=0 // loop_body
    %s16 = ssub.s32 %s11, 1
    %s17 = ssub.s32 %s11, 2
    %s24 = sadd.s32 1, %s19
    %p25 = scmp.ge.s32.totalorder %s24, 1
    %s26 = scalar_select %p25, 0, %s24
    %s27 = sadd.s32 1, %s18
    %s28 = scalar_select %p25, %s27, %s18
    %p29 = scmp.ge.s32.totalorder %s28, 2
    %s30 = scalar_select %p29, 0, %s28
    %s31 = ssub.s32 %s18, %s30
    %s32 = ssub.s32 %s19, %s26
    %s33 = sor.u32 %s31, %s32
    %p34 = scmp.eq.s32.totalorder %s33, 0
    %s36 = sadd.s32 %s35, 1
    %s37 = scalar_select %p34, %s35, %s36
    %p40 = pneg %p34
    %p41 = scmp.eq.s32.totalorder %s11, 1
    %p42 = por %p40, %p41
    %p43 = scmp.ne.s32.totalorder %s35, %s38
    %p44 = scmp.eq.s32.totalorder %s11, 0
    %p45 = por %p43, %p44
    %p46 = scmp.ne.s32.totalorder %s35, %s38
    %p47 = scmp.eq.s32.totalorder %s16, 1
    %p48 = por %p46, %p47
    %p49 = scmp.ne.s32.totalorder %s38, %s39
    %p50 = scmp.eq.s32.totalorder %s16, 0
    %p51 = por %p49, %p50
    %p52 = scmp.ne.s32.totalorder %s38, %s39
    %p53 = scmp.eq.s32.totalorder %s17, 1
    %p54 = por %p52, %p53
    %p56 = scmp.ne.s32.totalorder %s39, %s55
    %p57 = scmp.eq.s32.totalorder %s17, 0
    %p58 = por %p56, %p57
    %s59 = ssub.s32 %s18, %s30
    %p60 = scmp.eq.s32.totalorder %s59, 0
    %s62 = sadd.s32 %s61, 1
    %s63 = scalar_select %p60, %s61, %s62
    %p66 = pneg %p60
    %p67 = scmp.eq.s32.totalorder %s11, 1
    %p68 = por %p66, %p67
    %p69 = scmp.ne.s32.totalorder %s61, %s64
    %p70 = scmp.eq.s32.totalorder %s11, 0
    %p71 = por %p69, %p70
    %p72 = scmp.ne.s32.totalorder %s61, %s64
    %p73 = scmp.eq.s32.totalorder %s16, 1
    %p74 = por %p72, %p73
    %p75 = scmp.ne.s32.totalorder %s64, %s65
    %p76 = scmp.eq.s32.totalorder %s16, 0
    %p77 = por %p75, %p76
    %p78 = scmp.ne.s32.totalorder %s64, %s65
    %p79 = scmp.eq.s32.totalorder %s17, 1
    %p80 = por %p78, %p79
    %p82 = scmp.ne.s32.totalorder %s65, %s81
    %p83 = scmp.eq.s32.totalorder %s17, 0
    %p84 = por %p82, %p83
    %s85 = ssub.s32 %s18, %s30
    %p86 = scmp.eq.s32.totalorder %s85, 0
    %s88 = sadd.s32 %s87, 1
    %s89 = scalar_select %p86, %s87, %s88
    %p92 = pneg %p86
    %p93 = scmp.eq.s32.totalorder %s11, 1
    %p94 = por %p92, %p93
    %p95 = scmp.ne.s32.totalorder %s87, %s90
    %p96 = scmp.eq.s32.totalorder %s11, 0
    %p97 = por %p95, %p96
    %p98 = scmp.ne.s32.totalorder %s87, %s90
    %p99 = scmp.eq.s32.totalorder %s16, 1
    %p100 = por %p98, %p99
    %p101 = scmp.ne.s32.totalorder %s90, %s91
    %p102 = scmp.eq.s32.totalorder %s16, 0
    %p103 = por %p101, %p102
    %p104 = scmp.ne.s32.totalorder %s90, %s91
    %p105 = scmp.eq.s32.totalorder %s17, 1
    %p106 = por %p104, %p105
    %p108 = scmp.ne.s32.totalorder %s91, %s107
    %p109 = scmp.eq.s32.totalorder %s17, 0
    %p110 = por %p108, %p109
    %s111 = ssub.s32 %s18, %s30
    %s112 = ssub.s32 %s19, %s26
    %s113 = sor.u32 %s111, %s112
    %p114 = scmp.eq.s32.totalorder %s113, 0
    %s116 = sadd.s32 %s115, 1
    %s117 = scalar_select %p114, %s115, %s116
    %p120 = pneg %p114
    %p121 = scmp.eq.s32.totalorder %s11, 1
    %p122 = por %p120, %p121
    %p123 = scmp.ne.s32.totalorder %s115, %s118
    %p124 = scmp.eq.s32.totalorder %s11, 0
    %p125 = por %p123, %p124
    %p126 = scmp.ne.s32.totalorder %s115, %s118
    %p127 = scmp.eq.s32.totalorder %s16, 1
    %p128 = por %p126, %p127
    %p129 = scmp.ne.s32.totalorder %s118, %s119
    %p130 = scmp.eq.s32.totalorder %s16, 0
    %p131 = por %p129, %p130
    %p132 = scmp.ne.s32.totalorder %s118, %s119
    %p133 = scmp.eq.s32.totalorder %s17, 1
    %p134 = por %p132, %p133
    %p136 = scmp.ne.s32.totalorder %s119, %s135
    %p137 = scmp.eq.s32.totalorder %s17, 0
    %p138 = por %p136, %p137
    %s139 = ssub.s32 %s18, %s30
    %s140 = ssub.s32 %s19, %s26
    %s141 = sor.u32 %s139, %s140
    %p142 = scmp.eq.s32.totalorder %s141, 0
    %s144 = sadd.s32 %s143, 1
    %s145 = scalar_select %p142, %s143, %s144
    %p148 = pneg %p142
    %p149 = scmp.eq.s32.totalorder %s11, 1
    %p150 = por %p148, %p149
    %p151 = scmp.ne.s32.totalorder %s143, %s146
    %p152 = scmp.eq.s32.totalorder %s11, 0
    %p153 = por %p151, %p152
    %p154 = scmp.ne.s32.totalorder %s143, %s146
    %p155 = scmp.eq.s32.totalorder %s16, 1
    %p156 = por %p154, %p155
    %p157 = scmp.ne.s32.totalorder %s146, %s147
    %p158 = scmp.eq.s32.totalorder %s16, 0
    %p159 = por %p157, %p158
    %p160 = scmp.ne.s32.totalorder %s146, %s147
    %p161 = scmp.eq.s32.totalorder %s17, 1
    %p162 = por %p160, %p161
    %p164 = scmp.ne.s32.totalorder %s147, %s163
    %p165 = scmp.eq.s32.totalorder %s17, 0
    %p166 = por %p164, %p165
    %p167 = scmp.le.s32.totalorder 1, %s11
    %p168 = scmp.lt.s32.totalorder %s11, 3
    %p169 = pnand %p167, %p168
    %p170 = pneg %p169
    // Predicated region
    $region9: #{tpu_custom_call.1} parent=5 // pred_check
      _
    $region10: #{tpu_custom_call.1} parent=5 // pred_check_branch
      %172 = sbr.rel (%p169) target = $region12
    $region11: #{tpu_custom_call.1} parent=5 // pred_region
      %s173 = ssub.s32 %s11, 1
    $region12: #{tpu_custom_call.1} parent=5 // pred_fallthru
      _
    %p174 = scmp.lt.s32.totalorder %s11, 2
    // Predicated region
    $region13: #{tpu_custom_call.1} parent=5 // pred_check
      %p175 = pneg %p174
    $region14: #{tpu_custom_call.1} parent=5 // pred_check_branch
      %177 = sbr.rel (%p175) target = $region16
    $region15: #{tpu_custom_call.1} parent=5 // pred_region
      // Predicated region
      $region17: #{tpu_custom_call.1} parent=15 // pred_check
        %p178 = pneg %p45
      $region18: #{tpu_custom_call.1} parent=15 // pred_check_branch
        %180 = sbr.rel (%p178) target = $region20
      $region19: #{tpu_custom_call.1} parent=15 // pred_region
        %s181 = smul.u32 8, %s19
        %p182 = scmp.lt.s32.totalorder %s18, 1
        %s183 = scalar_select %p182, %s18, 1
        %p184 = scmp.lt.s32.totalorder %s181, 7
        %s185 = scalar_select %p184, %s181, 7
        %s186 = smul.addr %s183, 8
        %s187 = sadd.s32 %s185, %s186
        %s188 = smul.addr %s187, 8
        %s189 = scalar_lea.vmem %s0, %s188
        %s190 = smul.u32 8, %s19
      $region20: #{tpu_custom_call.1} parent=15 // pred_fallthru
        _
      // Predicated region
      $region21: #{tpu_custom_call.1} parent=15 // pred_check
        %p191 = pneg %p71
      $region22: #{tpu_custom_call.1} parent=15 // pred_check_branch
        %193 = sbr.rel (%p191) target = $region24
      $region23: #{tpu_custom_call.1} parent=15 // pred_region
        %p194 = scmp.lt.s32.totalorder %s18, 1
        %s195 = scalar_select %p194, %s18, 1
        %s196 = smul.addr %s195, 8
        %s197 = smul.addr %s196, 8
        %s198 = scalar_lea.vmem %s1, %s197
      $region24: #{tpu_custom_call.1} parent=15 // pred_fallthru
        _
      // Predicated region
      $region25: #{tpu_custom_call.1} parent=15 // pred_check
        %p199 = pneg %p97
      $region26: #{tpu_custom_call.1} parent=15 // pred_check_branch
        %201 = sbr.rel (%p199) target = $region28
      $region27: #{tpu_custom_call.1} parent=15 // pred_region
        %p202 = scmp.lt.s32.totalorder %s18, 1
        %s203 = scalar_select %p202, %s18, 1
        %s204 = scalar_lea.vmem %s2, %s203
      $region28: #{tpu_custom_call.1} parent=15 // pred_fallthru
        _
    $region16: #{tpu_custom_call.1} parent=5 // pred_fallthru
      _
    %p205 = scmp.le.s32.totalorder 1, %s11
    %p206 = scmp.lt.s32.totalorder %s11, 3
    %p207 = pnand %p205, %p206
    %p208 = pneg %p207
    // Predicated region
    $region29: #{tpu_custom_call.1} parent=5 // pred_check
      _
    $region30: #{tpu_custom_call.1} parent=5 // pred_check_branch
      %210 = sbr.rel (%p207) target = $region32
    $region31: #{tpu_custom_call.1} parent=5 // pred_region
      %s211 = ssub.s32 %s11, 1
      %s212 = smul.u32 8, %s21
      %p213 = scmp.lt.s32.totalorder %s20, 1
      %s214 = scalar_select %p213, %s20, 1
      %p215 = scmp.lt.s32.totalorder %s212, 7
      %s216 = scalar_select %p215, %s212, 7
      %s217 = smul.addr %s214, 8
      %s218 = sadd.s32 %s216, %s217
      %s219 = smul.addr %s218, 8
      %s220 = scalar_lea.vmem %s0, %s219
      %p221 = pneg %p51
      %p222 = pneg %p48
      %p223 = scmp.lt.s32.totalorder %s20, 1
      %s224 = scalar_select %p223, %s20, 1
      %s225 = smul.addr %s224, 8
      %s226 = smul.addr %s225, 8
      %s227 = scalar_lea.vmem %s1, %s226
      %p228 = pneg %p77
      %p229 = pneg %p74
      %p230 = scmp.lt.s32.totalorder %s20, 1
      %s231 = scalar_select %p230, %s20, 1
      %s232 = scalar_lea.vmem %s2, %s231
      %p233 = pneg %p103
      %p234 = pneg %p100
      %p235 = pneg %p131
      %p236 = pneg %p128
      %s237 = smul.u32 8, %s21
      %p238 = scmp.lt.s32.totalorder %s20, 1
      %s239 = scalar_select %p238, %s20, 1
      %p240 = scmp.lt.s32.totalorder %s237, 7
      %s241 = scalar_select %p240, %s237, 7
      %s242 = smul.addr %s239, 8
      %s243 = sadd.s32 %s241, %s242
      %s244 = smul.addr %s243, 8
      %s245 = scalar_lea.vmem %s3, %s244
      %p246 = pneg %p159
      %p247 = pneg %p156
      %s248 = smul.u32 8, %s21
      %p249 = scmp.lt.s32.totalorder %s20, 1
      %s250 = scalar_select %p249, %s20, 1
      %p251 = scmp.lt.s32.totalorder %s248, 7
      %s252 = scalar_select %p251, %s248, 7
      %s253 = smul.addr %s250, 8
      %s254 = sadd.s32 %s252, %s253
      %s255 = smul.addr %s254, 8
      %s256 = scalar_lea.vmem %s4, %s255
      %s257 = smul.u32 8, %s21
      %p258 = scmp.lt.s32.totalorder %s20, 1
      %s259 = scalar_select %p258, %s20, 1
      %p260 = scmp.lt.s32.totalorder %s257, 7
      %s261 = scalar_select %p260, %s257, 7
      %s262 = smul.addr %s259, 8
      %s263 = sadd.s32 %s261, %s262
      %s264 = smul.addr %s263, 8
      %s265 = scalar_lea.vmem %s0, %s264
      %s266 = smul.u32 8, %s21
      %p267 = scmp.lt.s32.totalorder %s20, 1
      %s268 = scalar_select %p267, %s20, 1
      %s269 = smul.addr %s268, 8
      %s270 = smul.addr %s269, 8
      %s271 = scalar_lea.vmem %s1, %s270
      %p272 = scmp.lt.s32.totalorder %s20, 1
      %s273 = scalar_select %p272, %s20, 1
      %s274 = scalar_lea.vmem %s2, %s273
      %s275 = smul.u32 8, %s21
      %p276 = scmp.lt.s32.totalorder %s20, 1
      %s277 = scalar_select %p276, %s20, 1
      %p278 = scmp.lt.s32.totalorder %s275, 7
      %s279 = scalar_select %p278, %s275, 7
      %s280 = smul.addr %s277, 8
      %s281 = sadd.s32 %s279, %s280
      %s282 = smul.addr %s281, 8
      %s283 = scalar_lea.vmem %s3, %s282
      %s284 = smul.u32 8, %s21
      %s285 = smul.u32 8, %s21
      %p286 = scmp.lt.s32.totalorder %s20, 1
      %s287 = scalar_select %p286, %s20, 1
      %p288 = scmp.lt.s32.totalorder %s285, 7
      %s289 = scalar_select %p288, %s285, 7
      %s290 = smul.addr %s287, 8
      %s291 = sadd.s32 %s289, %s290
      %s292 = smul.addr %s291, 8
      %s293 = scalar_lea.vmem %s4, %s292
      %s294 = smul.u32 8, %s21
      %v296 = vld [vmem:[%s265] sm:$0xff]
      %v297 = vld [vmem:[%s265 + $0x8] sm:$0xff]
      %v298 = vld [vmem:[%s265 + $0x10] sm:$0xff]
      %v299 = vld [vmem:[%s265 + $0x18] sm:$0xff]
      %v300 = vld [vmem:[%s265 + $0x20] sm:$0xff]
      %v301 = vld [vmem:[%s265 + $0x28] sm:$0xff]
      %v302 = vld [vmem:[%s265 + $0x30] sm:$0xff]
      %v303 = vld [vmem:[%s265 + $0x38] sm:$0xff]
      %v304 = vld [vmem:[%s271] sm:$0xff]
      %v305 = vld [vmem:[%s271 + $0x8] sm:$0xff]
      %v306 = vld [vmem:[%s271 + $0x10] sm:$0xff]
      %v307 = vld [vmem:[%s271 + $0x18] sm:$0xff]
      %v308 = vld [vmem:[%s271 + $0x20] sm:$0xff]
      %v309 = vld [vmem:[%s271 + $0x28] sm:$0xff]
      %v310 = vld [vmem:[%s271 + $0x30] sm:$0xff]
      %v311 = vld [vmem:[%s271 + $0x38] sm:$0xff]
      %v312 = vld [vmem:[%s274] sm:$0x1]
      %v313 = vmul.f32 %v296, %v296
      %v314 = vmul.f32 %v297, %v297
      %v315 = vmul.f32 %v298, %v298
      %v316 = vmul.f32 %v299, %v299
      %v317 = vmul.f32 %v300, %v300
      %v318 = vmul.f32 %v301, %v301
      %v319 = vmul.f32 %v302, %v302
      %v320 = vmul.f32 %v303, %v303
      %vm321 = vcmask 23552
      %v322 = vsel %vm321, %v313, 0.0
      %323 = vadd.xlane.f32.xlu0 %v322
      %v324 = vpop.xlane.xlu0 %323
      %v325 = vsel %vm321, %v314, 0.0
      %326 = vadd.xlane.f32.xlu0 %v325
      %v327 = vpop.xlane.xlu0 %326
      %v328 = vsel %vm321, %v315, 0.0
      %329 = vadd.xlane.f32.xlu0 %v328
      %v330 = vpop.xlane.xlu0 %329
      %v331 = vsel %vm321, %v316, 0.0
      %332 = vadd.xlane.f32.xlu0 %v331
      %v333 = vpop.xlane.xlu0 %332
      %v334 = vsel %vm321, %v317, 0.0
      %335 = vadd.xlane.f32.xlu0 %v334
      %v336 = vpop.xlane.xlu0 %335
      %v337 = vsel %vm321, %v318, 0.0
      %338 = vadd.xlane.f32.xlu0 %v337
      %v339 = vpop.xlane.xlu0 %338
      %v340 = vsel %vm321, %v319, 0.0
      %341 = vadd.xlane.f32.xlu0 %v340
      %v342 = vpop.xlane.xlu0 %341
      %v343 = vsel %vm321, %v320, 0.0
      %344 = vadd.xlane.f32.xlu0 %v343
      %v345 = vpop.xlane.xlu0 %344
      %v347 = vsel %vm321, %v296, 0
      %v350 = vsel %vm321, %v297, 0
      %v353 = vsel %vm321, %v298, 0
      %v356 = vsel %vm321, %v299, 0
      %v359 = vsel %vm321, %v300, 0
      %v362 = vsel %vm321, %v301, 0
      %v365 = vsel %vm321, %v302, 0
      %v368 = vsel %vm321, %v303, 0
      %v371 = vsel %vm321, %v304, 0
      %v374 = vsel %vm321, %v305, 0
      %v377 = vsel %vm321, %v306, 0
      %v380 = vsel %vm321, %v307, 0
      %v383 = vsel %vm321, %v308, 0
      %v386 = vsel %vm321, %v309, 0
      %v389 = vsel %vm321, %v310, 0
      %v392 = vsel %vm321, %v311, 0
      %394 = vmatprep.subr.mxu0 0.0
      %395 = vmatpush1.xpose.msra.mxu0 %v371
      %396 = vmatprep.subr.mxu0 0.0
      %397 = vmatpush1.xpose.msra.mxu0 %v374
      %398 = vmatprep.subr.mxu0 0.0
      %399 = vmatpush1.xpose.msra.mxu0 %v377
      %400 = vmatprep.subr.mxu0 0.0
      %401 = vmatpush1.xpose.msra.mxu0 %v380
      %402 = vmatprep.subr.mxu0 0.0
      %403 = vmatpush1.xpose.msra.mxu0 %v383
      %404 = vmatprep.subr.mxu0 0.0
      %405 = vmatpush1.xpose.msra.mxu0 %v386
      %406 = vmatprep.subr.mxu0 0.0
      %407 = vmatpush1.xpose.msra.mxu0 %v389
      %408 = vmatprep.subr.mxu0 0.0
      %409 = vmatpush1.xpose.msra.mxu0 %v392
      %410 = vmatprep.subr.mxu0 0.0
      %411 = vmatpush1.xpose.msra.mxu0 0.0
      %412 = vmatprep.subr.mxu0 0.0
      %413 = vmatpush1.xpose.msra.mxu0 0.0
      %414 = vmatprep.subr.mxu0 0.0
      %415 = vmatpush1.xpose.msra.mxu0 0.0
      %416 = vmatprep.subr.mxu0 0.0
      %417 = vmatpush1.xpose.msra.mxu0 0.0
      %418 = vmatprep.subr.mxu0 0.0
      %419 = vmatpush1.xpose.msra.mxu0 0.0
      %420 = vmatprep.subr.mxu0 0.0
      %421 = vmatpush1.xpose.msra.mxu0 0.0
      %422 = vmatprep.subr.mxu0 0.0
      %423 = vmatpush1.xpose.msra.mxu0 0.0
      %424 = vmatprep.subr.mxu0 0.0
      %425 = vmatpush1.xpose.msra.mxu0 0.0
      %426 = vmatprep.subr.mxu0 0.0
      %427 = vmatpush1.xpose.msra.mxu0 0.0
      %428 = vmatprep.subr.mxu0 0.0
      %429 = vmatpush1.xpose.msra.mxu0 0.0
      %430 = vmatprep.subr.mxu0 0.0
      %431 = vmatpush1.xpose.msra.mxu0 0.0
      %432 = vmatprep.subr.mxu0 0.0
      %433 = vmatpush1.xpose.msra.mxu0 0.0
      %434 = vmatprep.subr.mxu0 0.0
      %435 = vmatpush1.xpose.msra.mxu0 0.0
      %436 = vmatprep.subr.mxu0 0.0
      %437 = vmatpush1.xpose.msra.mxu0 0.0
      %438 = vmatprep.subr.mxu0 0.0
      %439 = vmatpush1.xpose.msra.mxu0 0.0
      %440 = vmatprep.subr.mxu0 0.0
      %441 = vmatpush1.xpose.msra.mxu0 0.0
      %442 = vmatprep.subr.mxu0 0.0
      %443 = vmatpush1.xpose.msra.mxu0 0.0
      %444 = vmatprep.subr.mxu0 0.0
      %445 = vmatpush1.xpose.msra.mxu0 0.0
      %446 = vmatprep.subr.mxu0 0.0
      %447 = vmatpush1.xpose.msra.mxu0 0.0
      %448 = vmatprep.subr.mxu0 0.0
      %449 = vmatpush1.xpose.msra.mxu0 0.0
      %450 = vmatprep.subr.mxu0 0.0
      %451 = vmatpush1.xpose.msra.mxu0 0.0
      %452 = vmatprep.subr.mxu0 0.0
      %453 = vmatpush1.xpose.msra.mxu0 0.0
      %454 = vmatprep.subr.mxu0 0.0
      %455 = vmatpush1.xpose.msra.mxu0 0.0
      %456 = vmatprep.subr.mxu0 0.0
      %457 = vmatpush1.xpose.msra.mxu0 0.0
      %458 = vmatprep.mubr.f32.mxu0 0.0
      %459 = vmatmul.mubr.f32.gmra.mrb[0].mxu0 %v347
      %v460 = vpop.f32.mrb[0].mxu0
      %v461 = vadd.f32 0.0, %v460
      %v462 = vpop.f32.mrb[0].mxu0
      %463 = vmatprep.mubr.f32.mxu0 0.0
      %464 = vmatmul.mubr.f32.gmra.mrb[0].mxu0 %v350
      %v465 = vpop.f32.mrb[0].mxu0
      %v466 = vadd.f32 0.0, %v465
      %v467 = vpop.f32.mrb[0].mxu0
      %468 = vmatprep.mubr.f32.mxu0 0.0
      %469 = vmatmul.mubr.f32.gmra.mrb[0].mxu0 %v353
      %v470 = vpop.f32.mrb[0].mxu0
      %v471 = vadd.f32 0.0, %v470
      %v472 = vpop.f32.mrb[0].mxu0
      %473 = vmatprep.mubr.f32.mxu0 0.0
      %474 = vmatmul.mubr.f32.gmra.mrb[0].mxu0 %v356
      %v475 = vpop.f32.mrb[0].mxu0
      %v476 = vadd.f32 0.0, %v475
      %v477 = vpop.f32.mrb[0].mxu0
      %478 = vmatprep.mubr.f32.mxu0 0.0
      %479 = vmatmul.mubr.f32.gmra.mrb[0].mxu0 %v359
      %v480 = vpop.f32.mrb[0].mxu0
      %v481 = vadd.f32 0.0, %v480
      %v482 = vpop.f32.mrb[0].mxu0
      %483 = vmatprep.mubr.f32.mxu0 0.0
      %484 = vmatmul.mubr.f32.gmra.mrb[0].mxu0 %v362
      %v485 = vpop.f32.mrb[0].mxu0
      %v486 = vadd.f32 0.0, %v485
      %v487 = vpop.f32.mrb[0].mxu0
      %488 = vmatprep.mubr.f32.mxu0 0.0
      %489 = vmatmul.mubr.f32.gmra.mrb[0].mxu0 %v365
      %v490 = vpop.f32.mrb[0].mxu0
      %v491 = vadd.f32 0.0, %v490
      %v492 = vpop.f32.mrb[0].mxu0
      %493 = vmatprep.mubr.f32.mxu0 0.0
      %494 = vmatmul.mubr.f32.gmra.mrb[0].mxu0 %v368
      %v495 = vpop.f32.mrb[0].mxu0
      %v496 = vadd.f32 0.0, %v495
      %v497 = vpop.f32.mrb[0].mxu0
      %498 = vdwg.mxu0
      %v500 = vlaneseq
      %v501 = vshrl.u32 %v500, 7
      %v502 = vsub.s32 0, %v501
      %v503 = vrot.slane %v312, %v502
      %v505 = vadd.f32 %v324, %v503
      %v506 = vadd.f32 %v327, %v503
      %v507 = vadd.f32 %v330, %v503
      %v508 = vadd.f32 %v333, %v503
      %v509 = vadd.f32 %v336, %v503
      %v510 = vadd.f32 %v339, %v503
      %v511 = vadd.f32 %v342, %v503
      %v512 = vadd.f32 %v345, %v503
      %v513 = vmul.f32 %v461, 2.0
      %v514 = vmul.f32 %v466, 2.0
      %v515 = vmul.f32 %v471, 2.0
      %v516 = vmul.f32 %v476, 2.0
      %v517 = vmul.f32 %v481, 2.0
      %v518 = vmul.f32 %v486, 2.0
      %v519 = vmul.f32 %v491, 2.0
      %v520 = vmul.f32 %v496, 2.0
      %v521 = vsub.f32 %v505, %v513
      %v522 = vsub.f32 %v506, %v514
      %v523 = vsub.f32 %v507, %v515
      %v524 = vsub.f32 %v508, %v516
      %v525 = vsub.f32 %v509, %v517
      %v526 = vsub.f32 %v510, %v518
      %v527 = vsub.f32 %v511, %v519
      %v528 = vsub.f32 %v512, %v520
      %v529 = vmax.f32 %v521, 0.0
      %v530 = vmax.f32 %v522, 0.0
      %v531 = vmax.f32 %v523, 0.0
      %v532 = vmax.f32 %v524, 0.0
      %v533 = vmax.f32 %v525, 0.0
      %v534 = vmax.f32 %v526, 0.0
      %v535 = vmax.f32 %v527, 0.0
      %v536 = vmax.f32 %v528, 0.0
      %v537 = vlaneseq
      %v538 = vand.u32 %v537, 127
      %vm539 = vcmask 523264
      %v540 = vsel %vm539, %v529, inf
      %541 = vmin.xlane.f32.xlu0 %v540
      %v542 = vpop.xlane.xlu0 %541
      %v543 = vsel %vm539, %v530, inf
      %544 = vmin.xlane.f32.xlu0 %v543
      %v545 = vpop.xlane.xlu0 %544
      %v546 = vsel %vm539, %v531, inf
      %547 = vmin.xlane.f32.xlu0 %v546
      %v548 = vpop.xlane.xlu0 %547
      %v549 = vsel %vm539, %v532, inf
      %550 = vmin.xlane.f32.xlu0 %v549
      %v551 = vpop.xlane.xlu0 %550
      %v552 = vsel %vm539, %v533, inf
      %553 = vmin.xlane.f32.xlu0 %v552
      %v554 = vpop.xlane.xlu0 %553
      %v555 = vsel %vm539, %v534, inf
      %556 = vmin.xlane.f32.xlu0 %v555
      %v557 = vpop.xlane.xlu0 %556
      %v558 = vsel %vm539, %v535, inf
      %559 = vmin.xlane.f32.xlu0 %v558
      %v560 = vpop.xlane.xlu0 %559
      %v561 = vsel %vm539, %v536, inf
      %562 = vmin.xlane.f32.xlu0 %v561
      %v563 = vpop.xlane.xlu0 %562
      %vm564 = vcmp.eq.f32.partialorder %v529, %v542
      %vm565 = vcmp.eq.f32.partialorder %v530, %v545
      %vm566 = vcmp.eq.f32.partialorder %v531, %v548
      %vm567 = vcmp.eq.f32.partialorder %v532, %v551
      %vm568 = vcmp.eq.f32.partialorder %v533, %v554
      %vm569 = vcmp.eq.f32.partialorder %v534, %v557
      %vm570 = vcmp.eq.f32.partialorder %v535, %v560
      %vm571 = vcmp.eq.f32.partialorder %v536, %v563
      %v572 = vsel %vm564, %v538, 64
      %v573 = vsel %vm565, %v538, 64
      %v574 = vsel %vm566, %v538, 64
      %v575 = vsel %vm567, %v538, 64
      %v576 = vsel %vm568, %v538, 64
      %v577 = vsel %vm569, %v538, 64
      %v578 = vsel %vm570, %v538, 64
      %v579 = vsel %vm571, %v538, 64
      %v580 = vsel %vm539, %v572, 2147483647
      %v581 = vand.u32 %v580, 65535
      %v582 = vshra.s32 %v580, 16
      %v583 = vcvt.s32.f32 %v581
      %v584 = vcvt.s32.f32 %v582
      %585 = vmin.xlane.f32.xlu0 %v584
      %v586 = vpop.xlane.xlu0 %585
      %vm587 = vcmp.eq.f32.partialorder %v584, %v586
      %v588 = vsel %vm587, %v583, inf
      %589 = vmin.xlane.f32.xlu0 %v588
      %v590 = vpop.xlane.xlu0 %589
      %v591 = vcvt.f32.s32 %v590
      %v592 = vcvt.f32.s32 %v586
      %v593 = vshll.u32 %v592, 16
      %v594 = vadd.s32 %v593, %v591
      %v595 = vsel %vm539, %v573, 2147483647
      %v596 = vand.u32 %v595, 65535
      %v597 = vshra.s32 %v595, 16
      %v598 = vcvt.s32.f32 %v596
      %v599 = vcvt.s32.f32 %v597
      %600 = vmin.xlane.f32.xlu0 %v599
      %v601 = vpop.xlane.xlu0 %600
      %vm602 = vcmp.eq.f32.partialorder %v599, %v601
      %v603 = vsel %vm602, %v598, inf
      %604 = vmin.xlane.f32.xlu0 %v603
      %v605 = vpop.xlane.xlu0 %604
      %v606 = vcvt.f32.s32 %v605
      %v607 = vcvt.f32.s32 %v601
      %v608 = vshll.u32 %v607, 16
      %v609 = vadd.s32 %v608, %v606
      %v610 = vsel %vm539, %v574, 2147483647
      %v611 = vand.u32 %v610, 65535
      %v612 = vshra.s32 %v610, 16
      %v613 = vcvt.s32.f32 %v611
      %v614 = vcvt.s32.f32 %v612
      %615 = vmin.xlane.f32.xlu0 %v614
      %v616 = vpop.xlane.xlu0 %615
      %vm617 = vcmp.eq.f32.partialorder %v614, %v616
      %v618 = vsel %vm617, %v613, inf
      %619 = vmin.xlane.f32.xlu0 %v618
      %v620 = vpop.xlane.xlu0 %619
      %v621 = vcvt.f32.s32 %v620
      %v622 = vcvt.f32.s32 %v616
      %v623 = vshll.u32 %v622, 16
      %v624 = vadd.s32 %v623, %v621
      %v625 = vsel %vm539, %v575, 2147483647
      %v626 = vand.u32 %v625, 65535
      %v627 = vshra.s32 %v625, 16
      %v628 = vcvt.s32.f32 %v626
      %v629 = vcvt.s32.f32 %v627
      %630 = vmin.xlane.f32.xlu0 %v629
      %v631 = vpop.xlane.xlu0 %630
      %vm632 = vcmp.eq.f32.partialorder %v629, %v631
      %v633 = vsel %vm632, %v628, inf
      %634 = vmin.xlane.f32.xlu0 %v633
      %v635 = vpop.xlane.xlu0 %634
      %v636 = vcvt.f32.s32 %v635
      %v637 = vcvt.f32.s32 %v631
      %v638 = vshll.u32 %v637, 16
      %v639 = vadd.s32 %v638, %v636
      %v640 = vsel %vm539, %v576, 2147483647
      %v641 = vand.u32 %v640, 65535
      %v642 = vshra.s32 %v640, 16
      %v643 = vcvt.s32.f32 %v641
      %v644 = vcvt.s32.f32 %v642
      %645 = vmin.xlane.f32.xlu0 %v644
      %v646 = vpop.xlane.xlu0 %645
      %vm647 = vcmp.eq.f32.partialorder %v644, %v646
      %v648 = vsel %vm647, %v643, inf
      %649 = vmin.xlane.f32.xlu0 %v648
      %v650 = vpop.xlane.xlu0 %649
      %v651 = vcvt.f32.s32 %v650
      %v652 = vcvt.f32.s32 %v646
      %v653 = vshll.u32 %v652, 16
      %v654 = vadd.s32 %v653, %v651
      %v655 = vsel %vm539, %v577, 2147483647
      %v656 = vand.u32 %v655, 65535
      %v657 = vshra.s32 %v655, 16
      %v658 = vcvt.s32.f32 %v656
      %v659 = vcvt.s32.f32 %v657
      %660 = vmin.xlane.f32.xlu0 %v659
      %v661 = vpop.xlane.xlu0 %660
      %vm662 = vcmp.eq.f32.partialorder %v659, %v661
      %v663 = vsel %vm662, %v658, inf
      %664 = vmin.xlane.f32.xlu0 %v663
      %v665 = vpop.xlane.xlu0 %664
      %v666 = vcvt.f32.s32 %v665
      %v667 = vcvt.f32.s32 %v661
      %v668 = vshll.u32 %v667, 16
      %v669 = vadd.s32 %v668, %v666
      %v670 = vsel %vm539, %v578, 2147483647
      %v671 = vand.u32 %v670, 65535
      %v672 = vshra.s32 %v670, 16
      %v673 = vcvt.s32.f32 %v671
      %v674 = vcvt.s32.f32 %v672
      %675 = vmin.xlane.f32.xlu0 %v674
      %v676 = vpop.xlane.xlu0 %675
      %vm677 = vcmp.eq.f32.partialorder %v674, %v676
      %v678 = vsel %vm677, %v673, inf
      %679 = vmin.xlane.f32.xlu0 %v678
      %v680 = vpop.xlane.xlu0 %679
      %v681 = vcvt.f32.s32 %v680
      %v682 = vcvt.f32.s32 %v676
      %v683 = vshll.u32 %v682, 16
      %v684 = vadd.s32 %v683, %v681
      %v685 = vsel %vm539, %v579, 2147483647
      %v686 = vand.u32 %v685, 65535
      %v687 = vshra.s32 %v685, 16
      %v688 = vcvt.s32.f32 %v686
      %v689 = vcvt.s32.f32 %v687
      %690 = vmin.xlane.f32.xlu0 %v689
      %v691 = vpop.xlane.xlu0 %690
      %vm692 = vcmp.eq.f32.partialorder %v689, %v691
      %v693 = vsel %vm692, %v688, inf
      %694 = vmin.xlane.f32.xlu0 %v693
      %v695 = vpop.xlane.xlu0 %694
      %v696 = vcvt.f32.s32 %v695
      %v697 = vcvt.f32.s32 %v691
      %v698 = vshll.u32 %v697, 16
      %v699 = vadd.s32 %v698, %v696
      %vm700 = vcmp.eq.s32.totalorder %v538, %v594
      %vm701 = vcmp.eq.s32.totalorder %v538, %v609
      %vm702 = vcmp.eq.s32.totalorder %v538, %v624
      %vm703 = vcmp.eq.s32.totalorder %v538, %v639
      %vm704 = vcmp.eq.s32.totalorder %v538, %v654
      %vm705 = vcmp.eq.s32.totalorder %v538, %v669
      %vm706 = vcmp.eq.s32.totalorder %v538, %v684
      %vm707 = vcmp.eq.s32.totalorder %v538, %v699
      %v708 = vsel %vm700, 1.0, 0.0
      %v709 = vsel %vm701, 1.0, 0.0
      %v710 = vsel %vm702, 1.0, 0.0
      %v711 = vsel %vm703, 1.0, 0.0
      %v712 = vsel %vm704, 1.0, 0.0
      %v713 = vsel %vm705, 1.0, 0.0
      %v714 = vsel %vm706, 1.0, 0.0
      %v715 = vsel %vm707, 1.0, 0.0
      %v716 = vsel %vm700, 3e+38, %v529
      %v717 = vsel %vm701, 3e+38, %v530
      %v718 = vsel %vm702, 3e+38, %v531
      %v719 = vsel %vm703, 3e+38, %v532
      %v720 = vsel %vm704, 3e+38, %v533
      %v721 = vsel %vm705, 3e+38, %v534
      %v722 = vsel %vm706, 3e+38, %v535
      %v723 = vsel %vm707, 3e+38, %v536
      %v724 = vrsqrt.pop %v542
      %v725 = vmul.f32 %v542, %v724
      %vm726 = vcmp.eq.f32.partialorder %v542, inf
      %v727 = vsel %vm726, %v542, %v725
      %vm728 = vcmp.eq.f32.partialorder %v542, 0.0
      %v729 = vand.u32 %v542, 2147483648
      %v730 = vsel %vm728, %v729, %v727
      %v731 = vrsqrt.pop %v545
      %v732 = vmul.f32 %v545, %v731
      %vm733 = vcmp.eq.f32.partialorder %v545, inf
      %v734 = vsel %vm733, %v545, %v732
      %vm735 = vcmp.eq.f32.partialorder %v545, 0.0
      %v736 = vand.u32 %v545, 2147483648
      %v737 = vsel %vm735, %v736, %v734
      %v738 = vrsqrt.pop %v548
      %v739 = vmul.f32 %v548, %v738
      %vm740 = vcmp.eq.f32.partialorder %v548, inf
      %v741 = vsel %vm740, %v548, %v739
      %vm742 = vcmp.eq.f32.partialorder %v548, 0.0
      %v743 = vand.u32 %v548, 2147483648
      %v744 = vsel %vm742, %v743, %v741
      %v745 = vrsqrt.pop %v551
      %v746 = vmul.f32 %v551, %v745
      %vm747 = vcmp.eq.f32.partialorder %v551, inf
      %v748 = vsel %vm747, %v551, %v746
      %vm749 = vcmp.eq.f32.partialorder %v551, 0.0
      %v750 = vand.u32 %v551, 2147483648
      %v751 = vsel %vm749, %v750, %v748
      %v752 = vrsqrt.pop %v554
      %v753 = vmul.f32 %v554, %v752
      %vm754 = vcmp.eq.f32.partialorder %v554, inf
      %v755 = vsel %vm754, %v554, %v753
      %vm756 = vcmp.eq.f32.partialorder %v554, 0.0
      %v757 = vand.u32 %v554, 2147483648
      %v758 = vsel %vm756, %v757, %v755
      %v759 = vrsqrt.pop %v557
      %v760 = vmul.f32 %v557, %v759
      %vm761 = vcmp.eq.f32.partialorder %v557, inf
      %v762 = vsel %vm761, %v557, %v760
      %vm763 = vcmp.eq.f32.partialorder %v557, 0.0
      %v764 = vand.u32 %v557, 2147483648
      %v765 = vsel %vm763, %v764, %v762
      %v766 = vrsqrt.pop %v560
      %v767 = vmul.f32 %v560, %v766
      %vm768 = vcmp.eq.f32.partialorder %v560, inf
      %v769 = vsel %vm768, %v560, %v767
      %vm770 = vcmp.eq.f32.partialorder %v560, 0.0
      %v771 = vand.u32 %v560, 2147483648
      %v772 = vsel %vm770, %v771, %v769
      %v773 = vrsqrt.pop %v563
      %v774 = vmul.f32 %v563, %v773
      %vm775 = vcmp.eq.f32.partialorder %v563, inf
      %v776 = vsel %vm775, %v563, %v774
      %vm777 = vcmp.eq.f32.partialorder %v563, 0.0
      %v778 = vand.u32 %v563, 2147483648
      %v779 = vsel %vm777, %v778, %v776
      %v780 = vadd.f32 %v730, 0.0
      %v781 = vadd.f32 %v737, 0.0
      %v782 = vadd.f32 %v744, 0.0
      %v783 = vadd.f32 %v751, 0.0
      %v784 = vadd.f32 %v758, 0.0
      %v785 = vadd.f32 %v765, 0.0
      %v786 = vadd.f32 %v772, 0.0
      %v787 = vadd.f32 %v779, 0.0
      %v788 = vadd.f32 %v542, 0.0
      %v789 = vadd.f32 %v545, 0.0
      %v790 = vadd.f32 %v548, 0.0
      %v791 = vadd.f32 %v551, 0.0
      %v792 = vadd.f32 %v554, 0.0
      %v793 = vadd.f32 %v557, 0.0
      %v794 = vadd.f32 %v560, 0.0
      %v795 = vadd.f32 %v563, 0.0
      %v796 = vsel %vm539, %v716, inf
      %797 = vmin.xlane.f32.xlu0 %v796
      %v798 = vpop.xlane.xlu0 %797
      %v799 = vsel %vm539, %v717, inf
      %800 = vmin.xlane.f32.xlu0 %v799
      %v801 = vpop.xlane.xlu0 %800
      %v802 = vsel %vm539, %v718, inf
      %803 = vmin.xlane.f32.xlu0 %v802
      %v804 = vpop.xlane.xlu0 %803
      %v805 = vsel %vm539, %v719, inf
      %806 = vmin.xlane.f32.xlu0 %v805
      %v807 = vpop.xlane.xlu0 %806
      %v808 = vsel %vm539, %v720, inf
      %809 = vmin.xlane.f32.xlu0 %v808
      %v810 = vpop.xlane.xlu0 %809
      %v811 = vsel %vm539, %v721, inf
      %812 = vmin.xlane.f32.xlu0 %v811
      %v813 = vpop.xlane.xlu0 %812
      %v814 = vsel %vm539, %v722, inf
      %815 = vmin.xlane.f32.xlu0 %v814
      %v816 = vpop.xlane.xlu0 %815
      %v817 = vsel %vm539, %v723, inf
      %818 = vmin.xlane.f32.xlu0 %v817
      %v819 = vpop.xlane.xlu0 %818
      %vm820 = vcmp.eq.f32.partialorder %v716, %v798
      %vm821 = vcmp.eq.f32.partialorder %v717, %v801
      %vm822 = vcmp.eq.f32.partialorder %v718, %v804
      %vm823 = vcmp.eq.f32.partialorder %v719, %v807
      %vm824 = vcmp.eq.f32.partialorder %v720, %v810
      %vm825 = vcmp.eq.f32.partialorder %v721, %v813
      %vm826 = vcmp.eq.f32.partialorder %v722, %v816
      %vm827 = vcmp.eq.f32.partialorder %v723, %v819
      %v828 = vsel %vm820, %v538, 64
      %v829 = vsel %vm821, %v538, 64
      %v830 = vsel %vm822, %v538, 64
      %v831 = vsel %vm823, %v538, 64
      %v832 = vsel %vm824, %v538, 64
      %v833 = vsel %vm825, %v538, 64
      %v834 = vsel %vm826, %v538, 64
      %v835 = vsel %vm827, %v538, 64
      %v836 = vsel %vm539, %v828, 2147483647
      %v837 = vand.u32 %v836, 65535
      %v838 = vshra.s32 %v836, 16
      %v839 = vcvt.s32.f32 %v837
      %v840 = vcvt.s32.f32 %v838
      %841 = vmin.xlane.f32.xlu0 %v840
      %v842 = vpop.xlane.xlu0 %841
      %vm843 = vcmp.eq.f32.partialorder %v840, %v842
      %v844 = vsel %vm843, %v839, inf
      %845 = vmin.xlane.f32.xlu0 %v844
      %v846 = vpop.xlane.xlu0 %845
      %v847 = vcvt.f32.s32 %v846
      %v848 = vcvt.f32.s32 %v842
      %v849 = vshll.u32 %v848, 16
      %v850 = vadd.s32 %v849, %v847
      %v851 = vsel %vm539, %v829, 2147483647
      %v852 = vand.u32 %v851, 65535
      %v853 = vshra.s32 %v851, 16
      %v854 = vcvt.s32.f32 %v852
      %v855 = vcvt.s32.f32 %v853
      %856 = vmin.xlane.f32.xlu0 %v855
      %v857 = vpop.xlane.xlu0 %856
      %vm858 = vcmp.eq.f32.partialorder %v855, %v857
      %v859 = vsel %vm858, %v854, inf
      %860 = vmin.xlane.f32.xlu0 %v859
      %v861 = vpop.xlane.xlu0 %860
      %v862 = vcvt.f32.s32 %v861
      %v863 = vcvt.f32.s32 %v857
      %v864 = vshll.u32 %v863, 16
      %v865 = vadd.s32 %v864, %v862
      %v866 = vsel %vm539, %v830, 2147483647
      %v867 = vand.u32 %v866, 65535
      %v868 = vshra.s32 %v866, 16
      %v869 = vcvt.s32.f32 %v867
      %v870 = vcvt.s32.f32 %v868
      %871 = vmin.xlane.f32.xlu0 %v870
      %v872 = vpop.xlane.xlu0 %871
      %vm873 = vcmp.eq.f32.partialorder %v870, %v872
      %v874 = vsel %vm873, %v869, inf
      %875 = vmin.xlane.f32.xlu0 %v874
      %v876 = vpop.xlane.xlu0 %875
      %v877 = vcvt.f32.s32 %v876
      %v878 = vcvt.f32.s32 %v872
      %v879 = vshll.u32 %v878, 16
      %v880 = vadd.s32 %v879, %v877
      %v881 = vsel %vm539, %v831, 2147483647
      %v882 = vand.u32 %v881, 65535
      %v883 = vshra.s32 %v881, 16
      %v884 = vcvt.s32.f32 %v882
      %v885 = vcvt.s32.f32 %v883
      %886 = vmin.xlane.f32.xlu0 %v885
      %v887 = vpop.xlane.xlu0 %886
      %vm888 = vcmp.eq.f32.partialorder %v885, %v887
      %v889 = vsel %vm888, %v884, inf
      %890 = vmin.xlane.f32.xlu0 %v889
      %v891 = vpop.xlane.xlu0 %890
      %v892 = vcvt.f32.s32 %v891
      %v893 = vcvt.f32.s32 %v887
      %v894 = vshll.u32 %v893, 16
      %v895 = vadd.s32 %v894, %v892
      %v896 = vsel %vm539, %v832, 2147483647
      %v897 = vand.u32 %v896, 65535
      %v898 = vshra.s32 %v896, 16
      %v899 = vcvt.s32.f32 %v897
      %v900 = vcvt.s32.f32 %v898
      %901 = vmin.xlane.f32.xlu0 %v900
      %v902 = vpop.xlane.xlu0 %901
      %vm903 = vcmp.eq.f32.partialorder %v900, %v902
      %v904 = vsel %vm903, %v899, inf
      %905 = vmin.xlane.f32.xlu0 %v904
      %v906 = vpop.xlane.xlu0 %905
      %v907 = vcvt.f32.s32 %v906
      %v908 = vcvt.f32.s32 %v902
      %v909 = vshll.u32 %v908, 16
      %v910 = vadd.s32 %v909, %v907
      %v911 = vsel %vm539, %v833, 2147483647
      %v912 = vand.u32 %v911, 65535
      %v913 = vshra.s32 %v911, 16
      %v914 = vcvt.s32.f32 %v912
      %v915 = vcvt.s32.f32 %v913
      %916 = vmin.xlane.f32.xlu0 %v915
      %v917 = vpop.xlane.xlu0 %916
      %vm918 = vcmp.eq.f32.partialorder %v915, %v917
      %v919 = vsel %vm918, %v914, inf
      %920 = vmin.xlane.f32.xlu0 %v919
      %v921 = vpop.xlane.xlu0 %920
      %v922 = vcvt.f32.s32 %v921
      %v923 = vcvt.f32.s32 %v917
      %v924 = vshll.u32 %v923, 16
      %v925 = vadd.s32 %v924, %v922
      %v926 = vsel %vm539, %v834, 2147483647
      %v927 = vand.u32 %v926, 65535
      %v928 = vshra.s32 %v926, 16
      %v929 = vcvt.s32.f32 %v927
      %v930 = vcvt.s32.f32 %v928
      %931 = vmin.xlane.f32.xlu0 %v930
      %v932 = vpop.xlane.xlu0 %931
      %vm933 = vcmp.eq.f32.partialorder %v930, %v932
      %v934 = vsel %vm933, %v929, inf
      %935 = vmin.xlane.f32.xlu0 %v934
      %v936 = vpop.xlane.xlu0 %935
      %v937 = vcvt.f32.s32 %v936
      %v938 = vcvt.f32.s32 %v932
      %v939 = vshll.u32 %v938, 16
      %v940 = vadd.s32 %v939, %v937
      %v941 = vsel %vm539, %v835, 2147483647
      %v942 = vand.u32 %v941, 65535
      %v943 = vshra.s32 %v941, 16
      %v944 = vcvt.s32.f32 %v942
      %v945 = vcvt.s32.f32 %v943
      %946 = vmin.xlane.f32.xlu0 %v945
      %v947 = vpop.xlane.xlu0 %946
      %vm948 = vcmp.eq.f32.partialorder %v945, %v947
      %v949 = vsel %vm948, %v944, inf
      %950 = vmin.xlane.f32.xlu0 %v949
      %v951 = vpop.xlane.xlu0 %950
      %v952 = vcvt.f32.s32 %v951
      %v953 = vcvt.f32.s32 %v947
      %v954 = vshll.u32 %v953, 16
      %v955 = vadd.s32 %v954, %v952
      %vm956 = vcmp.eq.s32.totalorder %v538, %v850
      %vm957 = vcmp.eq.s32.totalorder %v538, %v865
      %vm958 = vcmp.eq.s32.totalorder %v538, %v880
      %vm959 = vcmp.eq.s32.totalorder %v538, %v895
      %vm960 = vcmp.eq.s32.totalorder %v538, %v910
      %vm961 = vcmp.eq.s32.totalorder %v538, %v925
      %vm962 = vcmp.eq.s32.totalorder %v538, %v940
      %vm963 = vcmp.eq.s32.totalorder %v538, %v955
      %v964 = vsel %vm956, 1.0, %v708
      %v965 = vsel %vm957, 1.0, %v709
      %v966 = vsel %vm958, 1.0, %v710
      %v967 = vsel %vm959, 1.0, %v711
      %v968 = vsel %vm960, 1.0, %v712
      %v969 = vsel %vm961, 1.0, %v713
      %v970 = vsel %vm962, 1.0, %v714
      %v971 = vsel %vm963, 1.0, %v715
      %v972 = vsel %vm956, 3e+38, %v716
      %v973 = vsel %vm957, 3e+38, %v717
      %v974 = vsel %vm958, 3e+38, %v718
      %v975 = vsel %vm959, 3e+38, %v719
      %v976 = vsel %vm960, 3e+38, %v720
      %v977 = vsel %vm961, 3e+38, %v721
      %v978 = vsel %vm962, 3e+38, %v722
      %v979 = vsel %vm963, 3e+38, %v723
      %v980 = vrsqrt.pop %v798
      %v981 = vmul.f32 %v798, %v980
      %vm982 = vcmp.eq.f32.partialorder %v798, inf
      %v983 = vsel %vm982, %v798, %v981
      %vm984 = vcmp.eq.f32.partialorder %v798, 0.0
      %v985 = vand.u32 %v798, 2147483648
      %v986 = vsel %vm984, %v985, %v983
      %v987 = vrsqrt.pop %v801
      %v988 = vmul.f32 %v801, %v987
      %vm989 = vcmp.eq.f32.partialorder %v801, inf
      %v990 = vsel %vm989, %v801, %v988
      %vm991 = vcmp.eq.f32.partialorder %v801, 0.0
      %v992 = vand.u32 %v801, 2147483648
      %v993 = vsel %vm991, %v992, %v990
      %v994 = vrsqrt.pop %v804
      %v995 = vmul.f32 %v804, %v994
      %vm996 = vcmp.eq.f32.partialorder %v804, inf
      %v997 = vsel %vm996, %v804, %v995
      %vm998 = vcmp.eq.f32.partialorder %v804, 0.0
      %v999 = vand.u32 %v804, 2147483648
      %v1000 = vsel %vm998, %v999, %v997
      %v1001 = vrsqrt.pop %v807
      %v1002 = vmul.f32 %v807, %v1001
      %vm1003 = vcmp.eq.f32.partialorder %v807, inf
      %v1004 = vsel %vm1003, %v807, %v1002
      %vm1005 = vcmp.eq.f32.partialorder %v807, 0.0
      %v1006 = vand.u32 %v807, 2147483648
      %v1007 = vsel %vm1005, %v1006, %v1004
      %v1008 = vrsqrt.pop %v810
      %v1009 = vmul.f32 %v810, %v1008
      %vm1010 = vcmp.eq.f32.partialorder %v810, inf
      %v1011 = vsel %vm1010, %v810, %v1009
      %vm1012 = vcmp.eq.f32.partialorder %v810, 0.0
      %v1013 = vand.u32 %v810, 2147483648
      %v1014 = vsel %vm1012, %v1013, %v1011
      %v1015 = vrsqrt.pop %v813
      %v1016 = vmul.f32 %v813, %v1015
      %vm1017 = vcmp.eq.f32.partialorder %v813, inf
      %v1018 = vsel %vm1017, %v813, %v1016
      %vm1019 = vcmp.eq.f32.partialorder %v813, 0.0
      %v1020 = vand.u32 %v813, 2147483648
      %v1021 = vsel %vm1019, %v1020, %v1018
      %v1022 = vrsqrt.pop %v816
      %v1023 = vmul.f32 %v816, %v1022
      %vm1024 = vcmp.eq.f32.partialorder %v816, inf
      %v1025 = vsel %vm1024, %v816, %v1023
      %vm1026 = vcmp.eq.f32.partialorder %v816, 0.0
      %v1027 = vand.u32 %v816, 2147483648
      %v1028 = vsel %vm1026, %v1027, %v1025
      %v1029 = vrsqrt.pop %v819
      %v1030 = vmul.f32 %v819, %v1029
      %vm1031 = vcmp.eq.f32.partialorder %v819, inf
      %v1032 = vsel %vm1031, %v819, %v1030
      %vm1033 = vcmp.eq.f32.partialorder %v819, 0.0
      %v1034 = vand.u32 %v819, 2147483648
      %v1035 = vsel %vm1033, %v1034, %v1032
      %v1036 = vadd.f32 %v780, %v986
      %v1037 = vadd.f32 %v781, %v993
      %v1038 = vadd.f32 %v782, %v1000
      %v1039 = vadd.f32 %v783, %v1007
      %v1040 = vadd.f32 %v784, %v1014
      %v1041 = vadd.f32 %v785, %v1021
      %v1042 = vadd.f32 %v786, %v1028
      %v1043 = vadd.f32 %v787, %v1035
      %v1044 = vadd.f32 %v788, %v798
      %v1045 = vadd.f32 %v789, %v801
      %v1046 = vadd.f32 %v790, %v804
      %v1047 = vadd.f32 %v791, %v807
      %v1048 = vadd.f32 %v792, %v810
      %v1049 = vadd.f32 %v793, %v813
      %v1050 = vadd.f32 %v794, %v816
      %v1051 = vadd.f32 %v795, %v819
      %v1052 = vsel %vm539, %v972, inf
      %1053 = vmin.xlane.f32.xlu0 %v1052
      %v1054 = vpop.xlane.xlu0 %1053
      %v1055 = vsel %vm539, %v973, inf
      %1056 = vmin.xlane.f32.xlu0 %v1055
      %v1057 = vpop.xlane.xlu0 %1056
      %v1058 = vsel %vm539, %v974, inf
      %1059 = vmin.xlane.f32.xlu0 %v1058
      %v1060 = vpop.xlane.xlu0 %1059
      %v1061 = vsel %vm539, %v975, inf
      %1062 = vmin.xlane.f32.xlu0 %v1061
      %v1063 = vpop.xlane.xlu0 %1062
      %v1064 = vsel %vm539, %v976, inf
      %1065 = vmin.xlane.f32.xlu0 %v1064
      %v1066 = vpop.xlane.xlu0 %1065
      %v1067 = vsel %vm539, %v977, inf
      %1068 = vmin.xlane.f32.xlu0 %v1067
      %v1069 = vpop.xlane.xlu0 %1068
      %v1070 = vsel %vm539, %v978, inf
      %1071 = vmin.xlane.f32.xlu0 %v1070
      %v1072 = vpop.xlane.xlu0 %1071
      %v1073 = vsel %vm539, %v979, inf
      %1074 = vmin.xlane.f32.xlu0 %v1073
      %v1075 = vpop.xlane.xlu0 %1074
      %vm1076 = vcmp.eq.f32.partialorder %v972, %v1054
      %vm1077 = vcmp.eq.f32.partialorder %v973, %v1057
      %vm1078 = vcmp.eq.f32.partialorder %v974, %v1060
      %vm1079 = vcmp.eq.f32.partialorder %v975, %v1063
      %vm1080 = vcmp.eq.f32.partialorder %v976, %v1066
      %vm1081 = vcmp.eq.f32.partialorder %v977, %v1069
      %vm1082 = vcmp.eq.f32.partialorder %v978, %v1072
      %vm1083 = vcmp.eq.f32.partialorder %v979, %v1075
      %v1084 = vsel %vm1076, %v538, 64
      %v1085 = vsel %vm1077, %v538, 64
      %v1086 = vsel %vm1078, %v538, 64
      %v1087 = vsel %vm1079, %v538, 64
      %v1088 = vsel %vm1080, %v538, 64
      %v1089 = vsel %vm1081, %v538, 64
      %v1090 = vsel %vm1082, %v538, 64
      %v1091 = vsel %vm1083, %v538, 64
      %v1092 = vsel %vm539, %v1084, 2147483647
      %v1093 = vand.u32 %v1092, 65535
      %v1094 = vshra.s32 %v1092, 16
      %v1095 = vcvt.s32.f32 %v1093
      %v1096 = vcvt.s32.f32 %v1094
      %1097 = vmin.xlane.f32.xlu0 %v1096
      %v1098 = vpop.xlane.xlu0 %1097
      %vm1099 = vcmp.eq.f32.partialorder %v1096, %v1098
      %v1100 = vsel %vm1099, %v1095, inf
      %1101 = vmin.xlane.f32.xlu0 %v1100
      %v1102 = vpop.xlane.xlu0 %1101
      %v1103 = vcvt.f32.s32 %v1102
      %v1104 = vcvt.f32.s32 %v1098
      %v1105 = vshll.u32 %v1104, 16
      %v1106 = vadd.s32 %v1105, %v1103
      %v1107 = vsel %vm539, %v1085, 2147483647
      %v1108 = vand.u32 %v1107, 65535
      %v1109 = vshra.s32 %v1107, 16
      %v1110 = vcvt.s32.f32 %v1108
      %v1111 = vcvt.s32.f32 %v1109
      %1112 = vmin.xlane.f32.xlu0 %v1111
      %v1113 = vpop.xlane.xlu0 %1112
      %vm1114 = vcmp.eq.f32.partialorder %v1111, %v1113
      %v1115 = vsel %vm1114, %v1110, inf
      %1116 = vmin.xlane.f32.xlu0 %v1115
      %v1117 = vpop.xlane.xlu0 %1116
      %v1118 = vcvt.f32.s32 %v1117
      %v1119 = vcvt.f32.s32 %v1113
      %v1120 = vshll.u32 %v1119, 16
      %v1121 = vadd.s32 %v1120, %v1118
      %v1122 = vsel %vm539, %v1086, 2147483647
      %v1123 = vand.u32 %v1122, 65535
      %v1124 = vshra.s32 %v1122, 16
      %v1125 = vcvt.s32.f32 %v1123
      %v1126 = vcvt.s32.f32 %v1124
      %1127 = vmin.xlane.f32.xlu0 %v1126
      %v1128 = vpop.xlane.xlu0 %1127
      %vm1129 = vcmp.eq.f32.partialorder %v1126, %v1128
      %v1130 = vsel %vm1129, %v1125, inf
      %1131 = vmin.xlane.f32.xlu0 %v1130
      %v1132 = vpop.xlane.xlu0 %1131
      %v1133 = vcvt.f32.s32 %v1132
      %v1134 = vcvt.f32.s32 %v1128
      %v1135 = vshll.u32 %v1134, 16
      %v1136 = vadd.s32 %v1135, %v1133
      %v1137 = vsel %vm539, %v1087, 2147483647
      %v1138 = vand.u32 %v1137, 65535
      %v1139 = vshra.s32 %v1137, 16
      %v1140 = vcvt.s32.f32 %v1138
      %v1141 = vcvt.s32.f32 %v1139
      %1142 = vmin.xlane.f32.xlu0 %v1141
      %v1143 = vpop.xlane.xlu0 %1142
      %vm1144 = vcmp.eq.f32.partialorder %v1141, %v1143
      %v1145 = vsel %vm1144, %v1140, inf
      %1146 = vmin.xlane.f32.xlu0 %v1145
      %v1147 = vpop.xlane.xlu0 %1146
      %v1148 = vcvt.f32.s32 %v1147
      %v1149 = vcvt.f32.s32 %v1143
      %v1150 = vshll.u32 %v1149, 16
      %v1151 = vadd.s32 %v1150, %v1148
      %v1152 = vsel %vm539, %v1088, 2147483647
      %v1153 = vand.u32 %v1152, 65535
      %v1154 = vshra.s32 %v1152, 16
      %v1155 = vcvt.s32.f32 %v1153
      %v1156 = vcvt.s32.f32 %v1154
      %1157 = vmin.xlane.f32.xlu0 %v1156
      %v1158 = vpop.xlane.xlu0 %1157
      %vm1159 = vcmp.eq.f32.partialorder %v1156, %v1158
      %v1160 = vsel %vm1159, %v1155, inf
      %1161 = vmin.xlane.f32.xlu0 %v1160
      %v1162 = vpop.xlane.xlu0 %1161
      %v1163 = vcvt.f32.s32 %v1162
      %v1164 = vcvt.f32.s32 %v1158
      %v1165 = vshll.u32 %v1164, 16
      %v1166 = vadd.s32 %v1165, %v1163
      %v1167 = vsel %vm539, %v1089, 2147483647
      %v1168 = vand.u32 %v1167, 65535
      %v1169 = vshra.s32 %v1167, 16
      %v1170 = vcvt.s32.f32 %v1168
      %v1171 = vcvt.s32.f32 %v1169
      %1172 = vmin.xlane.f32.xlu0 %v1171
      %v1173 = vpop.xlane.xlu0 %1172
      %vm1174 = vcmp.eq.f32.partialorder %v1171, %v1173
      %v1175 = vsel %vm1174, %v1170, inf
      %1176 = vmin.xlane.f32.xlu0 %v1175
      %v1177 = vpop.xlane.xlu0 %1176
      %v1178 = vcvt.f32.s32 %v1177
      %v1179 = vcvt.f32.s32 %v1173
      %v1180 = vshll.u32 %v1179, 16
      %v1181 = vadd.s32 %v1180, %v1178
      %v1182 = vsel %vm539, %v1090, 2147483647
      %v1183 = vand.u32 %v1182, 65535
      %v1184 = vshra.s32 %v1182, 16
      %v1185 = vcvt.s32.f32 %v1183
      %v1186 = vcvt.s32.f32 %v1184
      %1187 = vmin.xlane.f32.xlu0 %v1186
      %v1188 = vpop.xlane.xlu0 %1187
      %vm1189 = vcmp.eq.f32.partialorder %v1186, %v1188
      %v1190 = vsel %vm1189, %v1185, inf
      %1191 = vmin.xlane.f32.xlu0 %v1190
      %v1192 = vpop.xlane.xlu0 %1191
      %v1193 = vcvt.f32.s32 %v1192
      %v1194 = vcvt.f32.s32 %v1188
      %v1195 = vshll.u32 %v1194, 16
      %v1196 = vadd.s32 %v1195, %v1193
      %v1197 = vsel %vm539, %v1091, 2147483647
      %v1198 = vand.u32 %v1197, 65535
      %v1199 = vshra.s32 %v1197, 16
      %v1200 = vcvt.s32.f32 %v1198
      %v1201 = vcvt.s32.f32 %v1199
      %1202 = vmin.xlane.f32.xlu0 %v1201
      %v1203 = vpop.xlane.xlu0 %1202
      %vm1204 = vcmp.eq.f32.partialorder %v1201, %v1203
      %v1205 = vsel %vm1204, %v1200, inf
      %1206 = vmin.xlane.f32.xlu0 %v1205
      %v1207 = vpop.xlane.xlu0 %1206
      %v1208 = vcvt.f32.s32 %v1207
      %v1209 = vcvt.f32.s32 %v1203
      %v1210 = vshll.u32 %v1209, 16
      %v1211 = vadd.s32 %v1210, %v1208
      %vm1212 = vcmp.eq.s32.totalorder %v538, %v1106
      %vm1213 = vcmp.eq.s32.totalorder %v538, %v1121
      %vm1214 = vcmp.eq.s32.totalorder %v538, %v1136
      %vm1215 = vcmp.eq.s32.totalorder %v538, %v1151
      %vm1216 = vcmp.eq.s32.totalorder %v538, %v1166
      %vm1217 = vcmp.eq.s32.totalorder %v538, %v1181
      %vm1218 = vcmp.eq.s32.totalorder %v538, %v1196
      %vm1219 = vcmp.eq.s32.totalorder %v538, %v1211
      %v1220 = vsel %vm1212, 1.0, %v964
      %v1221 = vsel %vm1213, 1.0, %v965
      %v1222 = vsel %vm1214, 1.0, %v966
      %v1223 = vsel %vm1215, 1.0, %v967
      %v1224 = vsel %vm1216, 1.0, %v968
      %v1225 = vsel %vm1217, 1.0, %v969
      %v1226 = vsel %vm1218, 1.0, %v970
      %v1227 = vsel %vm1219, 1.0, %v971
      %v1228 = vsel %vm1212, 3e+38, %v972
      %v1229 = vsel %vm1213, 3e+38, %v973
      %v1230 = vsel %vm1214, 3e+38, %v974
      %v1231 = vsel %vm1215, 3e+38, %v975
      %v1232 = vsel %vm1216, 3e+38, %v976
      %v1233 = vsel %vm1217, 3e+38, %v977
      %v1234 = vsel %vm1218, 3e+38, %v978
      %v1235 = vsel %vm1219, 3e+38, %v979
      %v1236 = vrsqrt.pop %v1054
      %v1237 = vmul.f32 %v1054, %v1236
      %vm1238 = vcmp.eq.f32.partialorder %v1054, inf
      %v1239 = vsel %vm1238, %v1054, %v1237
      %vm1240 = vcmp.eq.f32.partialorder %v1054, 0.0
      %v1241 = vand.u32 %v1054, 2147483648
      %v1242 = vsel %vm1240, %v1241, %v1239
      %v1243 = vrsqrt.pop %v1057
      %v1244 = vmul.f32 %v1057, %v1243
      %vm1245 = vcmp.eq.f32.partialorder %v1057, inf
      %v1246 = vsel %vm1245, %v1057, %v1244
      %vm1247 = vcmp.eq.f32.partialorder %v1057, 0.0
      %v1248 = vand.u32 %v1057, 2147483648
      %v1249 = vsel %vm1247, %v1248, %v1246
      %v1250 = vrsqrt.pop %v1060
      %v1251 = vmul.f32 %v1060, %v1250
      %vm1252 = vcmp.eq.f32.partialorder %v1060, inf
      %v1253 = vsel %vm1252, %v1060, %v1251
      %vm1254 = vcmp.eq.f32.partialorder %v1060, 0.0
      %v1255 = vand.u32 %v1060, 2147483648
      %v1256 = vsel %vm1254, %v1255, %v1253
      %v1257 = vrsqrt.pop %v1063
      %v1258 = vmul.f32 %v1063, %v1257
      %vm1259 = vcmp.eq.f32.partialorder %v1063, inf
      %v1260 = vsel %vm1259, %v1063, %v1258
      %vm1261 = vcmp.eq.f32.partialorder %v1063, 0.0
      %v1262 = vand.u32 %v1063, 2147483648
      %v1263 = vsel %vm1261, %v1262, %v1260
      %v1264 = vrsqrt.pop %v1066
      %v1265 = vmul.f32 %v1066, %v1264
      %vm1266 = vcmp.eq.f32.partialorder %v1066, inf
      %v1267 = vsel %vm1266, %v1066, %v1265
      %vm1268 = vcmp.eq.f32.partialorder %v1066, 0.0
      %v1269 = vand.u32 %v1066, 2147483648
      %v1270 = vsel %vm1268, %v1269, %v1267
      %v1271 = vrsqrt.pop %v1069
      %v1272 = vmul.f32 %v1069, %v1271
      %vm1273 = vcmp.eq.f32.partialorder %v1069, inf
      %v1274 = vsel %vm1273, %v1069, %v1272
      %vm1275 = vcmp.eq.f32.partialorder %v1069, 0.0
      %v1276 = vand.u32 %v1069, 2147483648
      %v1277 = vsel %vm1275, %v1276, %v1274
      %v1278 = vrsqrt.pop %v1072
      %v1279 = vmul.f32 %v1072, %v1278
      %vm1280 = vcmp.eq.f32.partialorder %v1072, inf
      %v1281 = vsel %vm1280, %v1072, %v1279
      %vm1282 = vcmp.eq.f32.partialorder %v1072, 0.0
      %v1283 = vand.u32 %v1072, 2147483648
      %v1284 = vsel %vm1282, %v1283, %v1281
      %v1285 = vrsqrt.pop %v1075
      %v1286 = vmul.f32 %v1075, %v1285
      %vm1287 = vcmp.eq.f32.partialorder %v1075, inf
      %v1288 = vsel %vm1287, %v1075, %v1286
      %vm1289 = vcmp.eq.f32.partialorder %v1075, 0.0
      %v1290 = vand.u32 %v1075, 2147483648
      %v1291 = vsel %vm1289, %v1290, %v1288
      %v1292 = vadd.f32 %v1036, %v1242
      %v1293 = vadd.f32 %v1037, %v1249
      %v1294 = vadd.f32 %v1038, %v1256
      %v1295 = vadd.f32 %v1039, %v1263
      %v1296 = vadd.f32 %v1040, %v1270
      %v1297 = vadd.f32 %v1041, %v1277
      %v1298 = vadd.f32 %v1042, %v1284
      %v1299 = vadd.f32 %v1043, %v1291
      %v1300 = vadd.f32 %v1044, %v1054
      %v1301 = vadd.f32 %v1045, %v1057
      %v1302 = vadd.f32 %v1046, %v1060
      %v1303 = vadd.f32 %v1047, %v1063
      %v1304 = vadd.f32 %v1048, %v1066
      %v1305 = vadd.f32 %v1049, %v1069
      %v1306 = vadd.f32 %v1050, %v1072
      %v1307 = vadd.f32 %v1051, %v1075
      %v1308 = vsel %vm539, %v1228, inf
      %1309 = vmin.xlane.f32.xlu0 %v1308
      %v1310 = vpop.xlane.xlu0 %1309
      %v1311 = vsel %vm539, %v1229, inf
      %1312 = vmin.xlane.f32.xlu0 %v1311
      %v1313 = vpop.xlane.xlu0 %1312
      %v1314 = vsel %vm539, %v1230, inf
      %1315 = vmin.xlane.f32.xlu0 %v1314
      %v1316 = vpop.xlane.xlu0 %1315
      %v1317 = vsel %vm539, %v1231, inf
      %1318 = vmin.xlane.f32.xlu0 %v1317
      %v1319 = vpop.xlane.xlu0 %1318
      %v1320 = vsel %vm539, %v1232, inf
      %1321 = vmin.xlane.f32.xlu0 %v1320
      %v1322 = vpop.xlane.xlu0 %1321
      %v1323 = vsel %vm539, %v1233, inf
      %1324 = vmin.xlane.f32.xlu0 %v1323
      %v1325 = vpop.xlane.xlu0 %1324
      %v1326 = vsel %vm539, %v1234, inf
      %1327 = vmin.xlane.f32.xlu0 %v1326
      %v1328 = vpop.xlane.xlu0 %1327
      %v1329 = vsel %vm539, %v1235, inf
      %1330 = vmin.xlane.f32.xlu0 %v1329
      %v1331 = vpop.xlane.xlu0 %1330
      %vm1332 = vcmp.eq.f32.partialorder %v1228, %v1310
      %vm1333 = vcmp.eq.f32.partialorder %v1229, %v1313
      %vm1334 = vcmp.eq.f32.partialorder %v1230, %v1316
      %vm1335 = vcmp.eq.f32.partialorder %v1231, %v1319
      %vm1336 = vcmp.eq.f32.partialorder %v1232, %v1322
      %vm1337 = vcmp.eq.f32.partialorder %v1233, %v1325
      %vm1338 = vcmp.eq.f32.partialorder %v1234, %v1328
      %vm1339 = vcmp.eq.f32.partialorder %v1235, %v1331
      %v1340 = vsel %vm1332, %v538, 64
      %v1341 = vsel %vm1333, %v538, 64
      %v1342 = vsel %vm1334, %v538, 64
      %v1343 = vsel %vm1335, %v538, 64
      %v1344 = vsel %vm1336, %v538, 64
      %v1345 = vsel %vm1337, %v538, 64
      %v1346 = vsel %vm1338, %v538, 64
      %v1347 = vsel %vm1339, %v538, 64
      %v1348 = vsel %vm539, %v1340, 2147483647
      %v1349 = vand.u32 %v1348, 65535
      %v1350 = vshra.s32 %v1348, 16
      %v1351 = vcvt.s32.f32 %v1349
      %v1352 = vcvt.s32.f32 %v1350
      %1353 = vmin.xlane.f32.xlu0 %v1352
      %v1354 = vpop.xlane.xlu0 %1353
      %vm1355 = vcmp.eq.f32.partialorder %v1352, %v1354
      %v1356 = vsel %vm1355, %v1351, inf
      %1357 = vmin.xlane.f32.xlu0 %v1356
      %v1358 = vpop.xlane.xlu0 %1357
      %v1359 = vcvt.f32.s32 %v1358
      %v1360 = vcvt.f32.s32 %v1354
      %v1361 = vshll.u32 %v1360, 16
      %v1362 = vadd.s32 %v1361, %v1359
      %v1363 = vsel %vm539, %v1341, 2147483647
      %v1364 = vand.u32 %v1363, 65535
      %v1365 = vshra.s32 %v1363, 16
      %v1366 = vcvt.s32.f32 %v1364
      %v1367 = vcvt.s32.f32 %v1365
      %1368 = vmin.xlane.f32.xlu0 %v1367
      %v1369 = vpop.xlane.xlu0 %1368
      %vm1370 = vcmp.eq.f32.partialorder %v1367, %v1369
      %v1371 = vsel %vm1370, %v1366, inf
      %1372 = vmin.xlane.f32.xlu0 %v1371
      %v1373 = vpop.xlane.xlu0 %1372
      %v1374 = vcvt.f32.s32 %v1373
      %v1375 = vcvt.f32.s32 %v1369
      %v1376 = vshll.u32 %v1375, 16
      %v1377 = vadd.s32 %v1376, %v1374
      %v1378 = vsel %vm539, %v1342, 2147483647
      %v1379 = vand.u32 %v1378, 65535
      %v1380 = vshra.s32 %v1378, 16
      %v1381 = vcvt.s32.f32 %v1379
      %v1382 = vcvt.s32.f32 %v1380
      %1383 = vmin.xlane.f32.xlu0 %v1382
      %v1384 = vpop.xlane.xlu0 %1383
      %vm1385 = vcmp.eq.f32.partialorder %v1382, %v1384
      %v1386 = vsel %vm1385, %v1381, inf
      %1387 = vmin.xlane.f32.xlu0 %v1386
      %v1388 = vpop.xlane.xlu0 %1387
      %v1389 = vcvt.f32.s32 %v1388
      %v1390 = vcvt.f32.s32 %v1384
      %v1391 = vshll.u32 %v1390, 16
      %v1392 = vadd.s32 %v1391, %v1389
      %v1393 = vsel %vm539, %v1343, 2147483647
      %v1394 = vand.u32 %v1393, 65535
      %v1395 = vshra.s32 %v1393, 16
      %v1396 = vcvt.s32.f32 %v1394
      %v1397 = vcvt.s32.f32 %v1395
      %1398 = vmin.xlane.f32.xlu0 %v1397
      %v1399 = vpop.xlane.xlu0 %1398
      %vm1400 = vcmp.eq.f32.partialorder %v1397, %v1399
      %v1401 = vsel %vm1400, %v1396, inf
      %1402 = vmin.xlane.f32.xlu0 %v1401
      %v1403 = vpop.xlane.xlu0 %1402
      %v1404 = vcvt.f32.s32 %v1403
      %v1405 = vcvt.f32.s32 %v1399
      %v1406 = vshll.u32 %v1405, 16
      %v1407 = vadd.s32 %v1406, %v1404
      %v1408 = vsel %vm539, %v1344, 2147483647
      %v1409 = vand.u32 %v1408, 65535
      %v1410 = vshra.s32 %v1408, 16
      %v1411 = vcvt.s32.f32 %v1409
      %v1412 = vcvt.s32.f32 %v1410
      %1413 = vmin.xlane.f32.xlu0 %v1412
      %v1414 = vpop.xlane.xlu0 %1413
      %vm1415 = vcmp.eq.f32.partialorder %v1412, %v1414
      %v1416 = vsel %vm1415, %v1411, inf
      %1417 = vmin.xlane.f32.xlu0 %v1416
      %v1418 = vpop.xlane.xlu0 %1417
      %v1419 = vcvt.f32.s32 %v1418
      %v1420 = vcvt.f32.s32 %v1414
      %v1421 = vshll.u32 %v1420, 16
      %v1422 = vadd.s32 %v1421, %v1419
      %v1423 = vsel %vm539, %v1345, 2147483647
      %v1424 = vand.u32 %v1423, 65535
      %v1425 = vshra.s32 %v1423, 16
      %v1426 = vcvt.s32.f32 %v1424
      %v1427 = vcvt.s32.f32 %v1425
      %1428 = vmin.xlane.f32.xlu0 %v1427
      %v1429 = vpop.xlane.xlu0 %1428
      %vm1430 = vcmp.eq.f32.partialorder %v1427, %v1429
      %v1431 = vsel %vm1430, %v1426, inf
      %1432 = vmin.xlane.f32.xlu0 %v1431
      %v1433 = vpop.xlane.xlu0 %1432
      %v1434 = vcvt.f32.s32 %v1433
      %v1435 = vcvt.f32.s32 %v1429
      %v1436 = vshll.u32 %v1435, 16
      %v1437 = vadd.s32 %v1436, %v1434
      %v1438 = vsel %vm539, %v1346, 2147483647
      %v1439 = vand.u32 %v1438, 65535
      %v1440 = vshra.s32 %v1438, 16
      %v1441 = vcvt.s32.f32 %v1439
      %v1442 = vcvt.s32.f32 %v1440
      %1443 = vmin.xlane.f32.xlu0 %v1442
      %v1444 = vpop.xlane.xlu0 %1443
      %vm1445 = vcmp.eq.f32.partialorder %v1442, %v1444
      %v1446 = vsel %vm1445, %v1441, inf
      %1447 = vmin.xlane.f32.xlu0 %v1446
      %v1448 = vpop.xlane.xlu0 %1447
      %v1449 = vcvt.f32.s32 %v1448
      %v1450 = vcvt.f32.s32 %v1444
      %v1451 = vshll.u32 %v1450, 16
      %v1452 = vadd.s32 %v1451, %v1449
      %v1453 = vsel %vm539, %v1347, 2147483647
      %v1454 = vand.u32 %v1453, 65535
      %v1455 = vshra.s32 %v1453, 16
      %v1456 = vcvt.s32.f32 %v1454
      %v1457 = vcvt.s32.f32 %v1455
      %1458 = vmin.xlane.f32.xlu0 %v1457
      %v1459 = vpop.xlane.xlu0 %1458
      %vm1460 = vcmp.eq.f32.partialorder %v1457, %v1459
      %v1461 = vsel %vm1460, %v1456, inf
      %1462 = vmin.xlane.f32.xlu0 %v1461
      %v1463 = vpop.xlane.xlu0 %1462
      %v1464 = vcvt.f32.s32 %v1463
      %v1465 = vcvt.f32.s32 %v1459
      %v1466 = vshll.u32 %v1465, 16
      %v1467 = vadd.s32 %v1466, %v1464
      %vm1468 = vcmp.eq.s32.totalorder %v538, %v1362
      %vm1469 = vcmp.eq.s32.totalorder %v538, %v1377
      %vm1470 = vcmp.eq.s32.totalorder %v538, %v1392
      %vm1471 = vcmp.eq.s32.totalorder %v538, %v1407
      %vm1472 = vcmp.eq.s32.totalorder %v538, %v1422
      %vm1473 = vcmp.eq.s32.totalorder %v538, %v1437
      %vm1474 = vcmp.eq.s32.totalorder %v538, %v1452
      %vm1475 = vcmp.eq.s32.totalorder %v538, %v1467
      %v1476 = vsel %vm1468, 1.0, %v1220
      %v1477 = vsel %vm1469, 1.0, %v1221
      %v1478 = vsel %vm1470, 1.0, %v1222
      %v1479 = vsel %vm1471, 1.0, %v1223
      %v1480 = vsel %vm1472, 1.0, %v1224
      %v1481 = vsel %vm1473, 1.0, %v1225
      %v1482 = vsel %vm1474, 1.0, %v1226
      %v1483 = vsel %vm1475, 1.0, %v1227
      %v1484 = vsel %vm1468, 3e+38, %v1228
      %v1485 = vsel %vm1469, 3e+38, %v1229
      %v1486 = vsel %vm1470, 3e+38, %v1230
      %v1487 = vsel %vm1471, 3e+38, %v1231
      %v1488 = vsel %vm1472, 3e+38, %v1232
      %v1489 = vsel %vm1473, 3e+38, %v1233
      %v1490 = vsel %vm1474, 3e+38, %v1234
      %v1491 = vsel %vm1475, 3e+38, %v1235
      %v1492 = vrsqrt.pop %v1310
      %v1493 = vmul.f32 %v1310, %v1492
      %vm1494 = vcmp.eq.f32.partialorder %v1310, inf
      %v1495 = vsel %vm1494, %v1310, %v1493
      %vm1496 = vcmp.eq.f32.partialorder %v1310, 0.0
      %v1497 = vand.u32 %v1310, 2147483648
      %v1498 = vsel %vm1496, %v1497, %v1495
      %v1499 = vrsqrt.pop %v1313
      %v1500 = vmul.f32 %v1313, %v1499
      %vm1501 = vcmp.eq.f32.partialorder %v1313, inf
      %v1502 = vsel %vm1501, %v1313, %v1500
      %vm1503 = vcmp.eq.f32.partialorder %v1313, 0.0
      %v1504 = vand.u32 %v1313, 2147483648
      %v1505 = vsel %vm1503, %v1504, %v1502
      %v1506 = vrsqrt.pop %v1316
      %v1507 = vmul.f32 %v1316, %v1506
      %vm1508 = vcmp.eq.f32.partialorder %v1316, inf
      %v1509 = vsel %vm1508, %v1316, %v1507
      %vm1510 = vcmp.eq.f32.partialorder %v1316, 0.0
      %v1511 = vand.u32 %v1316, 2147483648
      %v1512 = vsel %vm1510, %v1511, %v1509
      %v1513 = vrsqrt.pop %v1319
      %v1514 = vmul.f32 %v1319, %v1513
      %vm1515 = vcmp.eq.f32.partialorder %v1319, inf
      %v1516 = vsel %vm1515, %v1319, %v1514
      %vm1517 = vcmp.eq.f32.partialorder %v1319, 0.0
      %v1518 = vand.u32 %v1319, 2147483648
      %v1519 = vsel %vm1517, %v1518, %v1516
      %v1520 = vrsqrt.pop %v1322
      %v1521 = vmul.f32 %v1322, %v1520
      %vm1522 = vcmp.eq.f32.partialorder %v1322, inf
      %v1523 = vsel %vm1522, %v1322, %v1521
      %vm1524 = vcmp.eq.f32.partialorder %v1322, 0.0
      %v1525 = vand.u32 %v1322, 2147483648
      %v1526 = vsel %vm1524, %v1525, %v1523
      %v1527 = vrsqrt.pop %v1325
      %v1528 = vmul.f32 %v1325, %v1527
      %vm1529 = vcmp.eq.f32.partialorder %v1325, inf
      %v1530 = vsel %vm1529, %v1325, %v1528
      %vm1531 = vcmp.eq.f32.partialorder %v1325, 0.0
      %v1532 = vand.u32 %v1325, 2147483648
      %v1533 = vsel %vm1531, %v1532, %v1530
      %v1534 = vrsqrt.pop %v1328
      %v1535 = vmul.f32 %v1328, %v1534
      %vm1536 = vcmp.eq.f32.partialorder %v1328, inf
      %v1537 = vsel %vm1536, %v1328, %v1535
      %vm1538 = vcmp.eq.f32.partialorder %v1328, 0.0
      %v1539 = vand.u32 %v1328, 2147483648
      %v1540 = vsel %vm1538, %v1539, %v1537
      %v1541 = vrsqrt.pop %v1331
      %v1542 = vmul.f32 %v1331, %v1541
      %vm1543 = vcmp.eq.f32.partialorder %v1331, inf
      %v1544 = vsel %vm1543, %v1331, %v1542
      %vm1545 = vcmp.eq.f32.partialorder %v1331, 0.0
      %v1546 = vand.u32 %v1331, 2147483648
      %v1547 = vsel %vm1545, %v1546, %v1544
      %v1548 = vadd.f32 %v1292, %v1498
      %v1549 = vadd.f32 %v1293, %v1505
      %v1550 = vadd.f32 %v1294, %v1512
      %v1551 = vadd.f32 %v1295, %v1519
      %v1552 = vadd.f32 %v1296, %v1526
      %v1553 = vadd.f32 %v1297, %v1533
      %v1554 = vadd.f32 %v1298, %v1540
      %v1555 = vadd.f32 %v1299, %v1547
      %v1556 = vadd.f32 %v1300, %v1310
      %v1557 = vadd.f32 %v1301, %v1313
      %v1558 = vadd.f32 %v1302, %v1316
      %v1559 = vadd.f32 %v1303, %v1319
      %v1560 = vadd.f32 %v1304, %v1322
      %v1561 = vadd.f32 %v1305, %v1325
      %v1562 = vadd.f32 %v1306, %v1328
      %v1563 = vadd.f32 %v1307, %v1331
      %v1564 = vsel %vm539, %v1484, inf
      %1565 = vmin.xlane.f32.xlu0 %v1564
      %v1566 = vpop.xlane.xlu0 %1565
      %v1567 = vsel %vm539, %v1485, inf
      %1568 = vmin.xlane.f32.xlu0 %v1567
      %v1569 = vpop.xlane.xlu0 %1568
      %v1570 = vsel %vm539, %v1486, inf
      %1571 = vmin.xlane.f32.xlu0 %v1570
      %v1572 = vpop.xlane.xlu0 %1571
      %v1573 = vsel %vm539, %v1487, inf
      %1574 = vmin.xlane.f32.xlu0 %v1573
      %v1575 = vpop.xlane.xlu0 %1574
      %v1576 = vsel %vm539, %v1488, inf
      %1577 = vmin.xlane.f32.xlu0 %v1576
      %v1578 = vpop.xlane.xlu0 %1577
      %v1579 = vsel %vm539, %v1489, inf
      %1580 = vmin.xlane.f32.xlu0 %v1579
      %v1581 = vpop.xlane.xlu0 %1580
      %v1582 = vsel %vm539, %v1490, inf
      %1583 = vmin.xlane.f32.xlu0 %v1582
      %v1584 = vpop.xlane.xlu0 %1583
      %v1585 = vsel %vm539, %v1491, inf
      %1586 = vmin.xlane.f32.xlu0 %v1585
      %v1587 = vpop.xlane.xlu0 %1586
      %vm1588 = vcmp.eq.f32.partialorder %v1484, %v1566
      %vm1589 = vcmp.eq.f32.partialorder %v1485, %v1569
      %vm1590 = vcmp.eq.f32.partialorder %v1486, %v1572
      %vm1591 = vcmp.eq.f32.partialorder %v1487, %v1575
      %vm1592 = vcmp.eq.f32.partialorder %v1488, %v1578
      %vm1593 = vcmp.eq.f32.partialorder %v1489, %v1581
      %vm1594 = vcmp.eq.f32.partialorder %v1490, %v1584
      %vm1595 = vcmp.eq.f32.partialorder %v1491, %v1587
      %v1596 = vsel %vm1588, %v538, 64
      %v1597 = vsel %vm1589, %v538, 64
      %v1598 = vsel %vm1590, %v538, 64
      %v1599 = vsel %vm1591, %v538, 64
      %v1600 = vsel %vm1592, %v538, 64
      %v1601 = vsel %vm1593, %v538, 64
      %v1602 = vsel %vm1594, %v538, 64
      %v1603 = vsel %vm1595, %v538, 64
      %v1604 = vsel %vm539, %v1596, 2147483647
      %v1605 = vand.u32 %v1604, 65535
      %v1606 = vshra.s32 %v1604, 16
      %v1607 = vcvt.s32.f32 %v1605
      %v1608 = vcvt.s32.f32 %v1606
      %1609 = vmin.xlane.f32.xlu0 %v1608
      %v1610 = vpop.xlane.xlu0 %1609
      %vm1611 = vcmp.eq.f32.partialorder %v1608, %v1610
      %v1612 = vsel %vm1611, %v1607, inf
      %1613 = vmin.xlane.f32.xlu0 %v1612
      %v1614 = vpop.xlane.xlu0 %1613
      %v1615 = vcvt.f32.s32 %v1614
      %v1616 = vcvt.f32.s32 %v1610
      %v1617 = vshll.u32 %v1616, 16
      %v1618 = vadd.s32 %v1617, %v1615
      %v1619 = vsel %vm539, %v1597, 2147483647
      %v1620 = vand.u32 %v1619, 65535
      %v1621 = vshra.s32 %v1619, 16
      %v1622 = vcvt.s32.f32 %v1620
      %v1623 = vcvt.s32.f32 %v1621
      %1624 = vmin.xlane.f32.xlu0 %v1623
      %v1625 = vpop.xlane.xlu0 %1624
      %vm1626 = vcmp.eq.f32.partialorder %v1623, %v1625
      %v1627 = vsel %vm1626, %v1622, inf
      %1628 = vmin.xlane.f32.xlu0 %v1627
      %v1629 = vpop.xlane.xlu0 %1628
      %v1630 = vcvt.f32.s32 %v1629
      %v1631 = vcvt.f32.s32 %v1625
      %v1632 = vshll.u32 %v1631, 16
      %v1633 = vadd.s32 %v1632, %v1630
      %v1634 = vsel %vm539, %v1598, 2147483647
      %v1635 = vand.u32 %v1634, 65535
      %v1636 = vshra.s32 %v1634, 16
      %v1637 = vcvt.s32.f32 %v1635
      %v1638 = vcvt.s32.f32 %v1636
      %1639 = vmin.xlane.f32.xlu0 %v1638
      %v1640 = vpop.xlane.xlu0 %1639
      %vm1641 = vcmp.eq.f32.partialorder %v1638, %v1640
      %v1642 = vsel %vm1641, %v1637, inf
      %1643 = vmin.xlane.f32.xlu0 %v1642
      %v1644 = vpop.xlane.xlu0 %1643
      %v1645 = vcvt.f32.s32 %v1644
      %v1646 = vcvt.f32.s32 %v1640
      %v1647 = vshll.u32 %v1646, 16
      %v1648 = vadd.s32 %v1647, %v1645
      %v1649 = vsel %vm539, %v1599, 2147483647
      %v1650 = vand.u32 %v1649, 65535
      %v1651 = vshra.s32 %v1649, 16
      %v1652 = vcvt.s32.f32 %v1650
      %v1653 = vcvt.s32.f32 %v1651
      %1654 = vmin.xlane.f32.xlu0 %v1653
      %v1655 = vpop.xlane.xlu0 %1654
      %vm1656 = vcmp.eq.f32.partialorder %v1653, %v1655
      %v1657 = vsel %vm1656, %v1652, inf
      %1658 = vmin.xlane.f32.xlu0 %v1657
      %v1659 = vpop.xlane.xlu0 %1658
      %v1660 = vcvt.f32.s32 %v1659
      %v1661 = vcvt.f32.s32 %v1655
      %v1662 = vshll.u32 %v1661, 16
      %v1663 = vadd.s32 %v1662, %v1660
      %v1664 = vsel %vm539, %v1600, 2147483647
      %v1665 = vand.u32 %v1664, 65535
      %v1666 = vshra.s32 %v1664, 16
      %v1667 = vcvt.s32.f32 %v1665
      %v1668 = vcvt.s32.f32 %v1666
      %1669 = vmin.xlane.f32.xlu0 %v1668
      %v1670 = vpop.xlane.xlu0 %1669
      %vm1671 = vcmp.eq.f32.partialorder %v1668, %v1670
      %v1672 = vsel %vm1671, %v1667, inf
      %1673 = vmin.xlane.f32.xlu0 %v1672
      %v1674 = vpop.xlane.xlu0 %1673
      %v1675 = vcvt.f32.s32 %v1674
      %v1676 = vcvt.f32.s32 %v1670
      %v1677 = vshll.u32 %v1676, 16
      %v1678 = vadd.s32 %v1677, %v1675
      %v1679 = vsel %vm539, %v1601, 2147483647
      %v1680 = vand.u32 %v1679, 65535
      %v1681 = vshra.s32 %v1679, 16
      %v1682 = vcvt.s32.f32 %v1680
      %v1683 = vcvt.s32.f32 %v1681
      %1684 = vmin.xlane.f32.xlu0 %v1683
      %v1685 = vpop.xlane.xlu0 %1684
      %vm1686 = vcmp.eq.f32.partialorder %v1683, %v1685
      %v1687 = vsel %vm1686, %v1682, inf
      %1688 = vmin.xlane.f32.xlu0 %v1687
      %v1689 = vpop.xlane.xlu0 %1688
      %v1690 = vcvt.f32.s32 %v1689
      %v1691 = vcvt.f32.s32 %v1685
      %v1692 = vshll.u32 %v1691, 16
      %v1693 = vadd.s32 %v1692, %v1690
      %v1694 = vsel %vm539, %v1602, 2147483647
      %v1695 = vand.u32 %v1694, 65535
      %v1696 = vshra.s32 %v1694, 16
      %v1697 = vcvt.s32.f32 %v1695
      %v1698 = vcvt.s32.f32 %v1696
      %1699 = vmin.xlane.f32.xlu0 %v1698
      %v1700 = vpop.xlane.xlu0 %1699
      %vm1701 = vcmp.eq.f32.partialorder %v1698, %v1700
      %v1702 = vsel %vm1701, %v1697, inf
      %1703 = vmin.xlane.f32.xlu0 %v1702
      %v1704 = vpop.xlane.xlu0 %1703
      %v1705 = vcvt.f32.s32 %v1704
      %v1706 = vcvt.f32.s32 %v1700
      %v1707 = vshll.u32 %v1706, 16
      %v1708 = vadd.s32 %v1707, %v1705
      %v1709 = vsel %vm539, %v1603, 2147483647
      %v1710 = vand.u32 %v1709, 65535
      %v1711 = vshra.s32 %v1709, 16
      %v1712 = vcvt.s32.f32 %v1710
      %v1713 = vcvt.s32.f32 %v1711
      %1714 = vmin.xlane.f32.xlu0 %v1713
      %v1715 = vpop.xlane.xlu0 %1714
      %vm1716 = vcmp.eq.f32.partialorder %v1713, %v1715
      %v1717 = vsel %vm1716, %v1712, inf
      %1718 = vmin.xlane.f32.xlu0 %v1717
      %v1719 = vpop.xlane.xlu0 %1718
      %v1720 = vcvt.f32.s32 %v1719
      %v1721 = vcvt.f32.s32 %v1715
      %v1722 = vshll.u32 %v1721, 16
      %v1723 = vadd.s32 %v1722, %v1720
      %vm1724 = vcmp.eq.s32.totalorder %v538, %v1618
      %vm1725 = vcmp.eq.s32.totalorder %v538, %v1633
      %vm1726 = vcmp.eq.s32.totalorder %v538, %v1648
      %vm1727 = vcmp.eq.s32.totalorder %v538, %v1663
      %vm1728 = vcmp.eq.s32.totalorder %v538, %v1678
      %vm1729 = vcmp.eq.s32.totalorder %v538, %v1693
      %vm1730 = vcmp.eq.s32.totalorder %v538, %v1708
      %vm1731 = vcmp.eq.s32.totalorder %v538, %v1723
      %v1732 = vsel %vm1724, 1.0, %v1476
      %v1733 = vsel %vm1725, 1.0, %v1477
      %v1734 = vsel %vm1726, 1.0, %v1478
      %v1735 = vsel %vm1727, 1.0, %v1479
      %v1736 = vsel %vm1728, 1.0, %v1480
      %v1737 = vsel %vm1729, 1.0, %v1481
      %v1738 = vsel %vm1730, 1.0, %v1482
      %v1739 = vsel %vm1731, 1.0, %v1483
      %v1740 = vsel %vm1724, 3e+38, %v1484
      %v1741 = vsel %vm1725, 3e+38, %v1485
      %v1742 = vsel %vm1726, 3e+38, %v1486
      %v1743 = vsel %vm1727, 3e+38, %v1487
      %v1744 = vsel %vm1728, 3e+38, %v1488
      %v1745 = vsel %vm1729, 3e+38, %v1489
      %v1746 = vsel %vm1730, 3e+38, %v1490
      %v1747 = vsel %vm1731, 3e+38, %v1491
      %v1748 = vrsqrt.pop %v1566
      %v1749 = vmul.f32 %v1566, %v1748
      %vm1750 = vcmp.eq.f32.partialorder %v1566, inf
      %v1751 = vsel %vm1750, %v1566, %v1749
      %vm1752 = vcmp.eq.f32.partialorder %v1566, 0.0
      %v1753 = vand.u32 %v1566, 2147483648
      %v1754 = vsel %vm1752, %v1753, %v1751
      %v1755 = vrsqrt.pop %v1569
      %v1756 = vmul.f32 %v1569, %v1755
      %vm1757 = vcmp.eq.f32.partialorder %v1569, inf
      %v1758 = vsel %vm1757, %v1569, %v1756
      %vm1759 = vcmp.eq.f32.partialorder %v1569, 0.0
      %v1760 = vand.u32 %v1569, 2147483648
      %v1761 = vsel %vm1759, %v1760, %v1758
      %v1762 = vrsqrt.pop %v1572
      %v1763 = vmul.f32 %v1572, %v1762
      %vm1764 = vcmp.eq.f32.partialorder %v1572, inf
      %v1765 = vsel %vm1764, %v1572, %v1763
      %vm1766 = vcmp.eq.f32.partialorder %v1572, 0.0
      %v1767 = vand.u32 %v1572, 2147483648
      %v1768 = vsel %vm1766, %v1767, %v1765
      %v1769 = vrsqrt.pop %v1575
      %v1770 = vmul.f32 %v1575, %v1769
      %vm1771 = vcmp.eq.f32.partialorder %v1575, inf
      %v1772 = vsel %vm1771, %v1575, %v1770
      %vm1773 = vcmp.eq.f32.partialorder %v1575, 0.0
      %v1774 = vand.u32 %v1575, 2147483648
      %v1775 = vsel %vm1773, %v1774, %v1772
      %v1776 = vrsqrt.pop %v1578
      %v1777 = vmul.f32 %v1578, %v1776
      %vm1778 = vcmp.eq.f32.partialorder %v1578, inf
      %v1779 = vsel %vm1778, %v1578, %v1777
      %vm1780 = vcmp.eq.f32.partialorder %v1578, 0.0
      %v1781 = vand.u32 %v1578, 2147483648
      %v1782 = vsel %vm1780, %v1781, %v1779
      %v1783 = vrsqrt.pop %v1581
      %v1784 = vmul.f32 %v1581, %v1783
      %vm1785 = vcmp.eq.f32.partialorder %v1581, inf
      %v1786 = vsel %vm1785, %v1581, %v1784
      %vm1787 = vcmp.eq.f32.partialorder %v1581, 0.0
      %v1788 = vand.u32 %v1581, 2147483648
      %v1789 = vsel %vm1787, %v1788, %v1786
      %v1790 = vrsqrt.pop %v1584
      %v1791 = vmul.f32 %v1584, %v1790
      %vm1792 = vcmp.eq.f32.partialorder %v1584, inf
      %v1793 = vsel %vm1792, %v1584, %v1791
      %vm1794 = vcmp.eq.f32.partialorder %v1584, 0.0
      %v1795 = vand.u32 %v1584, 2147483648
      %v1796 = vsel %vm1794, %v1795, %v1793
      %v1797 = vrsqrt.pop %v1587
      %v1798 = vmul.f32 %v1587, %v1797
      %vm1799 = vcmp.eq.f32.partialorder %v1587, inf
      %v1800 = vsel %vm1799, %v1587, %v1798
      %vm1801 = vcmp.eq.f32.partialorder %v1587, 0.0
      %v1802 = vand.u32 %v1587, 2147483648
      %v1803 = vsel %vm1801, %v1802, %v1800
      %v1804 = vadd.f32 %v1548, %v1754
      %v1805 = vadd.f32 %v1549, %v1761
      %v1806 = vadd.f32 %v1550, %v1768
      %v1807 = vadd.f32 %v1551, %v1775
      %v1808 = vadd.f32 %v1552, %v1782
      %v1809 = vadd.f32 %v1553, %v1789
      %v1810 = vadd.f32 %v1554, %v1796
      %v1811 = vadd.f32 %v1555, %v1803
      %v1812 = vadd.f32 %v1556, %v1566
      %v1813 = vadd.f32 %v1557, %v1569
      %v1814 = vadd.f32 %v1558, %v1572
      %v1815 = vadd.f32 %v1559, %v1575
      %v1816 = vadd.f32 %v1560, %v1578
      %v1817 = vadd.f32 %v1561, %v1581
      %v1818 = vadd.f32 %v1562, %v1584
      %v1819 = vadd.f32 %v1563, %v1587
      %v1820 = vsel %vm539, %v1740, inf
      %1821 = vmin.xlane.f32.xlu0 %v1820
      %v1822 = vpop.xlane.xlu0 %1821
      %v1823 = vsel %vm539, %v1741, inf
      %1824 = vmin.xlane.f32.xlu0 %v1823
      %v1825 = vpop.xlane.xlu0 %1824
      %v1826 = vsel %vm539, %v1742, inf
      %1827 = vmin.xlane.f32.xlu0 %v1826
      %v1828 = vpop.xlane.xlu0 %1827
      %v1829 = vsel %vm539, %v1743, inf
      %1830 = vmin.xlane.f32.xlu0 %v1829
      %v1831 = vpop.xlane.xlu0 %1830
      %v1832 = vsel %vm539, %v1744, inf
      %1833 = vmin.xlane.f32.xlu0 %v1832
      %v1834 = vpop.xlane.xlu0 %1833
      %v1835 = vsel %vm539, %v1745, inf
      %1836 = vmin.xlane.f32.xlu0 %v1835
      %v1837 = vpop.xlane.xlu0 %1836
      %v1838 = vsel %vm539, %v1746, inf
      %1839 = vmin.xlane.f32.xlu0 %v1838
      %v1840 = vpop.xlane.xlu0 %1839
      %v1841 = vsel %vm539, %v1747, inf
      %1842 = vmin.xlane.f32.xlu0 %v1841
      %v1843 = vpop.xlane.xlu0 %1842
      %vm1844 = vcmp.eq.f32.partialorder %v1740, %v1822
      %vm1845 = vcmp.eq.f32.partialorder %v1741, %v1825
      %vm1846 = vcmp.eq.f32.partialorder %v1742, %v1828
      %vm1847 = vcmp.eq.f32.partialorder %v1743, %v1831
      %vm1848 = vcmp.eq.f32.partialorder %v1744, %v1834
      %vm1849 = vcmp.eq.f32.partialorder %v1745, %v1837
      %vm1850 = vcmp.eq.f32.partialorder %v1746, %v1840
      %vm1851 = vcmp.eq.f32.partialorder %v1747, %v1843
      %v1852 = vsel %vm1844, %v538, 64
      %v1853 = vsel %vm1845, %v538, 64
      %v1854 = vsel %vm1846, %v538, 64
      %v1855 = vsel %vm1847, %v538, 64
      %v1856 = vsel %vm1848, %v538, 64
      %v1857 = vsel %vm1849, %v538, 64
      %v1858 = vsel %vm1850, %v538, 64
      %v1859 = vsel %vm1851, %v538, 64
      %v1860 = vsel %vm539, %v1852, 2147483647
      %v1861 = vand.u32 %v1860, 65535
      %v1862 = vshra.s32 %v1860, 16
      %v1863 = vcvt.s32.f32 %v1861
      %v1864 = vcvt.s32.f32 %v1862
      %1865 = vmin.xlane.f32.xlu0 %v1864
      %v1866 = vpop.xlane.xlu0 %1865
      %vm1867 = vcmp.eq.f32.partialorder %v1864, %v1866
      %v1868 = vsel %vm1867, %v1863, inf
      %1869 = vmin.xlane.f32.xlu0 %v1868
      %v1870 = vpop.xlane.xlu0 %1869
      %v1871 = vcvt.f32.s32 %v1870
      %v1872 = vcvt.f32.s32 %v1866
      %v1873 = vshll.u32 %v1872, 16
      %v1874 = vadd.s32 %v1873, %v1871
      %v1875 = vsel %vm539, %v1853, 2147483647
      %v1876 = vand.u32 %v1875, 65535
      %v1877 = vshra.s32 %v1875, 16
      %v1878 = vcvt.s32.f32 %v1876
      %v1879 = vcvt.s32.f32 %v1877
      %1880 = vmin.xlane.f32.xlu0 %v1879
      %v1881 = vpop.xlane.xlu0 %1880
      %vm1882 = vcmp.eq.f32.partialorder %v1879, %v1881
      %v1883 = vsel %vm1882, %v1878, inf
      %1884 = vmin.xlane.f32.xlu0 %v1883
      %v1885 = vpop.xlane.xlu0 %1884
      %v1886 = vcvt.f32.s32 %v1885
      %v1887 = vcvt.f32.s32 %v1881
      %v1888 = vshll.u32 %v1887, 16
      %v1889 = vadd.s32 %v1888, %v1886
      %v1890 = vsel %vm539, %v1854, 2147483647
      %v1891 = vand.u32 %v1890, 65535
      %v1892 = vshra.s32 %v1890, 16
      %v1893 = vcvt.s32.f32 %v1891
      %v1894 = vcvt.s32.f32 %v1892
      %1895 = vmin.xlane.f32.xlu0 %v1894
      %v1896 = vpop.xlane.xlu0 %1895
      %vm1897 = vcmp.eq.f32.partialorder %v1894, %v1896
      %v1898 = vsel %vm1897, %v1893, inf
      %1899 = vmin.xlane.f32.xlu0 %v1898
      %v1900 = vpop.xlane.xlu0 %1899
      %v1901 = vcvt.f32.s32 %v1900
      %v1902 = vcvt.f32.s32 %v1896
      %v1903 = vshll.u32 %v1902, 16
      %v1904 = vadd.s32 %v1903, %v1901
      %v1905 = vsel %vm539, %v1855, 2147483647
      %v1906 = vand.u32 %v1905, 65535
      %v1907 = vshra.s32 %v1905, 16
      %v1908 = vcvt.s32.f32 %v1906
      %v1909 = vcvt.s32.f32 %v1907
      %1910 = vmin.xlane.f32.xlu0 %v1909
      %v1911 = vpop.xlane.xlu0 %1910
      %vm1912 = vcmp.eq.f32.partialorder %v1909, %v1911
      %v1913 = vsel %vm1912, %v1908, inf
      %1914 = vmin.xlane.f32.xlu0 %v1913
      %v1915 = vpop.xlane.xlu0 %1914
      %v1916 = vcvt.f32.s32 %v1915
      %v1917 = vcvt.f32.s32 %v1911
      %v1918 = vshll.u32 %v1917, 16
      %v1919 = vadd.s32 %v1918, %v1916
      %v1920 = vsel %vm539, %v1856, 2147483647
      %v1921 = vand.u32 %v1920, 65535
      %v1922 = vshra.s32 %v1920, 16
      %v1923 = vcvt.s32.f32 %v1921
      %v1924 = vcvt.s32.f32 %v1922
      %1925 = vmin.xlane.f32.xlu0 %v1924
      %v1926 = vpop.xlane.xlu0 %1925
      %vm1927 = vcmp.eq.f32.partialorder %v1924, %v1926
      %v1928 = vsel %vm1927, %v1923, inf
      %1929 = vmin.xlane.f32.xlu0 %v1928
      %v1930 = vpop.xlane.xlu0 %1929
      %v1931 = vcvt.f32.s32 %v1930
      %v1932 = vcvt.f32.s32 %v1926
      %v1933 = vshll.u32 %v1932, 16
      %v1934 = vadd.s32 %v1933, %v1931
      %v1935 = vsel %vm539, %v1857, 2147483647
      %v1936 = vand.u32 %v1935, 65535
      %v1937 = vshra.s32 %v1935, 16
      %v1938 = vcvt.s32.f32 %v1936
      %v1939 = vcvt.s32.f32 %v1937
      %1940 = vmin.xlane.f32.xlu0 %v1939
      %v1941 = vpop.xlane.xlu0 %1940
      %vm1942 = vcmp.eq.f32.partialorder %v1939, %v1941
      %v1943 = vsel %vm1942, %v1938, inf
      %1944 = vmin.xlane.f32.xlu0 %v1943
      %v1945 = vpop.xlane.xlu0 %1944
      %v1946 = vcvt.f32.s32 %v1945
      %v1947 = vcvt.f32.s32 %v1941
      %v1948 = vshll.u32 %v1947, 16
      %v1949 = vadd.s32 %v1948, %v1946
      %v1950 = vsel %vm539, %v1858, 2147483647
      %v1951 = vand.u32 %v1950, 65535
      %v1952 = vshra.s32 %v1950, 16
      %v1953 = vcvt.s32.f32 %v1951
      %v1954 = vcvt.s32.f32 %v1952
      %1955 = vmin.xlane.f32.xlu0 %v1954
      %v1956 = vpop.xlane.xlu0 %1955
      %vm1957 = vcmp.eq.f32.partialorder %v1954, %v1956
      %v1958 = vsel %vm1957, %v1953, inf
      %1959 = vmin.xlane.f32.xlu0 %v1958
      %v1960 = vpop.xlane.xlu0 %1959
      %v1961 = vcvt.f32.s32 %v1960
      %v1962 = vcvt.f32.s32 %v1956
      %v1963 = vshll.u32 %v1962, 16
      %v1964 = vadd.s32 %v1963, %v1961
      %v1965 = vsel %vm539, %v1859, 2147483647
      %v1966 = vand.u32 %v1965, 65535
      %v1967 = vshra.s32 %v1965, 16
      %v1968 = vcvt.s32.f32 %v1966
      %v1969 = vcvt.s32.f32 %v1967
      %1970 = vmin.xlane.f32.xlu0 %v1969
      %v1971 = vpop.xlane.xlu0 %1970
      %vm1972 = vcmp.eq.f32.partialorder %v1969, %v1971
      %v1973 = vsel %vm1972, %v1968, inf
      %1974 = vmin.xlane.f32.xlu0 %v1973
      %v1975 = vpop.xlane.xlu0 %1974
      %v1976 = vcvt.f32.s32 %v1975
      %v1977 = vcvt.f32.s32 %v1971
      %v1978 = vshll.u32 %v1977, 16
      %v1979 = vadd.s32 %v1978, %v1976
      %vm1980 = vcmp.eq.s32.totalorder %v538, %v1874
      %vm1981 = vcmp.eq.s32.totalorder %v538, %v1889
      %vm1982 = vcmp.eq.s32.totalorder %v538, %v1904
      %vm1983 = vcmp.eq.s32.totalorder %v538, %v1919
      %vm1984 = vcmp.eq.s32.totalorder %v538, %v1934
      %vm1985 = vcmp.eq.s32.totalorder %v538, %v1949
      %vm1986 = vcmp.eq.s32.totalorder %v538, %v1964
      %vm1987 = vcmp.eq.s32.totalorder %v538, %v1979
      %v1988 = vsel %vm1980, 1.0, %v1732
      %v1989 = vsel %vm1981, 1.0, %v1733
      %v1990 = vsel %vm1982, 1.0, %v1734
      %v1991 = vsel %vm1983, 1.0, %v1735
      %v1992 = vsel %vm1984, 1.0, %v1736
      %v1993 = vsel %vm1985, 1.0, %v1737
      %v1994 = vsel %vm1986, 1.0, %v1738
      %v1995 = vsel %vm1987, 1.0, %v1739
      %v1996 = vsel %vm1980, 3e+38, %v1740
      %v1997 = vsel %vm1981, 3e+38, %v1741
      %v1998 = vsel %vm1982, 3e+38, %v1742
      %v1999 = vsel %vm1983, 3e+38, %v1743
      %v2000 = vsel %vm1984, 3e+38, %v1744
      %v2001 = vsel %vm1985, 3e+38, %v1745
      %v2002 = vsel %vm1986, 3e+38, %v1746
      %v2003 = vsel %vm1987, 3e+38, %v1747
      %v2004 = vrsqrt.pop %v1822
      %v2005 = vmul.f32 %v1822, %v2004
      %vm2006 = vcmp.eq.f32.partialorder %v1822, inf
      %v2007 = vsel %vm2006, %v1822, %v2005
      %vm2008 = vcmp.eq.f32.partialorder %v1822, 0.0
      %v2009 = vand.u32 %v1822, 2147483648
      %v2010 = vsel %vm2008, %v2009, %v2007
      %v2011 = vrsqrt.pop %v1825
      %v2012 = vmul.f32 %v1825, %v2011
      %vm2013 = vcmp.eq.f32.partialorder %v1825, inf
      %v2014 = vsel %vm2013, %v1825, %v2012
      %vm2015 = vcmp.eq.f32.partialorder %v1825, 0.0
      %v2016 = vand.u32 %v1825, 2147483648
      %v2017 = vsel %vm2015, %v2016, %v2014
      %v2018 = vrsqrt.pop %v1828
      %v2019 = vmul.f32 %v1828, %v2018
      %vm2020 = vcmp.eq.f32.partialorder %v1828, inf
      %v2021 = vsel %vm2020, %v1828, %v2019
      %vm2022 = vcmp.eq.f32.partialorder %v1828, 0.0
      %v2023 = vand.u32 %v1828, 2147483648
      %v2024 = vsel %vm2022, %v2023, %v2021
      %v2025 = vrsqrt.pop %v1831
      %v2026 = vmul.f32 %v1831, %v2025
      %vm2027 = vcmp.eq.f32.partialorder %v1831, inf
      %v2028 = vsel %vm2027, %v1831, %v2026
      %vm2029 = vcmp.eq.f32.partialorder %v1831, 0.0
      %v2030 = vand.u32 %v1831, 2147483648
      %v2031 = vsel %vm2029, %v2030, %v2028
      %v2032 = vrsqrt.pop %v1834
      %v2033 = vmul.f32 %v1834, %v2032
      %vm2034 = vcmp.eq.f32.partialorder %v1834, inf
      %v2035 = vsel %vm2034, %v1834, %v2033
      %vm2036 = vcmp.eq.f32.partialorder %v1834, 0.0
      %v2037 = vand.u32 %v1834, 2147483648
      %v2038 = vsel %vm2036, %v2037, %v2035
      %v2039 = vrsqrt.pop %v1837
      %v2040 = vmul.f32 %v1837, %v2039
      %vm2041 = vcmp.eq.f32.partialorder %v1837, inf
      %v2042 = vsel %vm2041, %v1837, %v2040
      %vm2043 = vcmp.eq.f32.partialorder %v1837, 0.0
      %v2044 = vand.u32 %v1837, 2147483648
      %v2045 = vsel %vm2043, %v2044, %v2042
      %v2046 = vrsqrt.pop %v1840
      %v2047 = vmul.f32 %v1840, %v2046
      %vm2048 = vcmp.eq.f32.partialorder %v1840, inf
      %v2049 = vsel %vm2048, %v1840, %v2047
      %vm2050 = vcmp.eq.f32.partialorder %v1840, 0.0
      %v2051 = vand.u32 %v1840, 2147483648
      %v2052 = vsel %vm2050, %v2051, %v2049
      %v2053 = vrsqrt.pop %v1843
      %v2054 = vmul.f32 %v1843, %v2053
      %vm2055 = vcmp.eq.f32.partialorder %v1843, inf
      %v2056 = vsel %vm2055, %v1843, %v2054
      %vm2057 = vcmp.eq.f32.partialorder %v1843, 0.0
      %v2058 = vand.u32 %v1843, 2147483648
      %v2059 = vsel %vm2057, %v2058, %v2056
      %v2060 = vadd.f32 %v1804, %v2010
      %v2061 = vadd.f32 %v1805, %v2017
      %v2062 = vadd.f32 %v1806, %v2024
      %v2063 = vadd.f32 %v1807, %v2031
      %v2064 = vadd.f32 %v1808, %v2038
      %v2065 = vadd.f32 %v1809, %v2045
      %v2066 = vadd.f32 %v1810, %v2052
      %v2067 = vadd.f32 %v1811, %v2059
      %v2068 = vadd.f32 %v1812, %v1822
      %v2069 = vadd.f32 %v1813, %v1825
      %v2070 = vadd.f32 %v1814, %v1828
      %v2071 = vadd.f32 %v1815, %v1831
      %v2072 = vadd.f32 %v1816, %v1834
      %v2073 = vadd.f32 %v1817, %v1837
      %v2074 = vadd.f32 %v1818, %v1840
      %v2075 = vadd.f32 %v1819, %v1843
      %v2076 = vsel %vm539, %v1996, inf
      %2077 = vmin.xlane.f32.xlu0 %v2076
      %v2078 = vpop.xlane.xlu0 %2077
      %v2079 = vsel %vm539, %v1997, inf
      %2080 = vmin.xlane.f32.xlu0 %v2079
      %v2081 = vpop.xlane.xlu0 %2080
      %v2082 = vsel %vm539, %v1998, inf
      %2083 = vmin.xlane.f32.xlu0 %v2082
      %v2084 = vpop.xlane.xlu0 %2083
      %v2085 = vsel %vm539, %v1999, inf
      %2086 = vmin.xlane.f32.xlu0 %v2085
      %v2087 = vpop.xlane.xlu0 %2086
      %v2088 = vsel %vm539, %v2000, inf
      %2089 = vmin.xlane.f32.xlu0 %v2088
      %v2090 = vpop.xlane.xlu0 %2089
      %v2091 = vsel %vm539, %v2001, inf
      %2092 = vmin.xlane.f32.xlu0 %v2091
      %v2093 = vpop.xlane.xlu0 %2092
      %v2094 = vsel %vm539, %v2002, inf
      %2095 = vmin.xlane.f32.xlu0 %v2094
      %v2096 = vpop.xlane.xlu0 %2095
      %v2097 = vsel %vm539, %v2003, inf
      %2098 = vmin.xlane.f32.xlu0 %v2097
      %v2099 = vpop.xlane.xlu0 %2098
      %vm2100 = vcmp.eq.f32.partialorder %v1996, %v2078
      %vm2101 = vcmp.eq.f32.partialorder %v1997, %v2081
      %vm2102 = vcmp.eq.f32.partialorder %v1998, %v2084
      %vm2103 = vcmp.eq.f32.partialorder %v1999, %v2087
      %vm2104 = vcmp.eq.f32.partialorder %v2000, %v2090
      %vm2105 = vcmp.eq.f32.partialorder %v2001, %v2093
      %vm2106 = vcmp.eq.f32.partialorder %v2002, %v2096
      %vm2107 = vcmp.eq.f32.partialorder %v2003, %v2099
      %v2108 = vsel %vm2100, %v538, 64
      %v2109 = vsel %vm2101, %v538, 64
      %v2110 = vsel %vm2102, %v538, 64
      %v2111 = vsel %vm2103, %v538, 64
      %v2112 = vsel %vm2104, %v538, 64
      %v2113 = vsel %vm2105, %v538, 64
      %v2114 = vsel %vm2106, %v538, 64
      %v2115 = vsel %vm2107, %v538, 64
      %v2116 = vsel %vm539, %v2108, 2147483647
      %v2117 = vand.u32 %v2116, 65535
      %v2118 = vshra.s32 %v2116, 16
      %v2119 = vcvt.s32.f32 %v2117
      %v2120 = vcvt.s32.f32 %v2118
      %2121 = vmin.xlane.f32.xlu0 %v2120
      %v2122 = vpop.xlane.xlu0 %2121
      %vm2123 = vcmp.eq.f32.partialorder %v2120, %v2122
      %v2124 = vsel %vm2123, %v2119, inf
      %2125 = vmin.xlane.f32.xlu0 %v2124
      %v2126 = vpop.xlane.xlu0 %2125
      %v2127 = vcvt.f32.s32 %v2126
      %v2128 = vcvt.f32.s32 %v2122
      %v2129 = vshll.u32 %v2128, 16
      %v2130 = vadd.s32 %v2129, %v2127
      %v2131 = vsel %vm539, %v2109, 2147483647
      %v2132 = vand.u32 %v2131, 65535
      %v2133 = vshra.s32 %v2131, 16
      %v2134 = vcvt.s32.f32 %v2132
      %v2135 = vcvt.s32.f32 %v2133
      %2136 = vmin.xlane.f32.xlu0 %v2135
      %v2137 = vpop.xlane.xlu0 %2136
      %vm2138 = vcmp.eq.f32.partialorder %v2135, %v2137
      %v2139 = vsel %vm2138, %v2134, inf
      %2140 = vmin.xlane.f32.xlu0 %v2139
      %v2141 = vpop.xlane.xlu0 %2140
      %v2142 = vcvt.f32.s32 %v2141
      %v2143 = vcvt.f32.s32 %v2137
      %v2144 = vshll.u32 %v2143, 16
      %v2145 = vadd.s32 %v2144, %v2142
      %v2146 = vsel %vm539, %v2110, 2147483647
      %v2147 = vand.u32 %v2146, 65535
      %v2148 = vshra.s32 %v2146, 16
      %v2149 = vcvt.s32.f32 %v2147
      %v2150 = vcvt.s32.f32 %v2148
      %2151 = vmin.xlane.f32.xlu0 %v2150
      %v2152 = vpop.xlane.xlu0 %2151
      %vm2153 = vcmp.eq.f32.partialorder %v2150, %v2152
      %v2154 = vsel %vm2153, %v2149, inf
      %2155 = vmin.xlane.f32.xlu0 %v2154
      %v2156 = vpop.xlane.xlu0 %2155
      %v2157 = vcvt.f32.s32 %v2156
      %v2158 = vcvt.f32.s32 %v2152
      %v2159 = vshll.u32 %v2158, 16
      %v2160 = vadd.s32 %v2159, %v2157
      %v2161 = vsel %vm539, %v2111, 2147483647
      %v2162 = vand.u32 %v2161, 65535
      %v2163 = vshra.s32 %v2161, 16
      %v2164 = vcvt.s32.f32 %v2162
      %v2165 = vcvt.s32.f32 %v2163
      %2166 = vmin.xlane.f32.xlu0 %v2165
      %v2167 = vpop.xlane.xlu0 %2166
      %vm2168 = vcmp.eq.f32.partialorder %v2165, %v2167
      %v2169 = vsel %vm2168, %v2164, inf
      %2170 = vmin.xlane.f32.xlu0 %v2169
      %v2171 = vpop.xlane.xlu0 %2170
      %v2172 = vcvt.f32.s32 %v2171
      %v2173 = vcvt.f32.s32 %v2167
      %v2174 = vshll.u32 %v2173, 16
      %v2175 = vadd.s32 %v2174, %v2172
      %v2176 = vsel %vm539, %v2112, 2147483647
      %v2177 = vand.u32 %v2176, 65535
      %v2178 = vshra.s32 %v2176, 16
      %v2179 = vcvt.s32.f32 %v2177
      %v2180 = vcvt.s32.f32 %v2178
      %2181 = vmin.xlane.f32.xlu0 %v2180
      %v2182 = vpop.xlane.xlu0 %2181
      %vm2183 = vcmp.eq.f32.partialorder %v2180, %v2182
      %v2184 = vsel %vm2183, %v2179, inf
      %2185 = vmin.xlane.f32.xlu0 %v2184
      %v2186 = vpop.xlane.xlu0 %2185
      %v2187 = vcvt.f32.s32 %v2186
      %v2188 = vcvt.f32.s32 %v2182
      %v2189 = vshll.u32 %v2188, 16
      %v2190 = vadd.s32 %v2189, %v2187
      %v2191 = vsel %vm539, %v2113, 2147483647
      %v2192 = vand.u32 %v2191, 65535
      %v2193 = vshra.s32 %v2191, 16
      %v2194 = vcvt.s32.f32 %v2192
      %v2195 = vcvt.s32.f32 %v2193
      %2196 = vmin.xlane.f32.xlu0 %v2195
      %v2197 = vpop.xlane.xlu0 %2196
      %vm2198 = vcmp.eq.f32.partialorder %v2195, %v2197
      %v2199 = vsel %vm2198, %v2194, inf
      %2200 = vmin.xlane.f32.xlu0 %v2199
      %v2201 = vpop.xlane.xlu0 %2200
      %v2202 = vcvt.f32.s32 %v2201
      %v2203 = vcvt.f32.s32 %v2197
      %v2204 = vshll.u32 %v2203, 16
      %v2205 = vadd.s32 %v2204, %v2202
      %v2206 = vsel %vm539, %v2114, 2147483647
      %v2207 = vand.u32 %v2206, 65535
      %v2208 = vshra.s32 %v2206, 16
      %v2209 = vcvt.s32.f32 %v2207
      %v2210 = vcvt.s32.f32 %v2208
      %2211 = vmin.xlane.f32.xlu0 %v2210
      %v2212 = vpop.xlane.xlu0 %2211
      %vm2213 = vcmp.eq.f32.partialorder %v2210, %v2212
      %v2214 = vsel %vm2213, %v2209, inf
      %2215 = vmin.xlane.f32.xlu0 %v2214
      %v2216 = vpop.xlane.xlu0 %2215
      %v2217 = vcvt.f32.s32 %v2216
      %v2218 = vcvt.f32.s32 %v2212
      %v2219 = vshll.u32 %v2218, 16
      %v2220 = vadd.s32 %v2219, %v2217
      %v2221 = vsel %vm539, %v2115, 2147483647
      %v2222 = vand.u32 %v2221, 65535
      %v2223 = vshra.s32 %v2221, 16
      %v2224 = vcvt.s32.f32 %v2222
      %v2225 = vcvt.s32.f32 %v2223
      %2226 = vmin.xlane.f32.xlu0 %v2225
      %v2227 = vpop.xlane.xlu0 %2226
      %vm2228 = vcmp.eq.f32.partialorder %v2225, %v2227
      %v2229 = vsel %vm2228, %v2224, inf
      %2230 = vmin.xlane.f32.xlu0 %v2229
      %v2231 = vpop.xlane.xlu0 %2230
      %v2232 = vcvt.f32.s32 %v2231
      %v2233 = vcvt.f32.s32 %v2227
      %v2234 = vshll.u32 %v2233, 16
      %v2235 = vadd.s32 %v2234, %v2232
      %vm2236 = vcmp.eq.s32.totalorder %v538, %v2130
      %vm2237 = vcmp.eq.s32.totalorder %v538, %v2145
      %vm2238 = vcmp.eq.s32.totalorder %v538, %v2160
      %vm2239 = vcmp.eq.s32.totalorder %v538, %v2175
      %vm2240 = vcmp.eq.s32.totalorder %v538, %v2190
      %vm2241 = vcmp.eq.s32.totalorder %v538, %v2205
      %vm2242 = vcmp.eq.s32.totalorder %v538, %v2220
      %vm2243 = vcmp.eq.s32.totalorder %v538, %v2235
      %v2244 = vsel %vm2236, 1.0, %v1988
      %v2245 = vsel %vm2237, 1.0, %v1989
      %v2246 = vsel %vm2238, 1.0, %v1990
      %v2247 = vsel %vm2239, 1.0, %v1991
      %v2248 = vsel %vm2240, 1.0, %v1992
      %v2249 = vsel %vm2241, 1.0, %v1993
      %v2250 = vsel %vm2242, 1.0, %v1994
      %v2251 = vsel %vm2243, 1.0, %v1995
      %v2252 = vsel %vm2236, 3e+38, %v1996
      %v2253 = vsel %vm2237, 3e+38, %v1997
      %v2254 = vsel %vm2238, 3e+38, %v1998
      %v2255 = vsel %vm2239, 3e+38, %v1999
      %v2256 = vsel %vm2240, 3e+38, %v2000
      %v2257 = vsel %vm2241, 3e+38, %v2001
      %v2258 = vsel %vm2242, 3e+38, %v2002
      %v2259 = vsel %vm2243, 3e+38, %v2003
      %v2260 = vrsqrt.pop %v2078
      %v2261 = vmul.f32 %v2078, %v2260
      %vm2262 = vcmp.eq.f32.partialorder %v2078, inf
      %v2263 = vsel %vm2262, %v2078, %v2261
      %vm2264 = vcmp.eq.f32.partialorder %v2078, 0.0
      %v2265 = vand.u32 %v2078, 2147483648
      %v2266 = vsel %vm2264, %v2265, %v2263
      %v2267 = vrsqrt.pop %v2081
      %v2268 = vmul.f32 %v2081, %v2267
      %vm2269 = vcmp.eq.f32.partialorder %v2081, inf
      %v2270 = vsel %vm2269, %v2081, %v2268
      %vm2271 = vcmp.eq.f32.partialorder %v2081, 0.0
      %v2272 = vand.u32 %v2081, 2147483648
      %v2273 = vsel %vm2271, %v2272, %v2270
      %v2274 = vrsqrt.pop %v2084
      %v2275 = vmul.f32 %v2084, %v2274
      %vm2276 = vcmp.eq.f32.partialorder %v2084, inf
      %v2277 = vsel %vm2276, %v2084, %v2275
      %vm2278 = vcmp.eq.f32.partialorder %v2084, 0.0
      %v2279 = vand.u32 %v2084, 2147483648
      %v2280 = vsel %vm2278, %v2279, %v2277
      %v2281 = vrsqrt.pop %v2087
      %v2282 = vmul.f32 %v2087, %v2281
      %vm2283 = vcmp.eq.f32.partialorder %v2087, inf
      %v2284 = vsel %vm2283, %v2087, %v2282
      %vm2285 = vcmp.eq.f32.partialorder %v2087, 0.0
      %v2286 = vand.u32 %v2087, 2147483648
      %v2287 = vsel %vm2285, %v2286, %v2284
      %v2288 = vrsqrt.pop %v2090
      %v2289 = vmul.f32 %v2090, %v2288
      %vm2290 = vcmp.eq.f32.partialorder %v2090, inf
      %v2291 = vsel %vm2290, %v2090, %v2289
      %vm2292 = vcmp.eq.f32.partialorder %v2090, 0.0
      %v2293 = vand.u32 %v2090, 2147483648
      %v2294 = vsel %vm2292, %v2293, %v2291
      %v2295 = vrsqrt.pop %v2093
      %v2296 = vmul.f32 %v2093, %v2295
      %vm2297 = vcmp.eq.f32.partialorder %v2093, inf
      %v2298 = vsel %vm2297, %v2093, %v2296
      %vm2299 = vcmp.eq.f32.partialorder %v2093, 0.0
      %v2300 = vand.u32 %v2093, 2147483648
      %v2301 = vsel %vm2299, %v2300, %v2298
      %v2302 = vrsqrt.pop %v2096
      %v2303 = vmul.f32 %v2096, %v2302
      %vm2304 = vcmp.eq.f32.partialorder %v2096, inf
      %v2305 = vsel %vm2304, %v2096, %v2303
      %vm2306 = vcmp.eq.f32.partialorder %v2096, 0.0
      %v2307 = vand.u32 %v2096, 2147483648
      %v2308 = vsel %vm2306, %v2307, %v2305
      %v2309 = vrsqrt.pop %v2099
      %v2310 = vmul.f32 %v2099, %v2309
      %vm2311 = vcmp.eq.f32.partialorder %v2099, inf
      %v2312 = vsel %vm2311, %v2099, %v2310
      %vm2313 = vcmp.eq.f32.partialorder %v2099, 0.0
      %v2314 = vand.u32 %v2099, 2147483648
      %v2315 = vsel %vm2313, %v2314, %v2312
      %v2316 = vadd.f32 %v2060, %v2266
      %v2317 = vadd.f32 %v2061, %v2273
      %v2318 = vadd.f32 %v2062, %v2280
      %v2319 = vadd.f32 %v2063, %v2287
      %v2320 = vadd.f32 %v2064, %v2294
      %v2321 = vadd.f32 %v2065, %v2301
      %v2322 = vadd.f32 %v2066, %v2308
      %v2323 = vadd.f32 %v2067, %v2315
      %v2324 = vadd.f32 %v2068, %v2078
      %v2325 = vadd.f32 %v2069, %v2081
      %v2326 = vadd.f32 %v2070, %v2084
      %v2327 = vadd.f32 %v2071, %v2087
      %v2328 = vadd.f32 %v2072, %v2090
      %v2329 = vadd.f32 %v2073, %v2093
      %v2330 = vadd.f32 %v2074, %v2096
      %v2331 = vadd.f32 %v2075, %v2099
      %v2332 = vsel %vm539, %v2252, inf
      %2333 = vmin.xlane.f32.xlu0 %v2332
      %v2334 = vpop.xlane.xlu0 %2333
      %v2335 = vsel %vm539, %v2253, inf
      %2336 = vmin.xlane.f32.xlu0 %v2335
      %v2337 = vpop.xlane.xlu0 %2336
      %v2338 = vsel %vm539, %v2254, inf
      %2339 = vmin.xlane.f32.xlu0 %v2338
      %v2340 = vpop.xlane.xlu0 %2339
      %v2341 = vsel %vm539, %v2255, inf
      %2342 = vmin.xlane.f32.xlu0 %v2341
      %v2343 = vpop.xlane.xlu0 %2342
      %v2344 = vsel %vm539, %v2256, inf
      %2345 = vmin.xlane.f32.xlu0 %v2344
      %v2346 = vpop.xlane.xlu0 %2345
      %v2347 = vsel %vm539, %v2257, inf
      %2348 = vmin.xlane.f32.xlu0 %v2347
      %v2349 = vpop.xlane.xlu0 %2348
      %v2350 = vsel %vm539, %v2258, inf
      %2351 = vmin.xlane.f32.xlu0 %v2350
      %v2352 = vpop.xlane.xlu0 %2351
      %v2353 = vsel %vm539, %v2259, inf
      %2354 = vmin.xlane.f32.xlu0 %v2353
      %v2355 = vpop.xlane.xlu0 %2354
      %vm2356 = vcmp.eq.f32.partialorder %v2252, %v2334
      %vm2357 = vcmp.eq.f32.partialorder %v2253, %v2337
      %vm2358 = vcmp.eq.f32.partialorder %v2254, %v2340
      %vm2359 = vcmp.eq.f32.partialorder %v2255, %v2343
      %vm2360 = vcmp.eq.f32.partialorder %v2256, %v2346
      %vm2361 = vcmp.eq.f32.partialorder %v2257, %v2349
      %vm2362 = vcmp.eq.f32.partialorder %v2258, %v2352
      %vm2363 = vcmp.eq.f32.partialorder %v2259, %v2355
      %v2364 = vsel %vm2356, %v538, 64
      %v2365 = vsel %vm2357, %v538, 64
      %v2366 = vsel %vm2358, %v538, 64
      %v2367 = vsel %vm2359, %v538, 64
      %v2368 = vsel %vm2360, %v538, 64
      %v2369 = vsel %vm2361, %v538, 64
      %v2370 = vsel %vm2362, %v538, 64
      %v2371 = vsel %vm2363, %v538, 64
      %v2372 = vsel %vm539, %v2364, 2147483647
      %v2373 = vand.u32 %v2372, 65535
      %v2374 = vshra.s32 %v2372, 16
      %v2375 = vcvt.s32.f32 %v2373
      %v2376 = vcvt.s32.f32 %v2374
      %2377 = vmin.xlane.f32.xlu0 %v2376
      %v2378 = vpop.xlane.xlu0 %2377
      %vm2379 = vcmp.eq.f32.partialorder %v2376, %v2378
      %v2380 = vsel %vm2379, %v2375, inf
      %2381 = vmin.xlane.f32.xlu0 %v2380
      %v2382 = vpop.xlane.xlu0 %2381
      %v2383 = vcvt.f32.s32 %v2382
      %v2384 = vcvt.f32.s32 %v2378
      %v2385 = vshll.u32 %v2384, 16
      %v2386 = vadd.s32 %v2385, %v2383
      %v2387 = vsel %vm539, %v2365, 2147483647
      %v2388 = vand.u32 %v2387, 65535
      %v2389 = vshra.s32 %v2387, 16
      %v2390 = vcvt.s32.f32 %v2388
      %v2391 = vcvt.s32.f32 %v2389
      %2392 = vmin.xlane.f32.xlu0 %v2391
      %v2393 = vpop.xlane.xlu0 %2392
      %vm2394 = vcmp.eq.f32.partialorder %v2391, %v2393
      %v2395 = vsel %vm2394, %v2390, inf
      %2396 = vmin.xlane.f32.xlu0 %v2395
      %v2397 = vpop.xlane.xlu0 %2396
      %v2398 = vcvt.f32.s32 %v2397
      %v2399 = vcvt.f32.s32 %v2393
      %v2400 = vshll.u32 %v2399, 16
      %v2401 = vadd.s32 %v2400, %v2398
      %v2402 = vsel %vm539, %v2366, 2147483647
      %v2403 = vand.u32 %v2402, 65535
      %v2404 = vshra.s32 %v2402, 16
      %v2405 = vcvt.s32.f32 %v2403
      %v2406 = vcvt.s32.f32 %v2404
      %2407 = vmin.xlane.f32.xlu0 %v2406
      %v2408 = vpop.xlane.xlu0 %2407
      %vm2409 = vcmp.eq.f32.partialorder %v2406, %v2408
      %v2410 = vsel %vm2409, %v2405, inf
      %2411 = vmin.xlane.f32.xlu0 %v2410
      %v2412 = vpop.xlane.xlu0 %2411
      %v2413 = vcvt.f32.s32 %v2412
      %v2414 = vcvt.f32.s32 %v2408
      %v2415 = vshll.u32 %v2414, 16
      %v2416 = vadd.s32 %v2415, %v2413
      %v2417 = vsel %vm539, %v2367, 2147483647
      %v2418 = vand.u32 %v2417, 65535
      %v2419 = vshra.s32 %v2417, 16
      %v2420 = vcvt.s32.f32 %v2418
      %v2421 = vcvt.s32.f32 %v2419
      %2422 = vmin.xlane.f32.xlu0 %v2421
      %v2423 = vpop.xlane.xlu0 %2422
      %vm2424 = vcmp.eq.f32.partialorder %v2421, %v2423
      %v2425 = vsel %vm2424, %v2420, inf
      %2426 = vmin.xlane.f32.xlu0 %v2425
      %v2427 = vpop.xlane.xlu0 %2426
      %v2428 = vcvt.f32.s32 %v2427
      %v2429 = vcvt.f32.s32 %v2423
      %v2430 = vshll.u32 %v2429, 16
      %v2431 = vadd.s32 %v2430, %v2428
      %v2432 = vsel %vm539, %v2368, 2147483647
      %v2433 = vand.u32 %v2432, 65535
      %v2434 = vshra.s32 %v2432, 16
      %v2435 = vcvt.s32.f32 %v2433
      %v2436 = vcvt.s32.f32 %v2434
      %2437 = vmin.xlane.f32.xlu0 %v2436
      %v2438 = vpop.xlane.xlu0 %2437
      %vm2439 = vcmp.eq.f32.partialorder %v2436, %v2438
      %v2440 = vsel %vm2439, %v2435, inf
      %2441 = vmin.xlane.f32.xlu0 %v2440
      %v2442 = vpop.xlane.xlu0 %2441
      %v2443 = vcvt.f32.s32 %v2442
      %v2444 = vcvt.f32.s32 %v2438
      %v2445 = vshll.u32 %v2444, 16
      %v2446 = vadd.s32 %v2445, %v2443
      %v2447 = vsel %vm539, %v2369, 2147483647
      %v2448 = vand.u32 %v2447, 65535
      %v2449 = vshra.s32 %v2447, 16
      %v2450 = vcvt.s32.f32 %v2448
      %v2451 = vcvt.s32.f32 %v2449
      %2452 = vmin.xlane.f32.xlu0 %v2451
      %v2453 = vpop.xlane.xlu0 %2452
      %vm2454 = vcmp.eq.f32.partialorder %v2451, %v2453
      %v2455 = vsel %vm2454, %v2450, inf
      %2456 = vmin.xlane.f32.xlu0 %v2455
      %v2457 = vpop.xlane.xlu0 %2456
      %v2458 = vcvt.f32.s32 %v2457
      %v2459 = vcvt.f32.s32 %v2453
      %v2460 = vshll.u32 %v2459, 16
      %v2461 = vadd.s32 %v2460, %v2458
      %v2462 = vsel %vm539, %v2370, 2147483647
      %v2463 = vand.u32 %v2462, 65535
      %v2464 = vshra.s32 %v2462, 16
      %v2465 = vcvt.s32.f32 %v2463
      %v2466 = vcvt.s32.f32 %v2464
      %2467 = vmin.xlane.f32.xlu0 %v2466
      %v2468 = vpop.xlane.xlu0 %2467
      %vm2469 = vcmp.eq.f32.partialorder %v2466, %v2468
      %v2470 = vsel %vm2469, %v2465, inf
      %2471 = vmin.xlane.f32.xlu0 %v2470
      %v2472 = vpop.xlane.xlu0 %2471
      %v2473 = vcvt.f32.s32 %v2472
      %v2474 = vcvt.f32.s32 %v2468
      %v2475 = vshll.u32 %v2474, 16
      %v2476 = vadd.s32 %v2475, %v2473
      %v2477 = vsel %vm539, %v2371, 2147483647
      %v2478 = vand.u32 %v2477, 65535
      %v2479 = vshra.s32 %v2477, 16
      %v2480 = vcvt.s32.f32 %v2478
      %v2481 = vcvt.s32.f32 %v2479
      %2482 = vmin.xlane.f32.xlu0 %v2481
      %v2483 = vpop.xlane.xlu0 %2482
      %vm2484 = vcmp.eq.f32.partialorder %v2481, %v2483
      %v2485 = vsel %vm2484, %v2480, inf
      %2486 = vmin.xlane.f32.xlu0 %v2485
      %v2487 = vpop.xlane.xlu0 %2486
      %v2488 = vcvt.f32.s32 %v2487
      %v2489 = vcvt.f32.s32 %v2483
      %v2490 = vshll.u32 %v2489, 16
      %v2491 = vadd.s32 %v2490, %v2488
      %vm2492 = vcmp.eq.s32.totalorder %v538, %v2386
      %vm2493 = vcmp.eq.s32.totalorder %v538, %v2401
      %vm2494 = vcmp.eq.s32.totalorder %v538, %v2416
      %vm2495 = vcmp.eq.s32.totalorder %v538, %v2431
      %vm2496 = vcmp.eq.s32.totalorder %v538, %v2446
      %vm2497 = vcmp.eq.s32.totalorder %v538, %v2461
      %vm2498 = vcmp.eq.s32.totalorder %v538, %v2476
      %vm2499 = vcmp.eq.s32.totalorder %v538, %v2491
      %v2500 = vsel %vm2492, 1.0, %v2244
      %v2501 = vsel %vm2493, 1.0, %v2245
      %v2502 = vsel %vm2494, 1.0, %v2246
      %v2503 = vsel %vm2495, 1.0, %v2247
      %v2504 = vsel %vm2496, 1.0, %v2248
      %v2505 = vsel %vm2497, 1.0, %v2249
      %v2506 = vsel %vm2498, 1.0, %v2250
      %v2507 = vsel %vm2499, 1.0, %v2251
      %v2508 = vrsqrt.pop %v2334
      %v2509 = vmul.f32 %v2334, %v2508
      %vm2510 = vcmp.eq.f32.partialorder %v2334, inf
      %v2511 = vsel %vm2510, %v2334, %v2509
      %vm2512 = vcmp.eq.f32.partialorder %v2334, 0.0
      %v2513 = vand.u32 %v2334, 2147483648
      %v2514 = vsel %vm2512, %v2513, %v2511
      %v2515 = vrsqrt.pop %v2337
      %v2516 = vmul.f32 %v2337, %v2515
      %vm2517 = vcmp.eq.f32.partialorder %v2337, inf
      %v2518 = vsel %vm2517, %v2337, %v2516
      %vm2519 = vcmp.eq.f32.partialorder %v2337, 0.0
      %v2520 = vand.u32 %v2337, 2147483648
      %v2521 = vsel %vm2519, %v2520, %v2518
      %v2522 = vrsqrt.pop %v2340
      %v2523 = vmul.f32 %v2340, %v2522
      %vm2524 = vcmp.eq.f32.partialorder %v2340, inf
      %v2525 = vsel %vm2524, %v2340, %v2523
      %vm2526 = vcmp.eq.f32.partialorder %v2340, 0.0
      %v2527 = vand.u32 %v2340, 2147483648
      %v2528 = vsel %vm2526, %v2527, %v2525
      %v2529 = vrsqrt.pop %v2343
      %v2530 = vmul.f32 %v2343, %v2529
      %vm2531 = vcmp.eq.f32.partialorder %v2343, inf
      %v2532 = vsel %vm2531, %v2343, %v2530
      %vm2533 = vcmp.eq.f32.partialorder %v2343, 0.0
      %v2534 = vand.u32 %v2343, 2147483648
      %v2535 = vsel %vm2533, %v2534, %v2532
      %v2536 = vrsqrt.pop %v2346
      %v2537 = vmul.f32 %v2346, %v2536
      %vm2538 = vcmp.eq.f32.partialorder %v2346, inf
      %v2539 = vsel %vm2538, %v2346, %v2537
      %vm2540 = vcmp.eq.f32.partialorder %v2346, 0.0
      %v2541 = vand.u32 %v2346, 2147483648
      %v2542 = vsel %vm2540, %v2541, %v2539
      %v2543 = vrsqrt.pop %v2349
      %v2544 = vmul.f32 %v2349, %v2543
      %vm2545 = vcmp.eq.f32.partialorder %v2349, inf
      %v2546 = vsel %vm2545, %v2349, %v2544
      %vm2547 = vcmp.eq.f32.partialorder %v2349, 0.0
      %v2548 = vand.u32 %v2349, 2147483648
      %v2549 = vsel %vm2547, %v2548, %v2546
      %v2550 = vrsqrt.pop %v2352
      %v2551 = vmul.f32 %v2352, %v2550
      %vm2552 = vcmp.eq.f32.partialorder %v2352, inf
      %v2553 = vsel %vm2552, %v2352, %v2551
      %vm2554 = vcmp.eq.f32.partialorder %v2352, 0.0
      %v2555 = vand.u32 %v2352, 2147483648
      %v2556 = vsel %vm2554, %v2555, %v2553
      %v2557 = vrsqrt.pop %v2355
      %v2558 = vmul.f32 %v2355, %v2557
      %vm2559 = vcmp.eq.f32.partialorder %v2355, inf
      %v2560 = vsel %vm2559, %v2355, %v2558
      %vm2561 = vcmp.eq.f32.partialorder %v2355, 0.0
      %v2562 = vand.u32 %v2355, 2147483648
      %v2563 = vsel %vm2561, %v2562, %v2560
      %v2564 = vadd.f32 %v2316, %v2514
      %v2565 = vadd.f32 %v2317, %v2521
      %v2566 = vadd.f32 %v2318, %v2528
      %v2567 = vadd.f32 %v2319, %v2535
      %v2568 = vadd.f32 %v2320, %v2542
      %v2569 = vadd.f32 %v2321, %v2549
      %v2570 = vadd.f32 %v2322, %v2556
      %v2571 = vadd.f32 %v2323, %v2563
      %v2572 = vadd.f32 %v2324, %v2334
      %v2573 = vadd.f32 %v2325, %v2337
      %v2574 = vadd.f32 %v2326, %v2340
      %v2575 = vadd.f32 %v2327, %v2343
      %v2576 = vadd.f32 %v2328, %v2346
      %v2577 = vadd.f32 %v2329, %v2349
      %v2578 = vadd.f32 %v2330, %v2352
      %v2579 = vadd.f32 %v2331, %v2355
      %v2580 = vmul.f32 %v2564, %v2564
      %v2581 = vmul.f32 %v2565, %v2565
      %v2582 = vmul.f32 %v2566, %v2566
      %v2583 = vmul.f32 %v2567, %v2567
      %v2584 = vmul.f32 %v2568, %v2568
      %v2585 = vmul.f32 %v2569, %v2569
      %v2586 = vmul.f32 %v2570, %v2570
      %v2587 = vmul.f32 %v2571, %v2571
      %v2588 = vmul.f32 %v2580, 0.125
      %v2589 = vmul.f32 %v2581, 0.125
      %v2590 = vmul.f32 %v2582, 0.125
      %v2591 = vmul.f32 %v2583, 0.125
      %v2592 = vmul.f32 %v2584, 0.125
      %v2593 = vmul.f32 %v2585, 0.125
      %v2594 = vmul.f32 %v2586, 0.125
      %v2595 = vmul.f32 %v2587, 0.125
      %v2596 = vsub.f32 %v2572, %v2588
      %v2597 = vsub.f32 %v2573, %v2589
      %v2598 = vsub.f32 %v2574, %v2590
      %v2599 = vsub.f32 %v2575, %v2591
      %v2600 = vsub.f32 %v2576, %v2592
      %v2601 = vsub.f32 %v2577, %v2593
      %v2602 = vsub.f32 %v2578, %v2594
      %v2603 = vsub.f32 %v2579, %v2595
      %v2604 = vmul.f32 %v2596, 0.14285715
      %v2605 = vmul.f32 %v2597, 0.14285715
      %v2606 = vmul.f32 %v2598, 0.14285715
      %v2607 = vmul.f32 %v2599, 0.14285715
      %v2608 = vmul.f32 %v2600, 0.14285715
      %v2609 = vmul.f32 %v2601, 0.14285715
      %v2610 = vmul.f32 %v2602, 0.14285715
      %v2611 = vmul.f32 %v2603, 0.14285715
      %v2612 = vmax.f32 %v2604, 0.0
      %v2613 = vmax.f32 %v2605, 0.0
      %v2614 = vmax.f32 %v2606, 0.0
      %v2615 = vmax.f32 %v2607, 0.0
      %v2616 = vmax.f32 %v2608, 0.0
      %v2617 = vmax.f32 %v2609, 0.0
      %v2618 = vmax.f32 %v2610, 0.0
      %v2619 = vmax.f32 %v2611, 0.0
      %v2620 = vrsqrt.pop %v2612
      %v2621 = vmul.f32 %v2612, %v2620
      %vm2622 = vcmp.eq.f32.partialorder %v2612, inf
      %v2623 = vsel %vm2622, %v2612, %v2621
      %vm2624 = vcmp.eq.f32.partialorder %v2612, 0.0
      %v2625 = vand.u32 %v2612, 2147483648
      %v2626 = vsel %vm2624, %v2625, %v2623
      %v2627 = vrsqrt.pop %v2613
      %v2628 = vmul.f32 %v2613, %v2627
      %vm2629 = vcmp.eq.f32.partialorder %v2613, inf
      %v2630 = vsel %vm2629, %v2613, %v2628
      %vm2631 = vcmp.eq.f32.partialorder %v2613, 0.0
      %v2632 = vand.u32 %v2613, 2147483648
      %v2633 = vsel %vm2631, %v2632, %v2630
      %v2634 = vrsqrt.pop %v2614
      %v2635 = vmul.f32 %v2614, %v2634
      %vm2636 = vcmp.eq.f32.partialorder %v2614, inf
      %v2637 = vsel %vm2636, %v2614, %v2635
      %vm2638 = vcmp.eq.f32.partialorder %v2614, 0.0
      %v2639 = vand.u32 %v2614, 2147483648
      %v2640 = vsel %vm2638, %v2639, %v2637
      %v2641 = vrsqrt.pop %v2615
      %v2642 = vmul.f32 %v2615, %v2641
      %vm2643 = vcmp.eq.f32.partialorder %v2615, inf
      %v2644 = vsel %vm2643, %v2615, %v2642
      %vm2645 = vcmp.eq.f32.partialorder %v2615, 0.0
      %v2646 = vand.u32 %v2615, 2147483648
      %v2647 = vsel %vm2645, %v2646, %v2644
      %v2648 = vrsqrt.pop %v2616
      %v2649 = vmul.f32 %v2616, %v2648
      %vm2650 = vcmp.eq.f32.partialorder %v2616, inf
      %v2651 = vsel %vm2650, %v2616, %v2649
      %vm2652 = vcmp.eq.f32.partialorder %v2616, 0.0
      %v2653 = vand.u32 %v2616, 2147483648
      %v2654 = vsel %vm2652, %v2653, %v2651
      %v2655 = vrsqrt.pop %v2617
      %v2656 = vmul.f32 %v2617, %v2655
      %vm2657 = vcmp.eq.f32.partialorder %v2617, inf
      %v2658 = vsel %vm2657, %v2617, %v2656
      %vm2659 = vcmp.eq.f32.partialorder %v2617, 0.0
      %v2660 = vand.u32 %v2617, 2147483648
      %v2661 = vsel %vm2659, %v2660, %v2658
      %v2662 = vrsqrt.pop %v2618
      %v2663 = vmul.f32 %v2618, %v2662
      %vm2664 = vcmp.eq.f32.partialorder %v2618, inf
      %v2665 = vsel %vm2664, %v2618, %v2663
      %vm2666 = vcmp.eq.f32.partialorder %v2618, 0.0
      %v2667 = vand.u32 %v2618, 2147483648
      %v2668 = vsel %vm2666, %v2667, %v2665
      %v2669 = vrsqrt.pop %v2619
      %v2670 = vmul.f32 %v2619, %v2669
      %vm2671 = vcmp.eq.f32.partialorder %v2619, inf
      %v2672 = vsel %vm2671, %v2619, %v2670
      %vm2673 = vcmp.eq.f32.partialorder %v2619, 0.0
      %v2674 = vand.u32 %v2619, 2147483648
      %v2675 = vsel %vm2673, %v2674, %v2672
      %v2676 = vsub.f32 %v2626, 0.2
      %v2677 = vsub.f32 %v2633, 0.2
      %v2678 = vsub.f32 %v2640, 0.2
      %v2679 = vsub.f32 %v2647, 0.2
      %v2680 = vsub.f32 %v2654, 0.2
      %v2681 = vsub.f32 %v2661, 0.2
      %v2682 = vsub.f32 %v2668, 0.2
      %v2683 = vsub.f32 %v2675, 0.2
      %v2684 = vmul.f32 %v2676, 5.0
      %v2685 = vmul.f32 %v2677, 5.0
      %v2686 = vmul.f32 %v2678, 5.0
      %v2687 = vmul.f32 %v2679, 5.0
      %v2688 = vmul.f32 %v2680, 5.0
      %v2689 = vmul.f32 %v2681, 5.0
      %v2690 = vmul.f32 %v2682, 5.0
      %v2691 = vmul.f32 %v2683, 5.0
      %v2692 = vxor.u32 %v2684, 2147483648
      %v2693 = vxor.u32 %v2685, 2147483648
      %v2694 = vxor.u32 %v2686, 2147483648
      %v2695 = vxor.u32 %v2687, 2147483648
      %v2696 = vxor.u32 %v2688, 2147483648
      %v2697 = vxor.u32 %v2689, 2147483648
      %v2698 = vxor.u32 %v2690, 2147483648
      %v2699 = vxor.u32 %v2691, 2147483648
      %v2700 = vmul.f32 %v2692, 1.442695
      %v2701 = vpow.pop %v2700
      %v2702 = vmul.f32 %v2693, 1.442695
      %v2703 = vpow.pop %v2702
      %v2704 = vmul.f32 %v2694, 1.442695
      %v2705 = vpow.pop %v2704
      %v2706 = vmul.f32 %v2695, 1.442695
      %v2707 = vpow.pop %v2706
      %v2708 = vmul.f32 %v2696, 1.442695
      %v2709 = vpow.pop %v2708
      %v2710 = vmul.f32 %v2697, 1.442695
      %v2711 = vpow.pop %v2710
      %v2712 = vmul.f32 %v2698, 1.442695
      %v2713 = vpow.pop %v2712
      %v2714 = vmul.f32 %v2699, 1.442695
      %v2715 = vpow.pop %v2714
      %v2716 = vadd.f32 %v2701, 1.0
      %v2717 = vadd.f32 %v2703, 1.0
      %v2718 = vadd.f32 %v2705, 1.0
      %v2719 = vadd.f32 %v2707, 1.0
      %v2720 = vadd.f32 %v2709, 1.0
      %v2721 = vadd.f32 %v2711, 1.0
      %v2722 = vadd.f32 %v2713, 1.0
      %v2723 = vadd.f32 %v2715, 1.0
      %v2724 = vrcp.pop %v2716
      %v2725 = vmul.f32 1.0, %v2724
      %v2726 = vrcp.pop %v2717
      %v2727 = vmul.f32 1.0, %v2726
      %v2728 = vrcp.pop %v2718
      %v2729 = vmul.f32 1.0, %v2728
      %v2730 = vrcp.pop %v2719
      %v2731 = vmul.f32 1.0, %v2730
      %v2732 = vrcp.pop %v2720
      %v2733 = vmul.f32 1.0, %v2732
      %v2734 = vrcp.pop %v2721
      %v2735 = vmul.f32 1.0, %v2734
      %v2736 = vrcp.pop %v2722
      %v2737 = vmul.f32 1.0, %v2736
      %v2738 = vrcp.pop %v2723
      %v2739 = vmul.f32 1.0, %v2738
      %v2740 = vmul.f32 %v2725, 0.6
      %v2741 = vmul.f32 %v2727, 0.6
      %v2742 = vmul.f32 %v2729, 0.6
      %v2743 = vmul.f32 %v2731, 0.6
      %v2744 = vmul.f32 %v2733, 0.6
      %v2745 = vmul.f32 %v2735, 0.6
      %v2746 = vmul.f32 %v2737, 0.6
      %v2747 = vmul.f32 %v2739, 0.6
      %v2748 = vpack.c.bf16 %v2501, %v2500
      %v2749 = vpack.c.bf16 %v2503, %v2502
      %v2750 = vpack.c.bf16 %v2505, %v2504
      %v2751 = vpack.c.bf16 %v2507, %v2506
      %v2752 = vpack.c.bf16 %v305, %v304
      %v2753 = vpack.c.bf16 %v307, %v306
      %v2754 = vpack.c.bf16 %v309, %v308
      %v2755 = vpack.c.bf16 %v311, %v310
      %v2757 = vsel %vm539, %v2748, 0
      %v2760 = vsel %vm539, %v2749, 0
      %v2763 = vsel %vm539, %v2750, 0
      %v2766 = vsel %vm539, %v2751, 0
      %2768 = vmatprep.subr.bf16.mxu0 0
      %2769 = vmatpush1.bf16.msra.mxu0 %v2752
      %2770 = vmatprep.subr.bf16.mxu0 0
      %2771 = vmatpush1.bf16.msra.mxu0 %v2753
      %2772 = vmatprep.subr.bf16.mxu0 0
      %2773 = vmatpush1.bf16.msra.mxu0 %v2754
      %2774 = vmatprep.subr.bf16.mxu0 0
      %2775 = vmatpush1.bf16.msra.mxu0 %v2755
      %2776 = vmatprep.subr.bf16.mxu0 0
      %2777 = vmatpush1.bf16.msra.mxu0 0
      %2778 = vmatprep.subr.bf16.mxu0 0
      %2779 = vmatpush1.bf16.msra.mxu0 0
      %2780 = vmatprep.subr.bf16.mxu0 0
      %2781 = vmatpush1.bf16.msra.mxu0 0
      %2782 = vmatprep.subr.bf16.mxu0 0
      %2783 = vmatpush1.bf16.msra.mxu0 0
      %2784 = vmatprep.subr.bf16.mxu0 0
      %2785 = vmatpush1.bf16.msra.mxu0 0
      %2786 = vmatprep.subr.bf16.mxu0 0
      %2787 = vmatpush1.bf16.msra.mxu0 0
      %2788 = vmatprep.subr.bf16.mxu0 0
      %2789 = vmatpush1.bf16.msra.mxu0 0
      %2790 = vmatprep.subr.bf16.mxu0 0
      %2791 = vmatpush1.bf16.msra.mxu0 0
      %2792 = vmatprep.subr.bf16.mxu0 0
      %2793 = vmatpush1.bf16.msra.mxu0 0
      %2794 = vmatprep.subr.bf16.mxu0 0
      %2795 = vmatpush1.bf16.msra.mxu0 0
      %2796 = vmatprep.subr.bf16.mxu0 0
      %2797 = vmatpush1.bf16.msra.mxu0 0
      %2798 = vmatprep.subr.bf16.mxu0 0
      %2799 = vmatpush1.bf16.msra.mxu0 0
      %2800 = vmatprep.mubr.bf16.mxu0 0
      %2801 = vmatmul.mubr.bf16.gmra.mrb[0].mxu0 %v2757
      %v2802 = vpop.f32.mrb[0].mxu0
      %v2803 = vadd.f32 0.0, %v2802
      %v2804 = vpop.f32.mrb[0].mxu0
      %v2805 = vpop.f32.mrb[0].mxu0
      %v2806 = vadd.f32 0.0, %v2805
      %v2807 = vpop.f32.mrb[0].mxu0
      %2808 = vmatprep.mubr.bf16.mxu0 0
      %2809 = vmatmul.mubr.bf16.gmra.mrb[0].mxu0 %v2760
      %v2810 = vpop.f32.mrb[0].mxu0
      %v2811 = vadd.f32 0.0, %v2810
      %v2812 = vpop.f32.mrb[0].mxu0
      %v2813 = vpop.f32.mrb[0].mxu0
      %v2814 = vadd.f32 0.0, %v2813
      %v2815 = vpop.f32.mrb[0].mxu0
      %2816 = vmatprep.mubr.bf16.mxu0 0
      %2817 = vmatmul.mubr.bf16.gmra.mrb[0].mxu0 %v2763
      %v2818 = vpop.f32.mrb[0].mxu0
      %v2819 = vadd.f32 0.0, %v2818
      %v2820 = vpop.f32.mrb[0].mxu0
      %v2821 = vpop.f32.mrb[0].mxu0
      %v2822 = vadd.f32 0.0, %v2821
      %v2823 = vpop.f32.mrb[0].mxu0
      %2824 = vmatprep.mubr.bf16.mxu0 0
      %2825 = vmatmul.mubr.bf16.gmra.mrb[0].mxu0 %v2766
      %v2826 = vpop.f32.mrb[0].mxu0
      %v2827 = vadd.f32 0.0, %v2826
      %v2828 = vpop.f32.mrb[0].mxu0
      %v2829 = vpop.f32.mrb[0].mxu0
      %v2830 = vadd.f32 0.0, %v2829
      %v2831 = vpop.f32.mrb[0].mxu0
      %2832 = vdwg.mxu0
      %v2833 = vmul.f32 %v2803, 0.125
      %v2834 = vmul.f32 %v2806, 0.125
      %v2835 = vmul.f32 %v2811, 0.125
      %v2836 = vmul.f32 %v2814, 0.125
      %v2837 = vmul.f32 %v2819, 0.125
      %v2838 = vmul.f32 %v2822, 0.125
      %v2839 = vmul.f32 %v2827, 0.125
      %v2840 = vmul.f32 %v2830, 0.125
      %v2841 = vsub.f32 %v296, %v2833
      %v2842 = vsub.f32 %v297, %v2834
      %v2843 = vsub.f32 %v298, %v2835
      %v2844 = vsub.f32 %v299, %v2836
      %v2845 = vsub.f32 %v300, %v2837
      %v2846 = vsub.f32 %v301, %v2838
      %v2847 = vsub.f32 %v302, %v2839
      %v2848 = vsub.f32 %v303, %v2840
      %v2849 = vmul.f32 %v2841, %v2841
      %v2850 = vmul.f32 %v2842, %v2842
      %v2851 = vmul.f32 %v2843, %v2843
      %v2852 = vmul.f32 %v2844, %v2844
      %v2853 = vmul.f32 %v2845, %v2845
      %v2854 = vmul.f32 %v2846, %v2846
      %v2855 = vmul.f32 %v2847, %v2847
      %v2856 = vmul.f32 %v2848, %v2848
      %v2857 = vsel %vm321, %v2849, 0.0
      %2858 = vadd.xlane.f32.xlu0 %v2857
      %v2859 = vpop.xlane.xlu0 %2858
      %v2860 = vsel %vm321, %v2850, 0.0
      %2861 = vadd.xlane.f32.xlu0 %v2860
      %v2862 = vpop.xlane.xlu0 %2861
      %v2863 = vsel %vm321, %v2851, 0.0
      %2864 = vadd.xlane.f32.xlu0 %v2863
      %v2865 = vpop.xlane.xlu0 %2864
      %v2866 = vsel %vm321, %v2852, 0.0
      %2867 = vadd.xlane.f32.xlu0 %v2866
      %v2868 = vpop.xlane.xlu0 %2867
      %v2869 = vsel %vm321, %v2853, 0.0
      %2870 = vadd.xlane.f32.xlu0 %v2869
      %v2871 = vpop.xlane.xlu0 %2870
      %v2872 = vsel %vm321, %v2854, 0.0
      %2873 = vadd.xlane.f32.xlu0 %v2872
      %v2874 = vpop.xlane.xlu0 %2873
      %v2875 = vsel %vm321, %v2855, 0.0
      %2876 = vadd.xlane.f32.xlu0 %v2875
      %v2877 = vpop.xlane.xlu0 %2876
      %v2878 = vsel %vm321, %v2856, 0.0
      %2879 = vadd.xlane.f32.xlu0 %v2878
      %v2880 = vpop.xlane.xlu0 %2879
      %v2881 = vrsqrt.pop %v2859
      %v2882 = vmul.f32 %v2859, %v2881
      %vm2883 = vcmp.eq.f32.partialorder %v2859, inf
      %v2884 = vsel %vm2883, %v2859, %v2882
      %vm2885 = vcmp.eq.f32.partialorder %v2859, 0.0
      %v2886 = vand.u32 %v2859, 2147483648
      %v2887 = vsel %vm2885, %v2886, %v2884
      %v2888 = vrsqrt.pop %v2862
      %v2889 = vmul.f32 %v2862, %v2888
      %vm2890 = vcmp.eq.f32.partialorder %v2862, inf
      %v2891 = vsel %vm2890, %v2862, %v2889
      %vm2892 = vcmp.eq.f32.partialorder %v2862, 0.0
      %v2893 = vand.u32 %v2862, 2147483648
      %v2894 = vsel %vm2892, %v2893, %v2891
      %v2895 = vrsqrt.pop %v2865
      %v2896 = vmul.f32 %v2865, %v2895
      %vm2897 = vcmp.eq.f32.partialorder %v2865, inf
      %v2898 = vsel %vm2897, %v2865, %v2896
      %vm2899 = vcmp.eq.f32.partialorder %v2865, 0.0
      %v2900 = vand.u32 %v2865, 2147483648
      %v2901 = vsel %vm2899, %v2900, %v2898
      %v2902 = vrsqrt.pop %v2868
      %v2903 = vmul.f32 %v2868, %v2902
      %vm2904 = vcmp.eq.f32.partialorder %v2868, inf
      %v2905 = vsel %vm2904, %v2868, %v2903
      %vm2906 = vcmp.eq.f32.partialorder %v2868, 0.0
      %v2907 = vand.u32 %v2868, 2147483648
      %v2908 = vsel %vm2906, %v2907, %v2905
      %v2909 = vrsqrt.pop %v2871
      %v2910 = vmul.f32 %v2871, %v2909
      %vm2911 = vcmp.eq.f32.partialorder %v2871, inf
      %v2912 = vsel %vm2911, %v2871, %v2910
      %vm2913 = vcmp.eq.f32.partialorder %v2871, 0.0
      %v2914 = vand.u32 %v2871, 2147483648
      %v2915 = vsel %vm2913, %v2914, %v2912
      %v2916 = vrsqrt.pop %v2874
      %v2917 = vmul.f32 %v2874, %v2916
      %vm2918 = vcmp.eq.f32.partialorder %v2874, inf
      %v2919 = vsel %vm2918, %v2874, %v2917
      %vm2920 = vcmp.eq.f32.partialorder %v2874, 0.0
      %v2921 = vand.u32 %v2874, 2147483648
      %v2922 = vsel %vm2920, %v2921, %v2919
      %v2923 = vrsqrt.pop %v2877
      %v2924 = vmul.f32 %v2877, %v2923
      %vm2925 = vcmp.eq.f32.partialorder %v2877, inf
      %v2926 = vsel %vm2925, %v2877, %v2924
      %vm2927 = vcmp.eq.f32.partialorder %v2877, 0.0
      %v2928 = vand.u32 %v2877, 2147483648
      %v2929 = vsel %vm2927, %v2928, %v2926
      %v2930 = vrsqrt.pop %v2880
      %v2931 = vmul.f32 %v2880, %v2930
      %vm2932 = vcmp.eq.f32.partialorder %v2880, inf
      %v2933 = vsel %vm2932, %v2880, %v2931
      %vm2934 = vcmp.eq.f32.partialorder %v2880, 0.0
      %v2935 = vand.u32 %v2880, 2147483648
      %v2936 = vsel %vm2934, %v2935, %v2933
      %v2937 = vmax.f32 %v2887, 1e-12
      %v2938 = vmax.f32 %v2894, 1e-12
      %v2939 = vmax.f32 %v2901, 1e-12
      %v2940 = vmax.f32 %v2908, 1e-12
      %v2941 = vmax.f32 %v2915, 1e-12
      %v2942 = vmax.f32 %v2922, 1e-12
      %v2943 = vmax.f32 %v2929, 1e-12
      %v2944 = vmax.f32 %v2936, 1e-12
      %v2945 = vrcp.pop %v2937
      %v2946 = vmul.f32 %v2841, %v2945
      %v2947 = vrcp.pop %v2938
      %v2948 = vmul.f32 %v2842, %v2947
      %v2949 = vrcp.pop %v2939
      %v2950 = vmul.f32 %v2843, %v2949
      %v2951 = vrcp.pop %v2940
      %v2952 = vmul.f32 %v2844, %v2951
      %v2953 = vrcp.pop %v2941
      %v2954 = vmul.f32 %v2845, %v2953
      %v2955 = vrcp.pop %v2942
      %v2956 = vmul.f32 %v2846, %v2955
      %v2957 = vrcp.pop %v2943
      %v2958 = vmul.f32 %v2847, %v2957
      %v2959 = vrcp.pop %v2944
      %v2960 = vmul.f32 %v2848, %v2959
      %v2961 = vsel %vm321, %v2946, %v2740
      %v2962 = vsel %vm321, %v2948, %v2741
      %v2963 = vsel %vm321, %v2950, %v2742
      %v2964 = vsel %vm321, %v2952, %v2743
      %v2965 = vsel %vm321, %v2954, %v2744
      %v2966 = vsel %vm321, %v2956, %v2745
      %v2967 = vsel %vm321, %v2958, %v2746
      %v2968 = vsel %vm321, %v2960, %v2747
      %vm2969 = vcmask 31744
      %2970 = vst.msk [vmem:[%s283] sm:$0xff] %vm2969, %v2961
      %2971 = vst.msk [vmem:[%s283 + $0x8] sm:$0xff] %vm2969, %v2962
      %2972 = vst.msk [vmem:[%s283 + $0x10] sm:$0xff] %vm2969, %v2963
      %2973 = vst.msk [vmem:[%s283 + $0x18] sm:$0xff] %vm2969, %v2964
      %2974 = vst.msk [vmem:[%s283 + $0x20] sm:$0xff] %vm2969, %v2965
      %2975 = vst.msk [vmem:[%s283 + $0x28] sm:$0xff] %vm2969, %v2966
      %2976 = vst.msk [vmem:[%s283 + $0x30] sm:$0xff] %vm2969, %v2967
      %2977 = vst.msk [vmem:[%s283 + $0x38] sm:$0xff] %vm2969, %v2968
      %vm2978 = vcmask 7168
      %v2979 = vsel %vm2978, %v594, %v850
      %v2980 = vsel %vm2978, %v609, %v865
      %v2981 = vsel %vm2978, %v624, %v880
      %v2982 = vsel %vm2978, %v639, %v895
      %v2983 = vsel %vm2978, %v654, %v910
      %v2984 = vsel %vm2978, %v669, %v925
      %v2985 = vsel %vm2978, %v684, %v940
      %v2986 = vsel %vm2978, %v699, %v955
      %vm2987 = vcmask 15360
      %v2988 = vsel %vm2987, %v2979, %v1106
      %v2989 = vsel %vm2987, %v2980, %v1121
      %v2990 = vsel %vm2987, %v2981, %v1136
      %v2991 = vsel %vm2987, %v2982, %v1151
      %v2992 = vsel %vm2987, %v2983, %v1166
      %v2993 = vsel %vm2987, %v2984, %v1181
      %v2994 = vsel %vm2987, %v2985, %v1196
      %v2995 = vsel %vm2987, %v2986, %v1211
      %v2996 = vsel %vm321, %v2988, %v1362
      %v2997 = vsel %vm321, %v2989, %v1377
      %v2998 = vsel %vm321, %v2990, %v1392
      %v2999 = vsel %vm321, %v2991, %v1407
      %v3000 = vsel %vm321, %v2992, %v1422
      %v3001 = vsel %vm321, %v2993, %v1437
      %v3002 = vsel %vm321, %v2994, %v1452
      %v3003 = vsel %vm321, %v2995, %v1467
      %v3004 = vsel %vm2969, %v2996, %v1618
      %v3005 = vsel %vm2969, %v2997, %v1633
      %v3006 = vsel %vm2969, %v2998, %v1648
      %v3007 = vsel %vm2969, %v2999, %v1663
      %v3008 = vsel %vm2969, %v3000, %v1678
      %v3009 = vsel %vm2969, %v3001, %v1693
      %v3010 = vsel %vm2969, %v3002, %v1708
      %v3011 = vsel %vm2969, %v3003, %v1723
      %vm3012 = vcmask 39936
      %v3013 = vsel %vm3012, %v3004, %v1874
      %v3014 = vsel %vm3012, %v3005, %v1889
      %v3015 = vsel %vm3012, %v3006, %v1904
      %v3016 = vsel %vm3012, %v3007, %v1919
      %v3017 = vsel %vm3012, %v3008, %v1934
      %v3018 = vsel %vm3012, %v3009, %v1949
      %v3019 = vsel %vm3012, %v3010, %v1964
      %v3020 = vsel %vm3012, %v3011, %v1979
      %vm3021 = vcmask 48128
      %v3022 = vsel %vm3021, %v3013, %v2130
      %v3023 = vsel %vm3021, %v3014, %v2145
      %v3024 = vsel %vm3021, %v3015, %v2160
      %v3025 = vsel %vm3021, %v3016, %v2175
      %v3026 = vsel %vm3021, %v3017, %v2190
      %v3027 = vsel %vm3021, %v3018, %v2205
      %v3028 = vsel %vm3021, %v3019, %v2220
      %v3029 = vsel %vm3021, %v3020, %v2235
      %vm3030 = vcmask 56320
      %v3031 = vsel %vm3030, %v3022, %v2386
      %v3032 = vsel %vm3030, %v3023, %v2401
      %v3033 = vsel %vm3030, %v3024, %v2416
      %v3034 = vsel %vm3030, %v3025, %v2431
      %v3035 = vsel %vm3030, %v3026, %v2446
      %v3036 = vsel %vm3030, %v3027, %v2461
      %v3037 = vsel %vm3030, %v3028, %v2476
      %v3038 = vsel %vm3030, %v3029, %v2491
      %vm3039 = vcmask 64512
      %3040 = vst.msk [vmem:[%s293] sm:$0xff] %vm3039, %v3031
      %3041 = vst.msk [vmem:[%s293 + $0x8] sm:$0xff] %vm3039, %v3032
      %3042 = vst.msk [vmem:[%s293 + $0x10] sm:$0xff] %vm3039, %v3033
      %3043 = vst.msk [vmem:[%s293 + $0x18] sm:$0xff] %vm3039, %v3034
      %3044 = vst.msk [vmem:[%s293 + $0x20] sm:$0xff] %vm3039, %v3035
      %3045 = vst.msk [vmem:[%s293 + $0x28] sm:$0xff] %vm3039, %v3036
      %3046 = vst.msk [vmem:[%s293 + $0x30] sm:$0xff] %vm3039, %v3037
      %3047 = vst.msk [vmem:[%s293 + $0x38] sm:$0xff] %vm3039, %v3038
      %s3048 = smul.u32 8, %s21
      %p3049 = scmp.lt.s32.totalorder %s20, 1
      %s3050 = scalar_select %p3049, %s20, 1
      %p3051 = scmp.lt.s32.totalorder %s3048, 7
      %s3052 = scalar_select %p3051, %s3048, 7
      %s3053 = smul.addr %s3050, 8
      %s3054 = sadd.s32 %s3052, %s3053
      %s3055 = smul.addr %s3054, 8
      %s3056 = scalar_lea.vmem %s3, %s3055
      %s3057 = smul.u32 8, %s21
      %p3058 = scmp.lt.s32.totalorder %s20, 1
      %s3059 = scalar_select %p3058, %s20, 1
      %p3060 = scmp.lt.s32.totalorder %s3057, 7
      %s3061 = scalar_select %p3060, %s3057, 7
      %s3062 = smul.addr %s3059, 8
      %s3063 = sadd.s32 %s3061, %s3062
      %s3064 = smul.addr %s3063, 8
      %s3065 = scalar_lea.vmem %s4, %s3064
      // Predicated region
      $region33: #{tpu_custom_call.1} parent=31 // pred_check
        %p3066 = pneg %p128
      $region34: #{tpu_custom_call.1} parent=31 // pred_check_branch
        %3068 = sbr.rel (%p3066) target = $region36
      $region35: #{tpu_custom_call.1} parent=31 // pred_region
        %s3069 = smul.u32 8, %s21
      $region36: #{tpu_custom_call.1} parent=31 // pred_fallthru
        _
      // Predicated region
      $region37: #{tpu_custom_call.1} parent=31 // pred_check
        %p3070 = pneg %p156
      $region38: #{tpu_custom_call.1} parent=31 // pred_check_branch
        %3072 = sbr.rel (%p3070) target = $region40
      $region39: #{tpu_custom_call.1} parent=31 // pred_region
        %s3073 = smul.u32 8, %s21
      $region40: #{tpu_custom_call.1} parent=31 // pred_fallthru
        _
    $region32: #{tpu_custom_call.1} parent=5 // pred_fallthru
      _
    %p3074 = scmp.le.s32.totalorder 2, %s11
    // Predicated region
    $region41: #{tpu_custom_call.1} parent=5 // pred_check
      %p3075 = pneg %p3074
    $region42: #{tpu_custom_call.1} parent=5 // pred_check_branch
      %3077 = sbr.rel (%p3075) target = $region44
    $region43: #{tpu_custom_call.1} parent=5 // pred_region
      %s3078 = ssub.s32 %s11, 2
      // Predicated region
      $region45: #{tpu_custom_call.1} parent=43 // pred_check
        %p3079 = pneg %p134
      $region46: #{tpu_custom_call.1} parent=43 // pred_check_branch
        %3081 = sbr.rel (%p3079) target = $region48
      $region47: #{tpu_custom_call.1} parent=43 // pred_region
        %s3082 = smul.u32 8, %s23
        %p3083 = scmp.lt.s32.totalorder %s22, 1
        %s3084 = scalar_select %p3083, %s22, 1
        %p3085 = scmp.lt.s32.totalorder %s3082, 7
        %s3086 = scalar_select %p3085, %s3082, 7
        %s3087 = smul.addr %s3084, 8
        %s3088 = sadd.s32 %s3086, %s3087
        %s3089 = smul.addr %s3088, 8
        %s3090 = scalar_lea.vmem %s3, %s3089
      $region48: #{tpu_custom_call.1} parent=43 // pred_fallthru
        _
      // Predicated region
      $region49: #{tpu_custom_call.1} parent=43 // pred_check
        %p3091 = pneg %p162
      $region50: #{tpu_custom_call.1} parent=43 // pred_check_branch
        %3093 = sbr.rel (%p3091) target = $region52
      $region51: #{tpu_custom_call.1} parent=43 // pred_region
        %s3094 = smul.u32 8, %s23
        %p3095 = scmp.lt.s32.totalorder %s22, 1
        %s3096 = scalar_select %p3095, %s22, 1
        %p3097 = scmp.lt.s32.totalorder %s3094, 7
        %s3098 = scalar_select %p3097, %s3094, 7
        %s3099 = smul.addr %s3096, 8
        %s3100 = sadd.s32 %s3098, %s3099
        %s3101 = smul.addr %s3100, 8
        %s3102 = scalar_lea.vmem %s4, %s3101
      $region52: #{tpu_custom_call.1} parent=43 // pred_fallthru
        _
    $region44: #{tpu_custom_call.1} parent=5 // pred_fallthru
      _
  $region6: #{tpu_custom_call.1} parent=0 // loop_footer
    %s15 = sadd.s32 1, %s11
  $region7: #{tpu_custom_call.1} parent=0 // loop_footer_branch
    %10 = sbr.rel target = $region3
  $region8: #{tpu_custom_call.1} parent=0 // loop_exit
    _

</llo_original>
